<compile_context>
chip_gen: v6e
topology: v6e:2x2x1
jax: 0.10.0
libtpu: 0.0.40
codegen_flags: <defaults>
</compile_context>

<pallas_src>
import jax
import jax.numpy as jnp
from jax import lax
from jax.experimental import pallas as pl
from jax.experimental.pallas import tpu as pltpu

LANE = 128  # TPU lane width


def _pick_strip_rows(H, W, Cpad, slab_budget_bytes=8 * 1024 * 1024, max_rows=64):
    """Largest divisor of H with <= max_rows rows and a bf16 im2col slab under budget."""
    best = 1
    for sr in range(1, min(H, max_rows) + 1):
        if H % sr == 0 and sr * W * 9 * Cpad * 2 <= slab_budget_bytes:
            best = sr
    return best


def _make_resblock_kernel(H, W, Cpad, co_blk, SR, nco, use_roll):
    rows = (SR + 2) * W  # halo'd strip, flattened (padded-row, col) -> sublane axis

    def kernel(x_ref, w_ref, b_ref, o_ref):
        # x_ref : (1, H, W, Cpad)   f32, full image, resident across (strip, co) axes
        # w_ref : (9*Cpad, Cpad)    bf16 im2col weights, grid-invariant
        # b_ref : (1, Cpad)         f32 bias, grid-invariant
        # o_ref : (1, SR, W, co_blk) f32 output strip
        s = pl.program_id(1)
        co = pl.program_id(2)
        r0 = pl.multiple_of(s * SR, SR)

        # ---- halo rows with reflect handling at the top/bottom image edges ----
        top_idx = jnp.where(r0 == 0, 1, r0 - 1)            # reflect(-1) -> 1
        bot_idx = jnp.where(r0 + SR == H, H - 2, r0 + SR)   # reflect(H)  -> H-2

        top = x_ref[0, pl.ds(top_idx, 1), :, :]             # (1,  W, C)
        mid = x_ref[0, pl.ds(r0, SR), :, :]                 # (SR, W, C)  (also residual)
        bot = x_ref[0, pl.ds(bot_idx, 1), :, :]             # (1,  W, C)
        xs3 = jnp.concatenate([top, mid, bot], axis=0)      # (SR+2, W, C)
        xsf = xs3.reshape(rows, Cpad)                       # row-major (p, j) flatten

        # ---- W-axis (kx) shifts with reflect fixup at columns 0 / W-1 ---------
        if use_roll:
            down = pltpu.roll(xsf, shift=1, axis=0)           # down[f] = xsf[f-1]
            up = pltpu.roll(xsf, shift=rows - 1, axis=0)      # up[f]   = xsf[f+1]
            jcol = lax.broadcasted_iota(jnp.int32, (rows, 1), 0) % W
            left = jnp.where(jcol == 0, up, down)             # src col j-1; reflect 0 -> 1
            right = jnp.where(jcol == W - 1, down, up)        # src col j+1; reflect W-1 -> W-2
        else:
            left = jnp.concatenate(
                [xs3[:, 1:2, :], xs3[:, :W - 1, :]], axis=1).reshape(rows, Cpad)
            right = jnp.concatenate(
                [xs3[:, 1:, :], xs3[:, W - 2:W - 1, :]], axis=1).reshape(rows, Cpad)

        shifted = (left.astype(jnp.bfloat16),                # kx = 0
                   xsf.astype(jnp.bfloat16),                 # kx = 1
                   right.astype(jnp.bfloat16))               # kx = 2

        # ---- im2col: (ky, kx, cin) ordering matches w_hwio.reshape(9*Cpad, Cpad)
        patches = [shifted[kx][ky * W:(ky + SR) * W, :]
                   for ky in range(3) for kx in range(3)]    # 9 x (SR*W, C) bf16
        pm = jnp.concatenate(patches, axis=-1)               # (SR*W, 9*Cpad) bf16

        # ---- grid-invariant weights/bias: slice this step's co_blk columns ----
        if nco == 1:
            w_blk = w_ref[...]
            b_blk = b_ref[...]
            res = mid
        else:
            co0 = pl.multiple_of(co * co_blk, co_blk)
            w_blk = w_ref[:, pl.ds(co0, co_blk)]
            b_blk = b_ref[:, pl.ds(co0, co_blk)]
            res = lax.dynamic_slice_in_dim(mid, co0, co_blk, axis=2)

        # ---- one big-K MXU matmul (f32 accumulate) + fused f32 epilogue --------
        # TODO(synk): on v7x (MRB in-place accumulation) a per-tap / per-ky loop of
        # smaller matmuls would avoid materializing the im2col slab entirely.
        acc = jnp.dot(pm, w_blk, preferred_element_type=jnp.float32)   # (SR*W, co_blk)
        out = (acc.reshape(SR, W, co_blk)
               + res.astype(jnp.float32)
               + b_blk.reshape(1, 1, co_blk))
        o_ref[0] = out.astype(o_ref.dtype)

    return kernel


def _resblock_forward(x_nchw, weight_oihw, bias, use_roll):
    N, Cin, H, W = x_nchw.shape
    Cout = weight_oihw.shape[0]
    assert Cin == Cout, "residual add requires in_channels == out_channels"
    assert H >= 2 and W >= 2, "reflect pad=1 requires H, W >= 2"

    # Zero-pad channels to a multiple of 128 (lane-dense); no-op for Cin >= 128.
    Cpad = ((Cin + LANE - 1) // LANE) * LANE
    co_blk = 256 if Cpad % 256 == 0 else LANE   # wider output tile on v6e/v7x MXUs
    nco = Cpad // co_blk

    SR = _pick_strip_rows(H, W, Cpad)
    n_strips = H // SR

    # Glue (plain JAX): layout change + channel padding + weight relayout.
    x_nhwc = jnp.transpose(x_nchw, (0, 2, 3, 1))                        # (N,H,W,Cin)
    if Cpad != Cin:
        x_nhwc = jnp.pad(x_nhwc, ((0, 0), (0, 0), (0, 0), (0, Cpad - Cin)))

    w_hwio = jnp.transpose(weight_oihw, (2, 3, 1, 0))                   # (3,3,Cin,Cout)
    w_hwio = jnp.pad(w_hwio, ((0, 0), (0, 0), (0, Cpad - Cin), (0, Cpad - Cout)))
    w_flat = w_hwio.reshape(9 * Cpad, Cpad).astype(jnp.bfloat16)        # bf16 MXU operand
    b_pad = jnp.pad(bias, (0, Cpad - Cout)).reshape(1, Cpad)            # f32 bias

    kernel = _make_resblock_kernel(H, W, Cpad, co_blk, SR, nco, use_roll)

    # Generation-aware VMEM limit (~75% of per-core capacity).
    try:
        vmem_cap = int(pltpu.get_tpu_info().vmem_capacity_bytes)
    except Exception:
        vmem_cap = 64 * 1024 * 1024
    vmem_limit = int(vmem_cap) * 3 // 4

    flops = int(2 * N * H * W * 9 * Cpad * Cpad)
    bytes_accessed = int(N * H * W * Cpad * 4 * 2 + 9 * Cpad * Cpad * 2 + Cpad * 4)

    # TODO(synk): for very large H*W*Cpad the resident f32 input dominates VMEM;
    # store activations in bf16 end-to-end or tile W as well.
    out_nhwc = pl.pallas_call(
        kernel,
        out_shape=jax.ShapeDtypeStruct((N, H, W, Cpad), x_nchw.dtype),
        grid_spec=pltpu.PrefetchScalarGridSpec(
            num_scalar_prefetch=0,
            grid=(N, n_strips, nco),
            in_specs=[
                # full image, resident across strip/co axes (changes only with n)
                pl.BlockSpec((1, H, W, Cpad), lambda n, s, co: (n, 0, 0, 0)),
                # grid-invariant weight / bias blocks (DMA'd once)
                pl.BlockSpec((9 * Cpad, Cpad), lambda n, s, co: (0, 0)),
                pl.BlockSpec((1, Cpad), lambda n, s, co: (0, 0)),
            ],
            out_specs=pl.BlockSpec((1, SR, W, co_blk),
                                   lambda n, s, co: (n, s, 0, co)),
        ),
        compiler_params=pltpu.CompilerParams(
            dimension_semantics=("parallel", "parallel", "parallel"),
            vmem_limit_bytes=vmem_limit),
        cost_estimate=pl.CostEstimate(flops=flops, transcendentals=0,
                                      bytes_accessed=bytes_accessed),
    )(x_nhwc, w_flat, b_pad)

    return jnp.transpose(out_nhwc[..., :Cout], (0, 3, 1, 2))            # back to NCHW


def resblock_forward(x_nchw, weight_oihw, bias):
    """x_nchw: (N, Cin, H, W) f32; weight_oihw: (Cout, Cin, 3, 3); bias: (Cout,)."""
    try:
        return _resblock_forward(x_nchw, weight_oihw, bias, use_roll=True)
    except Exception:
        # TODO(synk): fallback for builds where the sublane pltpu.roll fails to
        # lower; slice+concat shifts are correct but do extra repack copies.
        return _resblock_forward(x_nchw, weight_oihw, bias, use_roll=False)


if __name__ == "__main__":
    # Small shapes consistent with the module: batch=2, channels=4, spatial=16.
    N, C, H, W = 2, 4, 16, 16
    key = jax.random.PRNGKey(0)
    kx, kw, kb = jax.random.split(key, 3)

    x = jax.random.normal(kx, (N, C, H, W), dtype=jnp.float32)
    # Deterministic "init" mimicking nn.Conv2d default (uniform in +/- 1/sqrt(fan_in)).
    fan_in = C * 3 * 3
    bound = 1.0 / (fan_in ** 0.5)
    weight = jax.random.uniform(kw, (C, C, 3, 3), jnp.float32, -bound, bound)
    bias = jax.random.uniform(kb, (C,), jnp.float32, -bound, bound)

    out = resblock_forward(x, weight, bias)
    jax.block_until_ready(out)

    # Reference: f32 XLA conv with PyTorch-style reflect padding. The kernel's
    # matmul uses bf16 operands (f32 accumulate), so tolerances allow bf16 rounding.
    ref_conv = lax.conv_general_dilated(
        jnp.pad(x, ((0, 0), (0, 0), (1, 1), (1, 1)), mode="reflect"),
        weight, window_strides=(1, 1), padding="VALID",
        dimension_numbers=("NCHW", "OIHW", "NCHW"))
    ref = x + ref_conv + bias[None, :, None, None]

    assert out.shape == (N, C, H, W)
    err = float(jnp.max(jnp.abs(out - ref)))
    assert jnp.allclose(out, ref, atol=2e-2, rtol=2e-2), f"max abs err {err}"
    print("KERNEL_OK")
</pallas_src>

<mosaic_0001>
module attributes {stable_mosaic.version = 11 : i64} {
  func.func @kernel(%arg0: i32, %arg1: i32, %arg2: i32, %arg3: memref<1x16x16x128xf32, #tpu.memory_space<vmem>>, %arg4: memref<1152x128xbf16, #tpu.memory_space<vmem>>, %arg5: memref<1x128xf32, #tpu.memory_space<vmem>>, %arg6: memref<1x16x16x128xf32, #tpu.memory_space<vmem>>) attributes {dimension_semantics = [#tpu.dimension_semantics<parallel>, #tpu.dimension_semantics<parallel>, #tpu.dimension_semantics<parallel>], iteration_bounds = array<i64: 2, 1, 1>, scalar_prefetch = 0 : i64, scratch_operands = 0 : i64, tpu.core_type = #tpu.core_type<tc>, window_params = [{transform_indices = @transform_0, window_bounds = array<i64: 1, 16, 16, 128>}, {pipeline_mode = #tpu.pipeline_mode<synchronous>, transform_indices = @transform_1, window_bounds = array<i64: 1152, 128>}, {pipeline_mode = #tpu.pipeline_mode<synchronous>, transform_indices = @transform_2, window_bounds = array<i64: 1, 128>}, {transform_indices = @transform_3, window_bounds = array<i64: 1, 16, 16, 128>}]} {
    %c16_i32 = arith.constant 16 : i32
    %0 = arith.muli %arg1, %c16_i32 : i32
    %1 = tpu.assume_multiple %0, 16 : i32
    %c0_i32 = arith.constant 0 : i32
    %2 = arith.cmpi eq, %1, %c0_i32 : i32
    %c1_i32 = arith.constant 1 : i32
    %3 = arith.subi %1, %c1_i32 : i32
    %c1_i32_0 = arith.constant 1 : i32
    %4 = arith.select %2, %c1_i32_0, %3 : i32
    %c16_i32_1 = arith.constant 16 : i32
    %5 = arith.addi %1, %c16_i32_1 : i32
    %c16_i32_2 = arith.constant 16 : i32
    %6 = arith.cmpi eq, %5, %c16_i32_2 : i32
    %c16_i32_3 = arith.constant 16 : i32
    %7 = arith.addi %1, %c16_i32_3 : i32
    %c14_i32 = arith.constant 14 : i32
    %8 = arith.select %6, %c14_i32, %7 : i32
    %c0 = arith.constant 0 : index
    %9 = arith.index_cast %4 : i32 to index
    %c0_4 = arith.constant 0 : index
    %c0_5 = arith.constant 0 : index
    %10 = vector.load %arg3[%c0, %9, %c0_4, %c0_5] : memref<1x16x16x128xf32, #tpu.memory_space<vmem>>, vector<1x1x16x128xf32>
    %11 = vector.shape_cast %10 : vector<1x1x16x128xf32> to vector<1x16x128xf32>
    %c0_6 = arith.constant 0 : index
    %12 = arith.index_cast %1 : i32 to index
    %c0_7 = arith.constant 0 : index
    %c0_8 = arith.constant 0 : index
    %13 = vector.load %arg3[%c0_6, %12, %c0_7, %c0_8] : memref<1x16x16x128xf32, #tpu.memory_space<vmem>>, vector<1x16x16x128xf32>
    %14 = vector.shape_cast %13 : vector<1x16x16x128xf32> to vector<16x16x128xf32>
    %c0_9 = arith.constant 0 : index
    %15 = arith.index_cast %8 : i32 to index
    %c0_10 = arith.constant 0 : index
    %c0_11 = arith.constant 0 : index
    %16 = vector.load %arg3[%c0_9, %15, %c0_10, %c0_11] : memref<1x16x16x128xf32, #tpu.memory_space<vmem>>, vector<1x1x16x128xf32>
    %17 = vector.shape_cast %16 : vector<1x1x16x128xf32> to vector<1x16x128xf32>
    %18 = tpu.concatenate %11, %14, %17 in 0 : vector<1x16x128xf32>, vector<16x16x128xf32>, vector<1x16x128xf32> -> vector<18x16x128xf32>
    %19 = vector.shape_cast %18 : vector<18x16x128xf32> to vector<288x128xf32>
    %c1_i32_12 = arith.constant 1 : i32
    %20 = tpu.dynamic_rotate %19 by %c1_i32_12 dim 0 : vector<288x128xf32>, i32 -> vector<288x128xf32>
    %c287_i32 = arith.constant 287 : i32
    %21 = tpu.dynamic_rotate %19 by %c287_i32 dim 0 : vector<288x128xf32>, i32 -> vector<288x128xf32>
    %22 = tpu.iota {dimensions = array<i32: 0>} : vector<288x1xi32>
    %c16_i32_13 = arith.constant 16 : i32
    %c0_i32_14 = arith.constant 0 : i32
    %23 = arith.cmpi eq, %c16_i32_13, %c0_i32_14 : i32
    %c1_i32_15 = arith.constant 1 : i32
    %24 = arith.select %23, %c1_i32_15, %c16_i32_13 : i32
    %25 = vector.broadcast %24 : i32 to vector<288x1xi32>
    %26 = arith.remsi %22, %25 : vector<288x1xi32>
    %c0_i32_16 = arith.constant 0 : i32
    %27 = vector.broadcast %c0_i32_16 : i32 to vector<288x1xi32>
    %28 = arith.cmpi ne, %26, %27 : vector<288x1xi32>
    %c0_i32_17 = arith.constant 0 : i32
    %29 = vector.broadcast %c0_i32_17 : i32 to vector<288x1xi32>
    %30 = arith.cmpi slt, %26, %29 : vector<288x1xi32>
    %c0_i32_18 = arith.constant 0 : i32
    %31 = arith.cmpi slt, %24, %c0_i32_18 : i32
    %32 = vector.broadcast %31 : i1 to vector<288x1xi1>
    %33 = vector.broadcast %32 : vector<288x1xi1> to vector<288x1xi1>
    %34 = arith.xori %30, %33 : vector<288x1xi1>
    %35 = arith.andi %34, %28 : vector<288x1xi1>
    %36 = vector.broadcast %24 : i32 to vector<288x1xi32>
    %37 = arith.addi %26, %36 : vector<288x1xi32>
    %38 = arith.select %35, %37, %26 : vector<288x1xi1>, vector<288x1xi32>
    %c0_i32_19 = arith.constant 0 : i32
    %39 = vector.broadcast %c0_i32_19 : i32 to vector<288x1xi32>
    %40 = arith.cmpi eq, %38, %39 : vector<288x1xi32>
    %41 = vector.shape_cast %40 : vector<288x1xi1> to vector<288x1xi1>
    %42 = vector.broadcast %41 : vector<288x1xi1> to vector<288x128xi1>
    %43 = arith.select %42, %21, %20 : vector<288x128xi1>, vector<288x128xf32>
    %c15_i32 = arith.constant 15 : i32
    %44 = vector.broadcast %c15_i32 : i32 to vector<288x1xi32>
    %45 = arith.cmpi eq, %38, %44 : vector<288x1xi32>
    %46 = vector.shape_cast %45 : vector<288x1xi1> to vector<288x1xi1>
    %47 = vector.broadcast %46 : vector<288x1xi1> to vector<288x128xi1>
    %48 = arith.select %47, %20, %21 : vector<288x128xi1>, vector<288x128xf32>
    %49 = arith.truncf %43 : vector<288x128xf32> to vector<288x128xbf16>
    %50 = arith.truncf %19 : vector<288x128xf32> to vector<288x128xbf16>
    %51 = arith.truncf %48 : vector<288x128xf32> to vector<288x128xbf16>
    %52 = vector.extract_strided_slice %49 {offsets = [0, 0], sizes = [256, 128], strides = [1, 1]} : vector<288x128xbf16> to vector<256x128xbf16>
    %53 = vector.extract_strided_slice %50 {offsets = [0, 0], sizes = [256, 128], strides = [1, 1]} : vector<288x128xbf16> to vector<256x128xbf16>
    %54 = vector.extract_strided_slice %51 {offsets = [0, 0], sizes = [256, 128], strides = [1, 1]} : vector<288x128xbf16> to vector<256x128xbf16>
    %55 = vector.extract_strided_slice %49 {offsets = [16, 0], sizes = [256, 128], strides = [1, 1]} : vector<288x128xbf16> to vector<256x128xbf16>
    %56 = vector.extract_strided_slice %50 {offsets = [16, 0], sizes = [256, 128], strides = [1, 1]} : vector<288x128xbf16> to vector<256x128xbf16>
    %57 = vector.extract_strided_slice %51 {offsets = [16, 0], sizes = [256, 128], strides = [1, 1]} : vector<288x128xbf16> to vector<256x128xbf16>
    %58 = vector.extract_strided_slice %49 {offsets = [32, 0], sizes = [256, 128], strides = [1, 1]} : vector<288x128xbf16> to vector<256x128xbf16>
    %59 = vector.extract_strided_slice %50 {offsets = [32, 0], sizes = [256, 128], strides = [1, 1]} : vector<288x128xbf16> to vector<256x128xbf16>
    %60 = vector.extract_strided_slice %51 {offsets = [32, 0], sizes = [256, 128], strides = [1, 1]} : vector<288x128xbf16> to vector<256x128xbf16>
    %61 = tpu.concatenate %52, %53, %54, %55, %56, %57, %58, %59, %60 in 1 : vector<256x128xbf16>, vector<256x128xbf16>, vector<256x128xbf16>, vector<256x128xbf16>, vector<256x128xbf16>, vector<256x128xbf16>, vector<256x128xbf16>, vector<256x128xbf16>, vector<256x128xbf16> -> vector<256x1152xbf16>
    %c0_20 = arith.constant 0 : index
    %c0_21 = arith.constant 0 : index
    %62 = vector.load %arg4[%c0_20, %c0_21] : memref<1152x128xbf16, #tpu.memory_space<vmem>>, vector<1152x128xbf16>
    %c0_22 = arith.constant 0 : index
    %c0_23 = arith.constant 0 : index
    %63 = vector.load %arg5[%c0_22, %c0_23] : memref<1x128xf32, #tpu.memory_space<vmem>>, vector<1x128xf32>
    %cst = arith.constant dense<0.000000e+00> : vector<256x128xf32>
    %64 = tpu.matmul %61, %62, %cst {dimension_numbers = #tpu.dot_dimension_numbers<[1], [0], [0], [1], [0, 0, 1, 1], [], []>} : vector<256x1152xbf16>, vector<1152x128xbf16>, vector<256x128xf32> -> vector<256x128xf32>
    %65 = vector.shape_cast %64 : vector<256x128xf32> to vector<16x16x128xf32>
    %66 = arith.addf %65, %14 : vector<16x16x128xf32>
    %67 = vector.shape_cast %63 : vector<1x128xf32> to vector<1x1x128xf32>
    %68 = vector.broadcast %67 : vector<1x1x128xf32> to vector<16x16x128xf32>
    %69 = arith.addf %66, %68 : vector<16x16x128xf32>
    %c0_24 = arith.constant 0 : index
    %c0_25 = arith.constant 0 : index
    %c0_26 = arith.constant 0 : index
    %c0_27 = arith.constant 0 : index
    %70 = vector.load %arg6[%c0_24, %c0_25, %c0_26, %c0_27] : memref<1x16x16x128xf32, #tpu.memory_space<vmem>>, vector<1x16x16x128xf32>
    %71 = vector.shape_cast %70 : vector<1x16x16x128xf32> to vector<16x16x128xf32>
    %72 = vector.shape_cast %69 : vector<16x16x128xf32> to vector<1x16x16x128xf32>
    tpu.vector_store %arg6[%c0_24, %c0_25, %c0_26, %c0_27], %72 {strides = array<i32>} : memref<1x16x16x128xf32, #tpu.memory_space<vmem>>, vector<1x16x16x128xf32>,
    return
  }
  func.func @transform_0(%arg0: i32, %arg1: i32, %arg2: i32) -> (i32, i32, i32, i32) {
    %c0_i32 = arith.constant 0 : i32
    %c0_i32_0 = arith.constant 0 : i32
    %c0_i32_1 = arith.constant 0 : i32
    %c0_i32_2 = arith.constant 0 : i32
    return %arg0, %c0_i32, %c0_i32_0, %c0_i32_1 : i32, i32, i32, i32
  }
  func.func @transform_1(%arg0: i32, %arg1: i32, %arg2: i32) -> (i32, i32) {
    %c0_i32 = arith.constant 0 : i32
    %c0_i32_0 = arith.constant 0 : i32
    %c0_i32_1 = arith.constant 0 : i32
    return %c0_i32, %c0_i32_0 : i32, i32
  }
  func.func @transform_2(%arg0: i32, %arg1: i32, %arg2: i32) -> (i32, i32) {
    %c0_i32 = arith.constant 0 : i32
    %c0_i32_0 = arith.constant 0 : i32
    %c0_i32_1 = arith.constant 0 : i32
    return %c0_i32, %c0_i32_0 : i32, i32
  }
  func.func @transform_3(%arg0: i32, %arg1: i32, %arg2: i32) -> (i32, i32, i32, i32) {
    %c0_i32 = arith.constant 0 : i32
    %c0_i32_0 = arith.constant 0 : i32
    return %arg0, %arg1, %c0_i32, %arg2 : i32, i32, i32, i32
  }
}

module attributes {stable_mosaic.version = 11 : i64} {
  func.func @kernel(%arg0: i32, %arg1: i32, %arg2: i32, %arg3: memref<1x16x16x128xf32, #tpu.memory_space<vmem>>, %arg4: memref<1152x128xbf16, #tpu.memory_space<vmem>>, %arg5: memref<1x128xf32, #tpu.memory_space<vmem>>, %arg6: memref<1x16x16x128xf32, #tpu.memory_space<vmem>>) attributes {dimension_semantics = [#tpu.dimension_semantics<parallel>, #tpu.dimension_semantics<parallel>, #tpu.dimension_semantics<parallel>], iteration_bounds = array<i64: 2, 1, 1>, scalar_prefetch = 0 : i64, scratch_operands = 0 : i64, tpu.core_type = #tpu.core_type<tc>, window_params = [{transform_indices = @transform_0, window_bounds = array<i64: 1, 16, 16, 128>}, {pipeline_mode = #tpu.pipeline_mode<synchronous>, transform_indices = @transform_1, window_bounds = array<i64: 1152, 128>}, {pipeline_mode = #tpu.pipeline_mode<synchronous>, transform_indices = @transform_2, window_bounds = array<i64: 1, 128>}, {transform_indices = @transform_3, window_bounds = array<i64: 1, 16, 16, 128>}]} {
    %c16_i32 = arith.constant 16 : i32
    %0 = arith.muli %arg1, %c16_i32 : i32
    %1 = tpu.assume_multiple %0, 16 : i32
    %c0_i32 = arith.constant 0 : i32
    %2 = arith.cmpi eq, %1, %c0_i32 : i32
    %c1_i32 = arith.constant 1 : i32
    %3 = arith.subi %1, %c1_i32 : i32
    %c1_i32_0 = arith.constant 1 : i32
    %4 = arith.select %2, %c1_i32_0, %3 : i32
    %c16_i32_1 = arith.constant 16 : i32
    %5 = arith.addi %1, %c16_i32_1 : i32
    %c16_i32_2 = arith.constant 16 : i32
    %6 = arith.cmpi eq, %5, %c16_i32_2 : i32
    %c16_i32_3 = arith.constant 16 : i32
    %7 = arith.addi %1, %c16_i32_3 : i32
    %c14_i32 = arith.constant 14 : i32
    %8 = arith.select %6, %c14_i32, %7 : i32
    %c0 = arith.constant 0 : index
    %9 = arith.index_cast %4 : i32 to index
    %c0_4 = arith.constant 0 : index
    %c0_5 = arith.constant 0 : index
    %10 = vector.load %arg3[%c0, %9, %c0_4, %c0_5] : memref<1x16x16x128xf32, #tpu.memory_space<vmem>>, vector<1x1x16x128xf32>
    %11 = vector.shape_cast %10 : vector<1x1x16x128xf32> to vector<1x16x128xf32>
    %c0_6 = arith.constant 0 : index
    %12 = arith.index_cast %1 : i32 to index
    %c0_7 = arith.constant 0 : index
    %c0_8 = arith.constant 0 : index
    %13 = vector.load %arg3[%c0_6, %12, %c0_7, %c0_8] : memref<1x16x16x128xf32, #tpu.memory_space<vmem>>, vector<1x16x16x128xf32>
    %14 = vector.shape_cast %13 : vector<1x16x16x128xf32> to vector<16x16x128xf32>
    %c0_9 = arith.constant 0 : index
    %15 = arith.index_cast %8 : i32 to index
    %c0_10 = arith.constant 0 : index
    %c0_11 = arith.constant 0 : index
    %16 = vector.load %arg3[%c0_9, %15, %c0_10, %c0_11] : memref<1x16x16x128xf32, #tpu.memory_space<vmem>>, vector<1x1x16x128xf32>
    %17 = vector.shape_cast %16 : vector<1x1x16x128xf32> to vector<1x16x128xf32>
    %18 = tpu.concatenate %11, %14, %17 in 0 : vector<1x16x128xf32>, vector<16x16x128xf32>, vector<1x16x128xf32> -> vector<18x16x128xf32>
    %19 = vector.shape_cast %18 : vector<18x16x128xf32> to vector<288x128xf32>
    %20 = vector.extract_strided_slice %18 {offsets = [0, 1, 0], sizes = [18, 1, 128], strides = [1, 1, 1]} : vector<18x16x128xf32> to vector<18x1x128xf32>
    %21 = vector.extract_strided_slice %18 {offsets = [0, 0, 0], sizes = [18, 15, 128], strides = [1, 1, 1]} : vector<18x16x128xf32> to vector<18x15x128xf32>
    %22 = tpu.concatenate %20, %21 in 1 : vector<18x1x128xf32>, vector<18x15x128xf32> -> vector<18x16x128xf32>
    %23 = vector.shape_cast %22 : vector<18x16x128xf32> to vector<288x128xf32>
    %24 = vector.extract_strided_slice %18 {offsets = [0, 1, 0], sizes = [18, 15, 128], strides = [1, 1, 1]} : vector<18x16x128xf32> to vector<18x15x128xf32>
    %25 = vector.extract_strided_slice %18 {offsets = [0, 14, 0], sizes = [18, 1, 128], strides = [1, 1, 1]} : vector<18x16x128xf32> to vector<18x1x128xf32>
    %26 = tpu.concatenate %24, %25 in 1 : vector<18x15x128xf32>, vector<18x1x128xf32> -> vector<18x16x128xf32>
    %27 = vector.shape_cast %26 : vector<18x16x128xf32> to vector<288x128xf32>
    %28 = arith.truncf %23 : vector<288x128xf32> to vector<288x128xbf16>
    %29 = arith.truncf %19 : vector<288x128xf32> to vector<288x128xbf16>
    %30 = arith.truncf %27 : vector<288x128xf32> to vector<288x128xbf16>
    %31 = vector.extract_strided_slice %28 {offsets = [0, 0], sizes = [256, 128], strides = [1, 1]} : vector<288x128xbf16> to vector<256x128xbf16>
    %32 = vector.extract_strided_slice %29 {offsets = [0, 0], sizes = [256, 128], strides = [1, 1]} : vector<288x128xbf16> to vector<256x128xbf16>
    %33 = vector.extract_strided_slice %30 {offsets = [0, 0], sizes = [256, 128], strides = [1, 1]} : vector<288x128xbf16> to vector<256x128xbf16>
    %34 = vector.extract_strided_slice %28 {offsets = [16, 0], sizes = [256, 128], strides = [1, 1]} : vector<288x128xbf16> to vector<256x128xbf16>
    %35 = vector.extract_strided_slice %29 {offsets = [16, 0], sizes = [256, 128], strides = [1, 1]} : vector<288x128xbf16> to vector<256x128xbf16>
    %36 = vector.extract_strided_slice %30 {offsets = [16, 0], sizes = [256, 128], strides = [1, 1]} : vector<288x128xbf16> to vector<256x128xbf16>
    %37 = vector.extract_strided_slice %28 {offsets = [32, 0], sizes = [256, 128], strides = [1, 1]} : vector<288x128xbf16> to vector<256x128xbf16>
    %38 = vector.extract_strided_slice %29 {offsets = [32, 0], sizes = [256, 128], strides = [1, 1]} : vector<288x128xbf16> to vector<256x128xbf16>
    %39 = vector.extract_strided_slice %30 {offsets = [32, 0], sizes = [256, 128], strides = [1, 1]} : vector<288x128xbf16> to vector<256x128xbf16>
    %40 = tpu.concatenate %31, %32, %33, %34, %35, %36, %37, %38, %39 in 1 : vector<256x128xbf16>, vector<256x128xbf16>, vector<256x128xbf16>, vector<256x128xbf16>, vector<256x128xbf16>, vector<256x128xbf16>, vector<256x128xbf16>, vector<256x128xbf16>, vector<256x128xbf16> -> vector<256x1152xbf16>
    %c0_12 = arith.constant 0 : index
    %c0_13 = arith.constant 0 : index
    %41 = vector.load %arg4[%c0_12, %c0_13] : memref<1152x128xbf16, #tpu.memory_space<vmem>>, vector<1152x128xbf16>
    %c0_14 = arith.constant 0 : index
    %c0_15 = arith.constant 0 : index
    %42 = vector.load %arg5[%c0_14, %c0_15] : memref<1x128xf32, #tpu.memory_space<vmem>>, vector<1x128xf32>
    %cst = arith.constant dense<0.000000e+00> : vector<256x128xf32>
    %43 = tpu.matmul %40, %41, %cst {dimension_numbers = #tpu.dot_dimension_numbers<[1], [0], [0], [1], [0, 0, 1, 1], [], []>} : vector<256x1152xbf16>, vector<1152x128xbf16>, vector<256x128xf32> -> vector<256x128xf32>
    %44 = vector.shape_cast %43 : vector<256x128xf32> to vector<16x16x128xf32>
    %45 = arith.addf %44, %14 : vector<16x16x128xf32>
    %46 = vector.shape_cast %42 : vector<1x128xf32> to vector<1x1x128xf32>
    %47 = vector.broadcast %46 : vector<1x1x128xf32> to vector<16x16x128xf32>
    %48 = arith.addf %45, %47 : vector<16x16x128xf32>
    %c0_16 = arith.constant 0 : index
    %c0_17 = arith.constant 0 : index
    %c0_18 = arith.constant 0 : index
    %c0_19 = arith.constant 0 : index
    %49 = vector.load %arg6[%c0_16, %c0_17, %c0_18, %c0_19] : memref<1x16x16x128xf32, #tpu.memory_space<vmem>>, vector<1x16x16x128xf32>
    %50 = vector.shape_cast %49 : vector<1x16x16x128xf32> to vector<16x16x128xf32>
    %51 = vector.shape_cast %48 : vector<16x16x128xf32> to vector<1x16x16x128xf32>
    tpu.vector_store %arg6[%c0_16, %c0_17, %c0_18, %c0_19], %51 {strides = array<i32>} : memref<1x16x16x128xf32, #tpu.memory_space<vmem>>, vector<1x16x16x128xf32>,
    return
  }
  func.func @transform_0(%arg0: i32, %arg1: i32, %arg2: i32) -> (i32, i32, i32, i32) {
    %c0_i32 = arith.constant 0 : i32
    %c0_i32_0 = arith.constant 0 : i32
    %c0_i32_1 = arith.constant 0 : i32
    %c0_i32_2 = arith.constant 0 : i32
    return %arg0, %c0_i32, %c0_i32_0, %c0_i32_1 : i32, i32, i32, i32
  }
  func.func @transform_1(%arg0: i32, %arg1: i32, %arg2: i32) -> (i32, i32) {
    %c0_i32 = arith.constant 0 : i32
    %c0_i32_0 = arith.constant 0 : i32
    %c0_i32_1 = arith.constant 0 : i32
    return %c0_i32, %c0_i32_0 : i32, i32
  }
  func.func @transform_2(%arg0: i32, %arg1: i32, %arg2: i32) -> (i32, i32) {
    %c0_i32 = arith.constant 0 : i32
    %c0_i32_0 = arith.constant 0 : i32
    %c0_i32_1 = arith.constant 0 : i32
    return %c0_i32, %c0_i32_0 : i32, i32
  }
  func.func @transform_3(%arg0: i32, %arg1: i32, %arg2: i32) -> (i32, i32, i32, i32) {
    %c0_i32 = arith.constant 0 : i32
    %c0_i32_0 = arith.constant 0 : i32
    return %arg0, %arg1, %c0_i32, %arg2 : i32, i32, i32, i32
  }
}

</mosaic_0001>

<llo_original>
// kernel: tpu_custom_call.1
$region0: #{tpu_custom_call.1}
  #allocation0 [shape = 'u32[]', space=smem, size = 0x4, offset = 0x4, fixed_abs, tag = 'smem constant byte address 0x4 - core index']
  #allocation1 [shape = 'u32[144,128]{1,0:T(1,128)}', space=vmem, size = 0x12000, scoped, tag = 'internal scratch']
  %s0 = inlined_call_operand.hbm [shape: f32[2,16,16,128], index: 0, kind: input, shape index: {}]
  %s1 = inlined_call_operand.hbm [shape: bf16[1152,128], index: 1, kind: input, shape index: {}]
  %s2 = inlined_call_operand.vmem [shape: f32[1,128], index: 2, kind: input, shape index: {}]
  %s3 = inlined_call_operand.hbm [shape: f32[2,16,16,128], index: 3, kind: output, shape index: {}]
  %s4 = sld [smem:[#allocation0]]
  $region53: #{tpu_custom_call.1} parent=0
    _
  %s6 = ssub.s32 1, %s4
  %s7 = scalar_select 0, %s6, %s4
  $region1: #{tpu_custom_call.1} parent=0
    #allocation2 [shape = 'u8[262144]{0}', space=vmem, size = 0x40000, scoped, tag = 'input window, operand 0']
    #allocation3 [shape = 's32[2]{0}', space=sflag, size = 0x8, scoped, tag = 'scoped memory for tpu_custom_call.1']
    #allocation4 [shape = 's32[2]{0}', space=sflag, size = 0x8, scoped, tag = 'scoped memory for tpu_custom_call.1']
    #allocation5 [shape = 'u8[294912]{0}', space=vmem, size = 0x48000, scoped, tag = 'input window, operand 1, single buffered']
    #allocation6 [shape = 's32[1]{0}', space=sflag, size = 0x4, scoped, tag = 'scoped memory for tpu_custom_call.1']
    #allocation7 [shape = 'u8[262144]{0}', space=vmem, size = 0x40000, scoped, tag = 'output window, operand 0']
    %8 = vsyncpa [#allocation3], 0
    %s9 = scalar_lea.sflag [#allocation3], 1
    %10 = vsyncpa %s9, 0
    %11 = vsyncpa [#allocation6], 0
    %12 = vsyncpa [#allocation4], 0
    %s13 = scalar_lea.sflag [#allocation4], 1
    %14 = vsyncpa %s13, 0
    loop: start=0, step=1, limit=4
    $region2: #{tpu_custom_call.1} parent=1 // loop_pre_header
      _
    $region3: #{tpu_custom_call.1} parent=1 // loop_header
      %s16 = sphi 0, %s20
      %p17 = scmp.ge.s32.totalorder %s16, 4
      %s23 = sphi 0, %s42
      %s24 = sphi 0, %s38
      %s25 = sphi 0, %s34
      %s26 = sphi 0, %s23
      %s27 = sphi 0, %s24
      %s28 = sphi 0, %s25
      %s29 = sphi 0, %s26
      %s30 = sphi 0, %s27
      %s31 = sphi 0, %s28
      %s45 = sphi 0, %s47
      %s48 = sphi 0, %s45
      %s49 = sphi 0, %s48
      %s65 = sphi 0, %s49
      %s69 = sphi 0, %s69
      %s71 = sphi 0, %s69
      %s72 = sphi 0, %s71
      %s86 = sphi 0, %s72
      %s90 = sphi 0, %s90
      %s92 = sphi 0, %s90
      %s93 = sphi 0, %s92
      %s107 = sphi 0, %s93
      %s117 = sphi 0, %s119
      %s120 = sphi 0, %s117
      %s121 = sphi 0, %s120
      %s137 = sphi 0, %s121
    $region4: #{tpu_custom_call.1} parent=1 // loop_header_branch
      %19 = sbr.rel (%p17) target = $region8
    $region5: #{tpu_custom_call.1} parent=1 // loop_body
      %s21 = ssub.s32 %s16, 1
      %s22 = ssub.s32 %s16, 2
      %s32 = sadd.s32 1, %s25
      %p33 = scmp.ge.s32.totalorder %s32, 1
      %s34 = scalar_select %p33, 0, %s32
      %s35 = sadd.s32 1, %s24
      %s36 = scalar_select %p33, %s35, %s24
      %p37 = scmp.ge.s32.totalorder %s36, 1
      %s38 = scalar_select %p37, 0, %s36
      %s39 = sadd.s32 1, %s23
      %s40 = scalar_select %p37, %s39, %s23
      %p41 = scmp.ge.s32.totalorder %s40, 2
      %s42 = scalar_select %p41, 0, %s40
      %s43 = ssub.s32 %s23, %s42
      %p44 = scmp.eq.s32.totalorder %s43, 0
      %s46 = sadd.s32 %s45, 1
      %s47 = scalar_select %p44, %s45, %s46
      %p50 = pneg %p44
      %p51 = scmp.eq.s32.totalorder %s16, 1
      %p52 = por %p50, %p51
      %p53 = scmp.ne.s32.totalorder %s45, %s48
      %p54 = scmp.eq.s32.totalorder %s16, 0
      %p55 = por %p53, %p54
      %p56 = scmp.ne.s32.totalorder %s45, %s48
      %p57 = scmp.eq.s32.totalorder %s21, 1
      %p58 = por %p56, %p57
      %p59 = scmp.ne.s32.totalorder %s48, %s49
      %p60 = scmp.eq.s32.totalorder %s21, 0
      %p61 = por %p59, %p60
      %p62 = scmp.ne.s32.totalorder %s48, %s49
      %p63 = scmp.eq.s32.totalorder %s22, 1
      %p64 = por %p62, %p63
      %p66 = scmp.ne.s32.totalorder %s49, %s65
      %p67 = scmp.eq.s32.totalorder %s22, 0
      %p68 = por %p66, %p67
      %s70 = sadd.s32 %s69, 1
      %p73 = scmp.eq.s32.totalorder %s16, 1
      %p74 = scmp.ne.s32.totalorder %s69, %s71
      %p75 = scmp.eq.s32.totalorder %s16, 0
      %p76 = por %p74, %p75
      %p77 = scmp.ne.s32.totalorder %s69, %s71
      %p78 = scmp.eq.s32.totalorder %s21, 1
      %p79 = por %p77, %p78
      %p80 = scmp.ne.s32.totalorder %s71, %s72
      %p81 = scmp.eq.s32.totalorder %s21, 0
      %p82 = por %p80, %p81
      %p83 = scmp.ne.s32.totalorder %s71, %s72
      %p84 = scmp.eq.s32.totalorder %s22, 1
      %p85 = por %p83, %p84
      %p87 = scmp.ne.s32.totalorder %s72, %s86
      %p88 = scmp.eq.s32.totalorder %s22, 0
      %p89 = por %p87, %p88
      %s91 = sadd.s32 %s90, 1
      %p94 = scmp.eq.s32.totalorder %s16, 1
      %p95 = scmp.ne.s32.totalorder %s90, %s92
      %p96 = scmp.eq.s32.totalorder %s16, 0
      %p97 = por %p95, %p96
      %p98 = scmp.ne.s32.totalorder %s90, %s92
      %p99 = scmp.eq.s32.totalorder %s21, 1
      %p100 = por %p98, %p99
      %p101 = scmp.ne.s32.totalorder %s92, %s93
      %p102 = scmp.eq.s32.totalorder %s21, 0
      %p103 = por %p101, %p102
      %p104 = scmp.ne.s32.totalorder %s92, %s93
      %p105 = scmp.eq.s32.totalorder %s22, 1
      %p106 = por %p104, %p105
      %p108 = scmp.ne.s32.totalorder %s93, %s107
      %p109 = scmp.eq.s32.totalorder %s22, 0
      %p110 = por %p108, %p109
      %s111 = ssub.s32 %s23, %s42
      %s112 = ssub.s32 %s24, %s38
      %s113 = sor.u32 %s111, %s112
      %s114 = ssub.s32 %s25, %s34
      %s115 = sor.u32 %s113, %s114
      %p116 = scmp.eq.s32.totalorder %s115, 0
      %s118 = sadd.s32 %s117, 1
      %s119 = scalar_select %p116, %s117, %s118
      %p122 = pneg %p116
      %p123 = scmp.eq.s32.totalorder %s16, 1
      %p124 = por %p122, %p123
      %p125 = scmp.ne.s32.totalorder %s117, %s120
      %p126 = scmp.eq.s32.totalorder %s16, 0
      %p127 = por %p125, %p126
      %p128 = scmp.ne.s32.totalorder %s117, %s120
      %p129 = scmp.eq.s32.totalorder %s21, 1
      %p130 = por %p128, %p129
      %p131 = scmp.ne.s32.totalorder %s120, %s121
      %p132 = scmp.eq.s32.totalorder %s21, 0
      %p133 = por %p131, %p132
      %p134 = scmp.ne.s32.totalorder %s120, %s121
      %p135 = scmp.eq.s32.totalorder %s22, 1
      %p136 = por %p134, %p135
      %p138 = scmp.ne.s32.totalorder %s121, %s137
      %p139 = scmp.eq.s32.totalorder %s22, 0
      %p140 = por %p138, %p139
      %p141 = scmp.le.s32.totalorder 1, %s16
      %p142 = scmp.lt.s32.totalorder %s16, 3
      %p143 = pnand %p141, %p142
      %p144 = pneg %p143
      // Predicated region
      $region9: #{tpu_custom_call.1} parent=5 // pred_check
        _
      $region10: #{tpu_custom_call.1} parent=5 // pred_check_branch
        %146 = sbr.rel (%p143) target = $region12
      $region11: #{tpu_custom_call.1} parent=5 // pred_region
        %s147 = ssub.s32 %s16, 1
        // Predicated region
        $region13: #{tpu_custom_call.1} parent=11 // pred_check
          %p148 = pneg %p82
        $region14: #{tpu_custom_call.1} parent=11 // pred_check_branch
          %150 = sbr.rel (%p148) target = $region16
        $region15: #{tpu_custom_call.1} parent=11 // pred_region
          %s152 = ssub.s32 9216, 9216
          %153 = vsyncadd [#allocation6], %s152
          %s154 = sshll.u32 [#allocation5], 4
          %s155 = int_to_ptr.vmem [resolvable:$true] %s154
          %160 = dma.hbm_to_vmem [thread:$0]  %s1, 9216, %s155, [#allocation6], 64, 64, 4
        $region16: #{tpu_custom_call.1} parent=11 // pred_fallthru
          _
        // Predicated region
        $region17: #{tpu_custom_call.1} parent=11 // pred_check
          %p161 = pneg %p103
        $region18: #{tpu_custom_call.1} parent=11 // pred_check_branch
          %163 = sbr.rel (%p161) target = $region20
        $region19: #{tpu_custom_call.1} parent=11 // pred_region
          _
        $region20: #{tpu_custom_call.1} parent=11 // pred_fallthru
          _
      $region12: #{tpu_custom_call.1} parent=5 // pred_fallthru
        _
      %p164 = scmp.lt.s32.totalorder %s16, 2
      // Predicated region
      $region21: #{tpu_custom_call.1} parent=5 // pred_check
        %p165 = pneg %p164
      $region22: #{tpu_custom_call.1} parent=5 // pred_check_branch
        %167 = sbr.rel (%p165) target = $region24
      $region23: #{tpu_custom_call.1} parent=5 // pred_region
        // Predicated region
        $region25: #{tpu_custom_call.1} parent=23 // pred_check
          %p168 = pneg %p55
        $region26: #{tpu_custom_call.1} parent=23 // pred_check_branch
          %170 = sbr.rel (%p168) target = $region28
        $region27: #{tpu_custom_call.1} parent=23 // pred_region
          %s171 = sand.u32 %s45, 1
          %s172 = scalar_lea.sflag [#allocation3], %s171
          %s173 = sand.u32 %s45, 1
          %s174 = smul.addr %s173, 256
          %s175 = scalar_lea.vmem [#allocation2], %s174
          %s177 = ssub.s32 4096, 4096
          %178 = vsyncadd %s172, %s177
          %s179 = smul.addr %s23, 32
          %s180 = smul.addr %s179, 128
          %s181 = scalar_lea.hbm %s0, %s180
          %s182 = sshll.u32 %s175, 4
          %s183 = int_to_ptr.vmem [resolvable:$true] %s182
          %188 = dma.hbm_to_vmem [thread:$0]  %s181, 4096, %s183, %s172, 128, 128, 8
        $region28: #{tpu_custom_call.1} parent=23 // pred_fallthru
          _
      $region24: #{tpu_custom_call.1} parent=5 // pred_fallthru
        _
      %p189 = scmp.le.s32.totalorder 1, %s16
      %p190 = scmp.lt.s32.totalorder %s16, 3
      %p191 = pnand %p189, %p190
      %p192 = pneg %p191
      // Predicated region
      $region29: #{tpu_custom_call.1} parent=5 // pred_check
        _
      $region30: #{tpu_custom_call.1} parent=5 // pred_check_branch
        %194 = sbr.rel (%p191) target = $region32
      $region31: #{tpu_custom_call.1} parent=5 // pred_region
        %s195 = ssub.s32 %s16, 1
        %s196 = sand.u32 %s48, 1
        %s197 = scalar_lea.sflag [#allocation3], %s196
        %s198 = sand.u32 %s48, 1
        %s199 = smul.addr %s198, 256
        %s200 = scalar_lea.vmem [#allocation2], %s199
        // Predicated region
        $region33: #{tpu_custom_call.1} parent=31 // pred_check
          %p201 = pneg %p61
        $region34: #{tpu_custom_call.1} parent=31 // pred_check_branch
          %203 = sbr.rel (%p201) target = $region36
        $region35: #{tpu_custom_call.1} parent=31 // pred_region
          %204 = dma.done %s197, 4096
        $region36: #{tpu_custom_call.1} parent=31 // pred_fallthru
          _
        // Predicated region
        $region37: #{tpu_custom_call.1} parent=31 // pred_check
          %p205 = pneg %p82
        $region38: #{tpu_custom_call.1} parent=31 // pred_check_branch
          %207 = sbr.rel (%p205) target = $region40
        $region39: #{tpu_custom_call.1} parent=31 // pred_region
          %208 = dma.done [#allocation6], 9216
        $region40: #{tpu_custom_call.1} parent=31 // pred_fallthru
          _
        %s209 = sand.u32 %s48, 1
        %s210 = scalar_lea.sflag [#allocation3], %s209
        %s211 = sand.u32 %s48, 1
        %s212 = smul.addr %s211, 256
        %s213 = scalar_lea.vmem [#allocation2], %s212
        %p214 = pneg %p61
        %p215 = pneg %p58
        %p216 = pneg %p82
        %p217 = pneg %p79
        %p218 = pneg %p103
        %p219 = pneg %p100
        %p220 = pneg %p133
        %p221 = pneg %p130
        %s222 = sand.u32 %s120, 1
        %s223 = scalar_lea.sflag [#allocation4], %s222
        %s224 = sand.u32 %s120, 1
        %s225 = smul.addr %s224, 256
        %s226 = scalar_lea.vmem [#allocation7], %s225
        %s227 = smul.u32 16, %s27
        %s229 = smul.u32 %s27, 16
        %p230 = scmp.eq.s32.totalorder %s229, 0
        %s231 = ssub.s32 %s229, 1
        %s232 = scalar_select %p230, 1, %s231
        %s233 = sadd.s32 %s229, 16
        %p234 = scmp.eq.s32.totalorder %s233, 16
        %s235 = scalar_select %p234, 14, %s233
        %s236 = smul.u32 %s232, 16
        %s237 = scalar_lea.vmem %s200, %s236 [#allocation2]
        %v238 = vld [vmem:[%s237] sm:$0xff]
        %v239 = vld [vmem:[%s237 + $0x8] sm:$0xff]
        %s240 = smul.u32 %s229, 16
        %s241 = scalar_lea.vmem %s200, %s240 [#allocation2]
        %v242 = vld [vmem:[%s241] sm:$0xff]
        %v243 = vld [vmem:[%s241 + $0x8] sm:$0xff]
        %v244 = vld [vmem:[%s241 + $0x10] sm:$0xff]
        %v245 = vld [vmem:[%s241 + $0x18] sm:$0xff]
        %v246 = vld [vmem:[%s241 + $0x20] sm:$0xff]
        %v247 = vld [vmem:[%s241 + $0x28] sm:$0xff]
        %v248 = vld [vmem:[%s241 + $0x30] sm:$0xff]
        %v249 = vld [vmem:[%s241 + $0x38] sm:$0xff]
        %v250 = vld [vmem:[%s241 + $0x40] sm:$0xff]
        %v251 = vld [vmem:[%s241 + $0x48] sm:$0xff]
        %v252 = vld [vmem:[%s241 + $0x50] sm:$0xff]
        %v253 = vld [vmem:[%s241 + $0x58] sm:$0xff]
        %v254 = vld [vmem:[%s241 + $0x60] sm:$0xff]
        %v255 = vld [vmem:[%s241 + $0x68] sm:$0xff]
        %v256 = vld [vmem:[%s241 + $0x70] sm:$0xff]
        %v257 = vld [vmem:[%s241 + $0x78] sm:$0xff]
        %v258 = vld [vmem:[%s241 + $0x80] sm:$0xff]
        %v259 = vld [vmem:[%s241 + $0x88] sm:$0xff]
        %v260 = vld [vmem:[%s241 + $0x90] sm:$0xff]
        %v261 = vld [vmem:[%s241 + $0x98] sm:$0xff]
        %v262 = vld [vmem:[%s241 + $0xa0] sm:$0xff]
        %v263 = vld [vmem:[%s241 + $0xa8] sm:$0xff]
        %v264 = vld [vmem:[%s241 + $0xb0] sm:$0xff]
        %v265 = vld [vmem:[%s241 + $0xb8] sm:$0xff]
        %v266 = vld [vmem:[%s241 + $0xc0] sm:$0xff]
        %v267 = vld [vmem:[%s241 + $0xc8] sm:$0xff]
        %v268 = vld [vmem:[%s241 + $0xd0] sm:$0xff]
        %v269 = vld [vmem:[%s241 + $0xd8] sm:$0xff]
        %v270 = vld [vmem:[%s241 + $0xe0] sm:$0xff]
        %v271 = vld [vmem:[%s241 + $0xe8] sm:$0xff]
        %v272 = vld [vmem:[%s241 + $0xf0] sm:$0xff]
        %v273 = vld [vmem:[%s241 + $0xf8] sm:$0xff]
        %s274 = smul.u32 %s235, 16
        %s275 = scalar_lea.vmem %s200, %s274 [#allocation2]
        %v276 = vld [vmem:[%s275] sm:$0xff]
        %v277 = vld [vmem:[%s275 + $0x8] sm:$0xff]
        %v278 = vrot.slane %v238, 7
        %v279 = vrot.slane %v239, 7
        %v280 = vrot.slane %v242, 7
        %v281 = vrot.slane %v243, 7
        %v282 = vrot.slane %v244, 7
        %v283 = vrot.slane %v245, 7
        %v284 = vrot.slane %v246, 7
        %v285 = vrot.slane %v247, 7
        %v286 = vrot.slane %v248, 7
        %v287 = vrot.slane %v249, 7
        %v288 = vrot.slane %v250, 7
        %v289 = vrot.slane %v251, 7
        %v290 = vrot.slane %v252, 7
        %v291 = vrot.slane %v253, 7
        %v292 = vrot.slane %v254, 7
        %v293 = vrot.slane %v255, 7
        %v294 = vrot.slane %v256, 7
        %v295 = vrot.slane %v257, 7
        %v296 = vrot.slane %v258, 7
        %v297 = vrot.slane %v259, 7
        %v298 = vrot.slane %v260, 7
        %v299 = vrot.slane %v261, 7
        %v300 = vrot.slane %v262, 7
        %v301 = vrot.slane %v263, 7
        %v302 = vrot.slane %v264, 7
        %v303 = vrot.slane %v265, 7
        %v304 = vrot.slane %v266, 7
        %v305 = vrot.slane %v267, 7
        %v306 = vrot.slane %v268, 7
        %v307 = vrot.slane %v269, 7
        %v308 = vrot.slane %v270, 7
        %v309 = vrot.slane %v271, 7
        %v310 = vrot.slane %v272, 7
        %v311 = vrot.slane %v273, 7
        %v312 = vrot.slane %v276, 7
        %v313 = vrot.slane %v277, 7
        %v314 = vlaneseq
        %v315 = vshrl.u32 %v314, 7
        %vm316 = vcmp.lt.s32.totalorder %v315, 1
        %v317 = vsel %vm316, %v312, %v313
        %v318 = vsel %vm316, %v311, %v312
        %v319 = vsel %vm316, %v310, %v311
        %v320 = vsel %vm316, %v309, %v310
        %v321 = vsel %vm316, %v308, %v309
        %v322 = vsel %vm316, %v307, %v308
        %v323 = vsel %vm316, %v306, %v307
        %v324 = vsel %vm316, %v305, %v306
        %v325 = vsel %vm316, %v304, %v305
        %v326 = vsel %vm316, %v303, %v304
        %v327 = vsel %vm316, %v302, %v303
        %v328 = vsel %vm316, %v301, %v302
        %v329 = vsel %vm316, %v300, %v301
        %v330 = vsel %vm316, %v299, %v300
        %v331 = vsel %vm316, %v298, %v299
        %v332 = vsel %vm316, %v297, %v298
        %v333 = vsel %vm316, %v296, %v297
        %v334 = vsel %vm316, %v295, %v296
        %v335 = vsel %vm316, %v294, %v295
        %v336 = vsel %vm316, %v293, %v294
        %v337 = vsel %vm316, %v292, %v293
        %v338 = vsel %vm316, %v291, %v292
        %v339 = vsel %vm316, %v290, %v291
        %v340 = vsel %vm316, %v289, %v290
        %v341 = vsel %vm316, %v288, %v289
        %v342 = vsel %vm316, %v287, %v288
        %v343 = vsel %vm316, %v286, %v287
        %v344 = vsel %vm316, %v285, %v286
        %v345 = vsel %vm316, %v284, %v285
        %v346 = vsel %vm316, %v283, %v284
        %v347 = vsel %vm316, %v282, %v283
        %v348 = vsel %vm316, %v281, %v282
        %v349 = vsel %vm316, %v280, %v281
        %v350 = vsel %vm316, %v279, %v280
        %v351 = vsel %vm316, %v278, %v279
        %v352 = vsel %vm316, %v313, %v278
        %v353 = vrot.slane %v238, 1
        %v354 = vrot.slane %v239, 1
        %v355 = vrot.slane %v242, 1
        %v356 = vrot.slane %v243, 1
        %v357 = vrot.slane %v244, 1
        %v358 = vrot.slane %v245, 1
        %v359 = vrot.slane %v246, 1
        %v360 = vrot.slane %v247, 1
        %v361 = vrot.slane %v248, 1
        %v362 = vrot.slane %v249, 1
        %v363 = vrot.slane %v250, 1
        %v364 = vrot.slane %v251, 1
        %v365 = vrot.slane %v252, 1
        %v366 = vrot.slane %v253, 1
        %v367 = vrot.slane %v254, 1
        %v368 = vrot.slane %v255, 1
        %v369 = vrot.slane %v256, 1
        %v370 = vrot.slane %v257, 1
        %v371 = vrot.slane %v258, 1
        %v372 = vrot.slane %v259, 1
        %v373 = vrot.slane %v260, 1
        %v374 = vrot.slane %v261, 1
        %v375 = vrot.slane %v262, 1
        %v376 = vrot.slane %v263, 1
        %v377 = vrot.slane %v264, 1
        %v378 = vrot.slane %v265, 1
        %v379 = vrot.slane %v266, 1
        %v380 = vrot.slane %v267, 1
        %v381 = vrot.slane %v268, 1
        %v382 = vrot.slane %v269, 1
        %v383 = vrot.slane %v270, 1
        %v384 = vrot.slane %v271, 1
        %v385 = vrot.slane %v272, 1
        %v386 = vrot.slane %v273, 1
        %v387 = vrot.slane %v276, 1
        %v388 = vrot.slane %v277, 1
        %vm389 = vcmp.lt.s32.totalorder %v315, 7
        %v390 = vsel %vm389, %v387, %v388
        %v391 = vsel %vm389, %v386, %v387
        %v392 = vsel %vm389, %v385, %v386
        %v393 = vsel %vm389, %v384, %v385
        %v394 = vsel %vm389, %v383, %v384
        %v395 = vsel %vm389, %v382, %v383
        %v396 = vsel %vm389, %v381, %v382
        %v397 = vsel %vm389, %v380, %v381
        %v398 = vsel %vm389, %v379, %v380
        %v399 = vsel %vm389, %v378, %v379
        %v400 = vsel %vm389, %v377, %v378
        %v401 = vsel %vm389, %v376, %v377
        %v402 = vsel %vm389, %v375, %v376
        %v403 = vsel %vm389, %v374, %v375
        %v404 = vsel %vm389, %v373, %v374
        %v405 = vsel %vm389, %v372, %v373
        %v406 = vsel %vm389, %v371, %v372
        %v407 = vsel %vm389, %v370, %v371
        %v408 = vsel %vm389, %v369, %v370
        %v409 = vsel %vm389, %v368, %v369
        %v410 = vsel %vm389, %v367, %v368
        %v411 = vsel %vm389, %v366, %v367
        %v412 = vsel %vm389, %v365, %v366
        %v413 = vsel %vm389, %v364, %v365
        %v414 = vsel %vm389, %v363, %v364
        %v415 = vsel %vm389, %v362, %v363
        %v416 = vsel %vm389, %v361, %v362
        %v417 = vsel %vm389, %v360, %v361
        %v418 = vsel %vm389, %v359, %v360
        %v419 = vsel %vm389, %v358, %v359
        %v420 = vsel %vm389, %v357, %v358
        %v421 = vsel %vm389, %v356, %v357
        %v422 = vsel %vm389, %v355, %v356
        %v423 = vsel %vm389, %v354, %v355
        %v424 = vsel %vm389, %v353, %v354
        %v425 = vsel %vm389, %v388, %v353
        %v426 = vadd.s32 %v315, 8
        %v427 = vadd.s32 %v315, 16
        %v428 = vadd.s32 %v315, 24
        %v429 = vadd.s32 %v315, 32
        %v430 = vadd.s32 %v315, 40
        %v431 = vadd.s32 %v315, 48
        %v432 = vadd.s32 %v315, 56
        %v433 = vadd.s32 %v315, 64
        %v434 = vadd.s32 %v315, 72
        %v435 = vadd.s32 %v315, 80
        %v436 = vadd.s32 %v315, 88
        %v437 = vadd.s32 %v315, 96
        %v438 = vadd.s32 %v315, 104
        %v439 = vadd.s32 %v315, 112
        %v440 = vadd.s32 %v315, 120
        %v441 = vadd.s32 %v315, 128
        %v442 = vadd.s32 %v315, 136
        %v443 = vadd.s32 %v315, 144
        %v444 = vadd.s32 %v315, 152
        %v445 = vadd.s32 %v315, 160
        %v446 = vadd.s32 %v315, 168
        %v447 = vadd.s32 %v315, 176
        %v448 = vadd.s32 %v315, 184
        %v449 = vadd.s32 %v315, 192
        %v450 = vadd.s32 %v315, 200
        %v451 = vadd.s32 %v315, 208
        %v452 = vadd.s32 %v315, 216
        %v453 = vadd.s32 %v315, 224
        %v454 = vadd.s32 %v315, 232
        %v455 = vadd.s32 %v315, 240
        %v456 = vadd.s32 %v315, 248
        %v457 = vadd.s32 %v315, 256
        %v458 = vadd.s32 %v315, 264
        %v459 = vadd.s32 %v315, 272
        %v460 = vadd.s32 %v315, 280
        %vm461 = vcmp.lt.s32.totalorder %v315, 0
        %v462 = vsub.s32 0, %v315
        %v463 = vsel %vm461, %v462, %v315
        %v464 = vshrl.u32 %v463, 4
        %v465 = vand.u32 %v463, 15
        %v466 = vsub.s32 0, %v465
        %v467 = vsel %vm461, %v466, %v465
        %vm468 = vcmp.lt.s32.totalorder %v426, 0
        %v469 = vsub.s32 0, %v426
        %v470 = vsel %vm468, %v469, %v426
        %v471 = vshrl.u32 %v470, 4
        %v472 = vand.u32 %v470, 15
        %v473 = vsub.s32 0, %v472
        %v474 = vsel %vm468, %v473, %v472
        %vm475 = vcmp.lt.s32.totalorder %v427, 0
        %v476 = vsub.s32 0, %v427
        %v477 = vsel %vm475, %v476, %v427
        %v478 = vshrl.u32 %v477, 4
        %v479 = vand.u32 %v477, 15
        %v480 = vsub.s32 0, %v479
        %v481 = vsel %vm475, %v480, %v479
        %vm482 = vcmp.lt.s32.totalorder %v428, 0
        %v483 = vsub.s32 0, %v428
        %v484 = vsel %vm482, %v483, %v428
        %v485 = vshrl.u32 %v484, 4
        %v486 = vand.u32 %v484, 15
        %v487 = vsub.s32 0, %v486
        %v488 = vsel %vm482, %v487, %v486
        %vm489 = vcmp.lt.s32.totalorder %v429, 0
        %v490 = vsub.s32 0, %v429
        %v491 = vsel %vm489, %v490, %v429
        %v492 = vshrl.u32 %v491, 4
        %v493 = vand.u32 %v491, 15
        %v494 = vsub.s32 0, %v493
        %v495 = vsel %vm489, %v494, %v493
        %vm496 = vcmp.lt.s32.totalorder %v430, 0
        %v497 = vsub.s32 0, %v430
        %v498 = vsel %vm496, %v497, %v430
        %v499 = vshrl.u32 %v498, 4
        %v500 = vand.u32 %v498, 15
        %v501 = vsub.s32 0, %v500
        %v502 = vsel %vm496, %v501, %v500
        %vm503 = vcmp.lt.s32.totalorder %v431, 0
        %v504 = vsub.s32 0, %v431
        %v505 = vsel %vm503, %v504, %v431
        %v506 = vshrl.u32 %v505, 4
        %v507 = vand.u32 %v505, 15
        %v508 = vsub.s32 0, %v507
        %v509 = vsel %vm503, %v508, %v507
        %vm510 = vcmp.lt.s32.totalorder %v432, 0
        %v511 = vsub.s32 0, %v432
        %v512 = vsel %vm510, %v511, %v432
        %v513 = vshrl.u32 %v512, 4
        %v514 = vand.u32 %v512, 15
        %v515 = vsub.s32 0, %v514
        %v516 = vsel %vm510, %v515, %v514
        %vm517 = vcmp.lt.s32.totalorder %v433, 0
        %v518 = vsub.s32 0, %v433
        %v519 = vsel %vm517, %v518, %v433
        %v520 = vshrl.u32 %v519, 4
        %v521 = vand.u32 %v519, 15
        %v522 = vsub.s32 0, %v521
        %v523 = vsel %vm517, %v522, %v521
        %vm524 = vcmp.lt.s32.totalorder %v434, 0
        %v525 = vsub.s32 0, %v434
        %v526 = vsel %vm524, %v525, %v434
        %v527 = vshrl.u32 %v526, 4
        %v528 = vand.u32 %v526, 15
        %v529 = vsub.s32 0, %v528
        %v530 = vsel %vm524, %v529, %v528
        %vm531 = vcmp.lt.s32.totalorder %v435, 0
        %v532 = vsub.s32 0, %v435
        %v533 = vsel %vm531, %v532, %v435
        %v534 = vshrl.u32 %v533, 4
        %v535 = vand.u32 %v533, 15
        %v536 = vsub.s32 0, %v535
        %v537 = vsel %vm531, %v536, %v535
        %vm538 = vcmp.lt.s32.totalorder %v436, 0
        %v539 = vsub.s32 0, %v436
        %v540 = vsel %vm538, %v539, %v436
        %v541 = vshrl.u32 %v540, 4
        %v542 = vand.u32 %v540, 15
        %v543 = vsub.s32 0, %v542
        %v544 = vsel %vm538, %v543, %v542
        %vm545 = vcmp.lt.s32.totalorder %v437, 0
        %v546 = vsub.s32 0, %v437
        %v547 = vsel %vm545, %v546, %v437
        %v548 = vshrl.u32 %v547, 4
        %v549 = vand.u32 %v547, 15
        %v550 = vsub.s32 0, %v549
        %v551 = vsel %vm545, %v550, %v549
        %vm552 = vcmp.lt.s32.totalorder %v438, 0
        %v553 = vsub.s32 0, %v438
        %v554 = vsel %vm552, %v553, %v438
        %v555 = vshrl.u32 %v554, 4
        %v556 = vand.u32 %v554, 15
        %v557 = vsub.s32 0, %v556
        %v558 = vsel %vm552, %v557, %v556
        %vm559 = vcmp.lt.s32.totalorder %v439, 0
        %v560 = vsub.s32 0, %v439
        %v561 = vsel %vm559, %v560, %v439
        %v562 = vshrl.u32 %v561, 4
        %v563 = vand.u32 %v561, 15
        %v564 = vsub.s32 0, %v563
        %v565 = vsel %vm559, %v564, %v563
        %vm566 = vcmp.lt.s32.totalorder %v440, 0
        %v567 = vsub.s32 0, %v440
        %v568 = vsel %vm566, %v567, %v440
        %v569 = vshrl.u32 %v568, 4
        %v570 = vand.u32 %v568, 15
        %v571 = vsub.s32 0, %v570
        %v572 = vsel %vm566, %v571, %v570
        %vm573 = vcmp.lt.s32.totalorder %v441, 0
        %v574 = vsub.s32 0, %v441
        %v575 = vsel %vm573, %v574, %v441
        %v576 = vshrl.u32 %v575, 4
        %v577 = vand.u32 %v575, 15
        %v578 = vsub.s32 0, %v577
        %v579 = vsel %vm573, %v578, %v577
        %vm580 = vcmp.lt.s32.totalorder %v442, 0
        %v581 = vsub.s32 0, %v442
        %v582 = vsel %vm580, %v581, %v442
        %v583 = vshrl.u32 %v582, 4
        %v584 = vand.u32 %v582, 15
        %v585 = vsub.s32 0, %v584
        %v586 = vsel %vm580, %v585, %v584
        %vm587 = vcmp.lt.s32.totalorder %v443, 0
        %v588 = vsub.s32 0, %v443
        %v589 = vsel %vm587, %v588, %v443
        %v590 = vshrl.u32 %v589, 4
        %v591 = vand.u32 %v589, 15
        %v592 = vsub.s32 0, %v591
        %v593 = vsel %vm587, %v592, %v591
        %vm594 = vcmp.lt.s32.totalorder %v444, 0
        %v595 = vsub.s32 0, %v444
        %v596 = vsel %vm594, %v595, %v444
        %v597 = vshrl.u32 %v596, 4
        %v598 = vand.u32 %v596, 15
        %v599 = vsub.s32 0, %v598
        %v600 = vsel %vm594, %v599, %v598
        %vm601 = vcmp.lt.s32.totalorder %v445, 0
        %v602 = vsub.s32 0, %v445
        %v603 = vsel %vm601, %v602, %v445
        %v604 = vshrl.u32 %v603, 4
        %v605 = vand.u32 %v603, 15
        %v606 = vsub.s32 0, %v605
        %v607 = vsel %vm601, %v606, %v605
        %vm608 = vcmp.lt.s32.totalorder %v446, 0
        %v609 = vsub.s32 0, %v446
        %v610 = vsel %vm608, %v609, %v446
        %v611 = vshrl.u32 %v610, 4
        %v612 = vand.u32 %v610, 15
        %v613 = vsub.s32 0, %v612
        %v614 = vsel %vm608, %v613, %v612
        %vm615 = vcmp.lt.s32.totalorder %v447, 0
        %v616 = vsub.s32 0, %v447
        %v617 = vsel %vm615, %v616, %v447
        %v618 = vshrl.u32 %v617, 4
        %v619 = vand.u32 %v617, 15
        %v620 = vsub.s32 0, %v619
        %v621 = vsel %vm615, %v620, %v619
        %vm622 = vcmp.lt.s32.totalorder %v448, 0
        %v623 = vsub.s32 0, %v448
        %v624 = vsel %vm622, %v623, %v448
        %v625 = vshrl.u32 %v624, 4
        %v626 = vand.u32 %v624, 15
        %v627 = vsub.s32 0, %v626
        %v628 = vsel %vm622, %v627, %v626
        %vm629 = vcmp.lt.s32.totalorder %v449, 0
        %v630 = vsub.s32 0, %v449
        %v631 = vsel %vm629, %v630, %v449
        %v632 = vshrl.u32 %v631, 4
        %v633 = vand.u32 %v631, 15
        %v634 = vsub.s32 0, %v633
        %v635 = vsel %vm629, %v634, %v633
        %vm636 = vcmp.lt.s32.totalorder %v450, 0
        %v637 = vsub.s32 0, %v450
        %v638 = vsel %vm636, %v637, %v450
        %v639 = vshrl.u32 %v638, 4
        %v640 = vand.u32 %v638, 15
        %v641 = vsub.s32 0, %v640
        %v642 = vsel %vm636, %v641, %v640
        %vm643 = vcmp.lt.s32.totalorder %v451, 0
        %v644 = vsub.s32 0, %v451
        %v645 = vsel %vm643, %v644, %v451
        %v646 = vshrl.u32 %v645, 4
        %v647 = vand.u32 %v645, 15
        %v648 = vsub.s32 0, %v647
        %v649 = vsel %vm643, %v648, %v647
        %vm650 = vcmp.lt.s32.totalorder %v452, 0
        %v651 = vsub.s32 0, %v452
        %v652 = vsel %vm650, %v651, %v452
        %v653 = vshrl.u32 %v652, 4
        %v654 = vand.u32 %v652, 15
        %v655 = vsub.s32 0, %v654
        %v656 = vsel %vm650, %v655, %v654
        %vm657 = vcmp.lt.s32.totalorder %v453, 0
        %v658 = vsub.s32 0, %v453
        %v659 = vsel %vm657, %v658, %v453
        %v660 = vshrl.u32 %v659, 4
        %v661 = vand.u32 %v659, 15
        %v662 = vsub.s32 0, %v661
        %v663 = vsel %vm657, %v662, %v661
        %vm664 = vcmp.lt.s32.totalorder %v454, 0
        %v665 = vsub.s32 0, %v454
        %v666 = vsel %vm664, %v665, %v454
        %v667 = vshrl.u32 %v666, 4
        %v668 = vand.u32 %v666, 15
        %v669 = vsub.s32 0, %v668
        %v670 = vsel %vm664, %v669, %v668
        %vm671 = vcmp.lt.s32.totalorder %v455, 0
        %v672 = vsub.s32 0, %v455
        %v673 = vsel %vm671, %v672, %v455
        %v674 = vshrl.u32 %v673, 4
        %v675 = vand.u32 %v673, 15
        %v676 = vsub.s32 0, %v675
        %v677 = vsel %vm671, %v676, %v675
        %vm678 = vcmp.lt.s32.totalorder %v456, 0
        %v679 = vsub.s32 0, %v456
        %v680 = vsel %vm678, %v679, %v456
        %v681 = vshrl.u32 %v680, 4
        %v682 = vand.u32 %v680, 15
        %v683 = vsub.s32 0, %v682
        %v684 = vsel %vm678, %v683, %v682
        %vm685 = vcmp.lt.s32.totalorder %v457, 0
        %v686 = vsub.s32 0, %v457
        %v687 = vsel %vm685, %v686, %v457
        %v688 = vshrl.u32 %v687, 4
        %v689 = vand.u32 %v687, 15
        %v690 = vsub.s32 0, %v689
        %v691 = vsel %vm685, %v690, %v689
        %vm692 = vcmp.lt.s32.totalorder %v458, 0
        %v693 = vsub.s32 0, %v458
        %v694 = vsel %vm692, %v693, %v458
        %v695 = vshrl.u32 %v694, 4
        %v696 = vand.u32 %v694, 15
        %v697 = vsub.s32 0, %v696
        %v698 = vsel %vm692, %v697, %v696
        %vm699 = vcmp.lt.s32.totalorder %v459, 0
        %v700 = vsub.s32 0, %v459
        %v701 = vsel %vm699, %v700, %v459
        %v702 = vshrl.u32 %v701, 4
        %v703 = vand.u32 %v701, 15
        %v704 = vsub.s32 0, %v703
        %v705 = vsel %vm699, %v704, %v703
        %vm706 = vcmp.lt.s32.totalorder %v460, 0
        %v707 = vsub.s32 0, %v460
        %v708 = vsel %vm706, %v707, %v460
        %v709 = vshrl.u32 %v708, 4
        %v710 = vand.u32 %v708, 15
        %v711 = vsub.s32 0, %v710
        %v712 = vsel %vm706, %v711, %v710
        %vm713 = vcmp.ne.s32.totalorder %v467, 0
        %vm714 = vcmp.ne.s32.totalorder %v474, 0
        %vm715 = vcmp.ne.s32.totalorder %v481, 0
        %vm716 = vcmp.ne.s32.totalorder %v488, 0
        %vm717 = vcmp.ne.s32.totalorder %v495, 0
        %vm718 = vcmp.ne.s32.totalorder %v502, 0
        %vm719 = vcmp.ne.s32.totalorder %v509, 0
        %vm720 = vcmp.ne.s32.totalorder %v516, 0
        %vm721 = vcmp.ne.s32.totalorder %v523, 0
        %vm722 = vcmp.ne.s32.totalorder %v530, 0
        %vm723 = vcmp.ne.s32.totalorder %v537, 0
        %vm724 = vcmp.ne.s32.totalorder %v544, 0
        %vm725 = vcmp.ne.s32.totalorder %v551, 0
        %vm726 = vcmp.ne.s32.totalorder %v558, 0
        %vm727 = vcmp.ne.s32.totalorder %v565, 0
        %vm728 = vcmp.ne.s32.totalorder %v572, 0
        %vm729 = vcmp.ne.s32.totalorder %v579, 0
        %vm730 = vcmp.ne.s32.totalorder %v586, 0
        %vm731 = vcmp.ne.s32.totalorder %v593, 0
        %vm732 = vcmp.ne.s32.totalorder %v600, 0
        %vm733 = vcmp.ne.s32.totalorder %v607, 0
        %vm734 = vcmp.ne.s32.totalorder %v614, 0
        %vm735 = vcmp.ne.s32.totalorder %v621, 0
        %vm736 = vcmp.ne.s32.totalorder %v628, 0
        %vm737 = vcmp.ne.s32.totalorder %v635, 0
        %vm738 = vcmp.ne.s32.totalorder %v642, 0
        %vm739 = vcmp.ne.s32.totalorder %v649, 0
        %vm740 = vcmp.ne.s32.totalorder %v656, 0
        %vm741 = vcmp.ne.s32.totalorder %v663, 0
        %vm742 = vcmp.ne.s32.totalorder %v670, 0
        %vm743 = vcmp.ne.s32.totalorder %v677, 0
        %vm744 = vcmp.ne.s32.totalorder %v684, 0
        %vm745 = vcmp.ne.s32.totalorder %v691, 0
        %vm746 = vcmp.ne.s32.totalorder %v698, 0
        %vm747 = vcmp.ne.s32.totalorder %v705, 0
        %vm748 = vcmp.ne.s32.totalorder %v712, 0
        %vm749 = vcmp.lt.s32.totalorder %v467, 0
        %vm750 = vcmp.lt.s32.totalorder %v474, 0
        %vm751 = vcmp.lt.s32.totalorder %v481, 0
        %vm752 = vcmp.lt.s32.totalorder %v488, 0
        %vm753 = vcmp.lt.s32.totalorder %v495, 0
        %vm754 = vcmp.lt.s32.totalorder %v502, 0
        %vm755 = vcmp.lt.s32.totalorder %v509, 0
        %vm756 = vcmp.lt.s32.totalorder %v516, 0
        %vm757 = vcmp.lt.s32.totalorder %v523, 0
        %vm758 = vcmp.lt.s32.totalorder %v530, 0
        %vm759 = vcmp.lt.s32.totalorder %v537, 0
        %vm760 = vcmp.lt.s32.totalorder %v544, 0
        %vm761 = vcmp.lt.s32.totalorder %v551, 0
        %vm762 = vcmp.lt.s32.totalorder %v558, 0
        %vm763 = vcmp.lt.s32.totalorder %v565, 0
        %vm764 = vcmp.lt.s32.totalorder %v572, 0
        %vm765 = vcmp.lt.s32.totalorder %v579, 0
        %vm766 = vcmp.lt.s32.totalorder %v586, 0
        %vm767 = vcmp.lt.s32.totalorder %v593, 0
        %vm768 = vcmp.lt.s32.totalorder %v600, 0
        %vm769 = vcmp.lt.s32.totalorder %v607, 0
        %vm770 = vcmp.lt.s32.totalorder %v614, 0
        %vm771 = vcmp.lt.s32.totalorder %v621, 0
        %vm772 = vcmp.lt.s32.totalorder %v628, 0
        %vm773 = vcmp.lt.s32.totalorder %v635, 0
        %vm774 = vcmp.lt.s32.totalorder %v642, 0
        %vm775 = vcmp.lt.s32.totalorder %v649, 0
        %vm776 = vcmp.lt.s32.totalorder %v656, 0
        %vm777 = vcmp.lt.s32.totalorder %v663, 0
        %vm778 = vcmp.lt.s32.totalorder %v670, 0
        %vm779 = vcmp.lt.s32.totalorder %v677, 0
        %vm780 = vcmp.lt.s32.totalorder %v684, 0
        %vm781 = vcmp.lt.s32.totalorder %v691, 0
        %vm782 = vcmp.lt.s32.totalorder %v698, 0
        %vm783 = vcmp.lt.s32.totalorder %v705, 0
        %vm784 = vcmp.lt.s32.totalorder %v712, 0
        %vm785 = vmand %vm749, %vm713
        %vm786 = vmand %vm750, %vm714
        %vm787 = vmand %vm751, %vm715
        %vm788 = vmand %vm752, %vm716
        %vm789 = vmand %vm753, %vm717
        %vm790 = vmand %vm754, %vm718
        %vm791 = vmand %vm755, %vm719
        %vm792 = vmand %vm756, %vm720
        %vm793 = vmand %vm757, %vm721
        %vm794 = vmand %vm758, %vm722
        %vm795 = vmand %vm759, %vm723
        %vm796 = vmand %vm760, %vm724
        %vm797 = vmand %vm761, %vm725
        %vm798 = vmand %vm762, %vm726
        %vm799 = vmand %vm763, %vm727
        %vm800 = vmand %vm764, %vm728
        %vm801 = vmand %vm765, %vm729
        %vm802 = vmand %vm766, %vm730
        %vm803 = vmand %vm767, %vm731
        %vm804 = vmand %vm768, %vm732
        %vm805 = vmand %vm769, %vm733
        %vm806 = vmand %vm770, %vm734
        %vm807 = vmand %vm771, %vm735
        %vm808 = vmand %vm772, %vm736
        %vm809 = vmand %vm773, %vm737
        %vm810 = vmand %vm774, %vm738
        %vm811 = vmand %vm775, %vm739
        %vm812 = vmand %vm776, %vm740
        %vm813 = vmand %vm777, %vm741
        %vm814 = vmand %vm778, %vm742
        %vm815 = vmand %vm779, %vm743
        %vm816 = vmand %vm780, %vm744
        %vm817 = vmand %vm781, %vm745
        %vm818 = vmand %vm782, %vm746
        %vm819 = vmand %vm783, %vm747
        %vm820 = vmand %vm784, %vm748
        %v821 = vadd.s32 %v467, 16
        %v822 = vadd.s32 %v474, 16
        %v823 = vadd.s32 %v481, 16
        %v824 = vadd.s32 %v488, 16
        %v825 = vadd.s32 %v495, 16
        %v826 = vadd.s32 %v502, 16
        %v827 = vadd.s32 %v509, 16
        %v828 = vadd.s32 %v516, 16
        %v829 = vadd.s32 %v523, 16
        %v830 = vadd.s32 %v530, 16
        %v831 = vadd.s32 %v537, 16
        %v832 = vadd.s32 %v544, 16
        %v833 = vadd.s32 %v551, 16
        %v834 = vadd.s32 %v558, 16
        %v835 = vadd.s32 %v565, 16
        %v836 = vadd.s32 %v572, 16
        %v837 = vadd.s32 %v579, 16
        %v838 = vadd.s32 %v586, 16
        %v839 = vadd.s32 %v593, 16
        %v840 = vadd.s32 %v600, 16
        %v841 = vadd.s32 %v607, 16
        %v842 = vadd.s32 %v614, 16
        %v843 = vadd.s32 %v621, 16
        %v844 = vadd.s32 %v628, 16
        %v845 = vadd.s32 %v635, 16
        %v846 = vadd.s32 %v642, 16
        %v847 = vadd.s32 %v649, 16
        %v848 = vadd.s32 %v656, 16
        %v849 = vadd.s32 %v663, 16
        %v850 = vadd.s32 %v670, 16
        %v851 = vadd.s32 %v677, 16
        %v852 = vadd.s32 %v684, 16
        %v853 = vadd.s32 %v691, 16
        %v854 = vadd.s32 %v698, 16
        %v855 = vadd.s32 %v705, 16
        %v856 = vadd.s32 %v712, 16
        %v857 = vsel %vm785, %v821, %v467
        %v858 = vsel %vm786, %v822, %v474
        %v859 = vsel %vm787, %v823, %v481
        %v860 = vsel %vm788, %v824, %v488
        %v861 = vsel %vm789, %v825, %v495
        %v862 = vsel %vm790, %v826, %v502
        %v863 = vsel %vm791, %v827, %v509
        %v864 = vsel %vm792, %v828, %v516
        %v865 = vsel %vm793, %v829, %v523
        %v866 = vsel %vm794, %v830, %v530
        %v867 = vsel %vm795, %v831, %v537
        %v868 = vsel %vm796, %v832, %v544
        %v869 = vsel %vm797, %v833, %v551
        %v870 = vsel %vm798, %v834, %v558
        %v871 = vsel %vm799, %v835, %v565
        %v872 = vsel %vm800, %v836, %v572
        %v873 = vsel %vm801, %v837, %v579
        %v874 = vsel %vm802, %v838, %v586
        %v875 = vsel %vm803, %v839, %v593
        %v876 = vsel %vm804, %v840, %v600
        %v877 = vsel %vm805, %v841, %v607
        %v878 = vsel %vm806, %v842, %v614
        %v879 = vsel %vm807, %v843, %v621
        %v880 = vsel %vm808, %v844, %v628
        %v881 = vsel %vm809, %v845, %v635
        %v882 = vsel %vm810, %v846, %v642
        %v883 = vsel %vm811, %v847, %v649
        %v884 = vsel %vm812, %v848, %v656
        %v885 = vsel %vm813, %v849, %v663
        %v886 = vsel %vm814, %v850, %v670
        %v887 = vsel %vm815, %v851, %v677
        %v888 = vsel %vm816, %v852, %v684
        %v889 = vsel %vm817, %v853, %v691
        %v890 = vsel %vm818, %v854, %v698
        %v891 = vsel %vm819, %v855, %v705
        %v892 = vsel %vm820, %v856, %v712
        %vm893 = vcmp.eq.s32.totalorder %v857, 0
        %vm894 = vcmp.eq.s32.totalorder %v858, 0
        %vm895 = vcmp.eq.s32.totalorder %v859, 0
        %vm896 = vcmp.eq.s32.totalorder %v860, 0
        %vm897 = vcmp.eq.s32.totalorder %v861, 0
        %vm898 = vcmp.eq.s32.totalorder %v862, 0
        %vm899 = vcmp.eq.s32.totalorder %v863, 0
        %vm900 = vcmp.eq.s32.totalorder %v864, 0
        %vm901 = vcmp.eq.s32.totalorder %v865, 0
        %vm902 = vcmp.eq.s32.totalorder %v866, 0
        %vm903 = vcmp.eq.s32.totalorder %v867, 0
        %vm904 = vcmp.eq.s32.totalorder %v868, 0
        %vm905 = vcmp.eq.s32.totalorder %v869, 0
        %vm906 = vcmp.eq.s32.totalorder %v870, 0
        %vm907 = vcmp.eq.s32.totalorder %v871, 0
        %vm908 = vcmp.eq.s32.totalorder %v872, 0
        %vm909 = vcmp.eq.s32.totalorder %v873, 0
        %vm910 = vcmp.eq.s32.totalorder %v874, 0
        %vm911 = vcmp.eq.s32.totalorder %v875, 0
        %vm912 = vcmp.eq.s32.totalorder %v876, 0
        %vm913 = vcmp.eq.s32.totalorder %v877, 0
        %vm914 = vcmp.eq.s32.totalorder %v878, 0
        %vm915 = vcmp.eq.s32.totalorder %v879, 0
        %vm916 = vcmp.eq.s32.totalorder %v880, 0
        %vm917 = vcmp.eq.s32.totalorder %v881, 0
        %vm918 = vcmp.eq.s32.totalorder %v882, 0
        %vm919 = vcmp.eq.s32.totalorder %v883, 0
        %vm920 = vcmp.eq.s32.totalorder %v884, 0
        %vm921 = vcmp.eq.s32.totalorder %v885, 0
        %vm922 = vcmp.eq.s32.totalorder %v886, 0
        %vm923 = vcmp.eq.s32.totalorder %v887, 0
        %vm924 = vcmp.eq.s32.totalorder %v888, 0
        %vm925 = vcmp.eq.s32.totalorder %v889, 0
        %vm926 = vcmp.eq.s32.totalorder %v890, 0
        %vm927 = vcmp.eq.s32.totalorder %v891, 0
        %vm928 = vcmp.eq.s32.totalorder %v892, 0
        %v929 = vsel %vm893, 1, 0
        %v930 = vsel %vm894, 1, 0
        %v931 = vsel %vm895, 1, 0
        %v932 = vsel %vm896, 1, 0
        %v933 = vsel %vm897, 1, 0
        %v934 = vsel %vm898, 1, 0
        %v935 = vsel %vm899, 1, 0
        %v936 = vsel %vm900, 1, 0
        %v937 = vsel %vm901, 1, 0
        %v938 = vsel %vm902, 1, 0
        %v939 = vsel %vm903, 1, 0
        %v940 = vsel %vm904, 1, 0
        %v941 = vsel %vm905, 1, 0
        %v942 = vsel %vm906, 1, 0
        %v943 = vsel %vm907, 1, 0
        %v944 = vsel %vm908, 1, 0
        %v945 = vsel %vm909, 1, 0
        %v946 = vsel %vm910, 1, 0
        %v947 = vsel %vm911, 1, 0
        %v948 = vsel %vm912, 1, 0
        %v949 = vsel %vm913, 1, 0
        %v950 = vsel %vm914, 1, 0
        %v951 = vsel %vm915, 1, 0
        %v952 = vsel %vm916, 1, 0
        %v953 = vsel %vm917, 1, 0
        %v954 = vsel %vm918, 1, 0
        %v955 = vsel %vm919, 1, 0
        %v956 = vsel %vm920, 1, 0
        %v957 = vsel %vm921, 1, 0
        %v958 = vsel %vm922, 1, 0
        %v959 = vsel %vm923, 1, 0
        %v960 = vsel %vm924, 1, 0
        %v961 = vsel %vm925, 1, 0
        %v962 = vsel %vm926, 1, 0
        %v963 = vsel %vm927, 1, 0
        %v964 = vsel %vm928, 1, 0
        %vm965 = vcmp.eq.s32.totalorder %v929, 1
        %vm966 = vcmp.eq.s32.totalorder %v930, 1
        %vm967 = vcmp.eq.s32.totalorder %v931, 1
        %vm968 = vcmp.eq.s32.totalorder %v932, 1
        %vm969 = vcmp.eq.s32.totalorder %v933, 1
        %vm970 = vcmp.eq.s32.totalorder %v934, 1
        %vm971 = vcmp.eq.s32.totalorder %v935, 1
        %vm972 = vcmp.eq.s32.totalorder %v936, 1
        %vm973 = vcmp.eq.s32.totalorder %v937, 1
        %vm974 = vcmp.eq.s32.totalorder %v938, 1
        %vm975 = vcmp.eq.s32.totalorder %v939, 1
        %vm976 = vcmp.eq.s32.totalorder %v940, 1
        %vm977 = vcmp.eq.s32.totalorder %v941, 1
        %vm978 = vcmp.eq.s32.totalorder %v942, 1
        %vm979 = vcmp.eq.s32.totalorder %v943, 1
        %vm980 = vcmp.eq.s32.totalorder %v944, 1
        %vm981 = vcmp.eq.s32.totalorder %v945, 1
        %vm982 = vcmp.eq.s32.totalorder %v946, 1
        %vm983 = vcmp.eq.s32.totalorder %v947, 1
        %vm984 = vcmp.eq.s32.totalorder %v948, 1
        %vm985 = vcmp.eq.s32.totalorder %v949, 1
        %vm986 = vcmp.eq.s32.totalorder %v950, 1
        %vm987 = vcmp.eq.s32.totalorder %v951, 1
        %vm988 = vcmp.eq.s32.totalorder %v952, 1
        %vm989 = vcmp.eq.s32.totalorder %v953, 1
        %vm990 = vcmp.eq.s32.totalorder %v954, 1
        %vm991 = vcmp.eq.s32.totalorder %v955, 1
        %vm992 = vcmp.eq.s32.totalorder %v956, 1
        %vm993 = vcmp.eq.s32.totalorder %v957, 1
        %vm994 = vcmp.eq.s32.totalorder %v958, 1
        %vm995 = vcmp.eq.s32.totalorder %v959, 1
        %vm996 = vcmp.eq.s32.totalorder %v960, 1
        %vm997 = vcmp.eq.s32.totalorder %v961, 1
        %vm998 = vcmp.eq.s32.totalorder %v962, 1
        %vm999 = vcmp.eq.s32.totalorder %v963, 1
        %vm1000 = vcmp.eq.s32.totalorder %v964, 1
        %v1001 = vsel %vm965, %v424, %v352
        %v1002 = vsel %vm966, %v423, %v351
        %v1003 = vsel %vm967, %v422, %v350
        %v1004 = vsel %vm968, %v421, %v349
        %v1005 = vsel %vm969, %v420, %v348
        %v1006 = vsel %vm970, %v419, %v347
        %v1007 = vsel %vm971, %v418, %v346
        %v1008 = vsel %vm972, %v417, %v345
        %v1009 = vsel %vm973, %v416, %v344
        %v1010 = vsel %vm974, %v415, %v343
        %v1011 = vsel %vm975, %v414, %v342
        %v1012 = vsel %vm976, %v413, %v341
        %v1013 = vsel %vm977, %v412, %v340
        %v1014 = vsel %vm978, %v411, %v339
        %v1015 = vsel %vm979, %v410, %v338
        %v1016 = vsel %vm980, %v409, %v337
        %v1017 = vsel %vm981, %v408, %v336
        %v1018 = vsel %vm982, %v407, %v335
        %v1019 = vsel %vm983, %v406, %v334
        %v1020 = vsel %vm984, %v405, %v333
        %v1021 = vsel %vm985, %v404, %v332
        %v1022 = vsel %vm986, %v403, %v331
        %v1023 = vsel %vm987, %v402, %v330
        %v1024 = vsel %vm988, %v401, %v329
        %v1025 = vsel %vm989, %v400, %v328
        %v1026 = vsel %vm990, %v399, %v327
        %v1027 = vsel %vm991, %v398, %v326
        %v1028 = vsel %vm992, %v397, %v325
        %v1029 = vsel %vm993, %v396, %v324
        %v1030 = vsel %vm994, %v395, %v323
        %v1031 = vsel %vm995, %v394, %v322
        %v1032 = vsel %vm996, %v393, %v321
        %v1033 = vsel %vm997, %v392, %v320
        %v1034 = vsel %vm998, %v391, %v319
        %v1035 = vsel %vm999, %v390, %v318
        %v1036 = vsel %vm1000, %v425, %v317
        %vm1037 = vcmp.eq.s32.totalorder %v857, 15
        %vm1038 = vcmp.eq.s32.totalorder %v858, 15
        %vm1039 = vcmp.eq.s32.totalorder %v859, 15
        %vm1040 = vcmp.eq.s32.totalorder %v860, 15
        %vm1041 = vcmp.eq.s32.totalorder %v861, 15
        %vm1042 = vcmp.eq.s32.totalorder %v862, 15
        %vm1043 = vcmp.eq.s32.totalorder %v863, 15
        %vm1044 = vcmp.eq.s32.totalorder %v864, 15
        %vm1045 = vcmp.eq.s32.totalorder %v865, 15
        %vm1046 = vcmp.eq.s32.totalorder %v866, 15
        %vm1047 = vcmp.eq.s32.totalorder %v867, 15
        %vm1048 = vcmp.eq.s32.totalorder %v868, 15
        %vm1049 = vcmp.eq.s32.totalorder %v869, 15
        %vm1050 = vcmp.eq.s32.totalorder %v870, 15
        %vm1051 = vcmp.eq.s32.totalorder %v871, 15
        %vm1052 = vcmp.eq.s32.totalorder %v872, 15
        %vm1053 = vcmp.eq.s32.totalorder %v873, 15
        %vm1054 = vcmp.eq.s32.totalorder %v874, 15
        %vm1055 = vcmp.eq.s32.totalorder %v875, 15
        %vm1056 = vcmp.eq.s32.totalorder %v876, 15
        %vm1057 = vcmp.eq.s32.totalorder %v877, 15
        %vm1058 = vcmp.eq.s32.totalorder %v878, 15
        %vm1059 = vcmp.eq.s32.totalorder %v879, 15
        %vm1060 = vcmp.eq.s32.totalorder %v880, 15
        %vm1061 = vcmp.eq.s32.totalorder %v881, 15
        %vm1062 = vcmp.eq.s32.totalorder %v882, 15
        %vm1063 = vcmp.eq.s32.totalorder %v883, 15
        %vm1064 = vcmp.eq.s32.totalorder %v884, 15
        %vm1065 = vcmp.eq.s32.totalorder %v885, 15
        %vm1066 = vcmp.eq.s32.totalorder %v886, 15
        %vm1067 = vcmp.eq.s32.totalorder %v887, 15
        %vm1068 = vcmp.eq.s32.totalorder %v888, 15
        %vm1069 = vcmp.eq.s32.totalorder %v889, 15
        %vm1070 = vcmp.eq.s32.totalorder %v890, 15
        %vm1071 = vcmp.eq.s32.totalorder %v891, 15
        %vm1072 = vcmp.eq.s32.totalorder %v892, 15
        %v1073 = vsel %vm1037, 1, 0
        %v1074 = vsel %vm1038, 1, 0
        %v1075 = vsel %vm1039, 1, 0
        %v1076 = vsel %vm1040, 1, 0
        %v1077 = vsel %vm1041, 1, 0
        %v1078 = vsel %vm1042, 1, 0
        %v1079 = vsel %vm1043, 1, 0
        %v1080 = vsel %vm1044, 1, 0
        %v1081 = vsel %vm1045, 1, 0
        %v1082 = vsel %vm1046, 1, 0
        %v1083 = vsel %vm1047, 1, 0
        %v1084 = vsel %vm1048, 1, 0
        %v1085 = vsel %vm1049, 1, 0
        %v1086 = vsel %vm1050, 1, 0
        %v1087 = vsel %vm1051, 1, 0
        %v1088 = vsel %vm1052, 1, 0
        %v1089 = vsel %vm1053, 1, 0
        %v1090 = vsel %vm1054, 1, 0
        %v1091 = vsel %vm1055, 1, 0
        %v1092 = vsel %vm1056, 1, 0
        %v1093 = vsel %vm1057, 1, 0
        %v1094 = vsel %vm1058, 1, 0
        %v1095 = vsel %vm1059, 1, 0
        %v1096 = vsel %vm1060, 1, 0
        %v1097 = vsel %vm1061, 1, 0
        %v1098 = vsel %vm1062, 1, 0
        %v1099 = vsel %vm1063, 1, 0
        %v1100 = vsel %vm1064, 1, 0
        %v1101 = vsel %vm1065, 1, 0
        %v1102 = vsel %vm1066, 1, 0
        %v1103 = vsel %vm1067, 1, 0
        %v1104 = vsel %vm1068, 1, 0
        %v1105 = vsel %vm1069, 1, 0
        %v1106 = vsel %vm1070, 1, 0
        %v1107 = vsel %vm1071, 1, 0
        %v1108 = vsel %vm1072, 1, 0
        %vm1109 = vcmp.eq.s32.totalorder %v1073, 1
        %vm1110 = vcmp.eq.s32.totalorder %v1074, 1
        %vm1111 = vcmp.eq.s32.totalorder %v1075, 1
        %vm1112 = vcmp.eq.s32.totalorder %v1076, 1
        %vm1113 = vcmp.eq.s32.totalorder %v1077, 1
        %vm1114 = vcmp.eq.s32.totalorder %v1078, 1
        %vm1115 = vcmp.eq.s32.totalorder %v1079, 1
        %vm1116 = vcmp.eq.s32.totalorder %v1080, 1
        %vm1117 = vcmp.eq.s32.totalorder %v1081, 1
        %vm1118 = vcmp.eq.s32.totalorder %v1082, 1
        %vm1119 = vcmp.eq.s32.totalorder %v1083, 1
        %vm1120 = vcmp.eq.s32.totalorder %v1084, 1
        %vm1121 = vcmp.eq.s32.totalorder %v1085, 1
        %vm1122 = vcmp.eq.s32.totalorder %v1086, 1
        %vm1123 = vcmp.eq.s32.totalorder %v1087, 1
        %vm1124 = vcmp.eq.s32.totalorder %v1088, 1
        %vm1125 = vcmp.eq.s32.totalorder %v1089, 1
        %vm1126 = vcmp.eq.s32.totalorder %v1090, 1
        %vm1127 = vcmp.eq.s32.totalorder %v1091, 1
        %vm1128 = vcmp.eq.s32.totalorder %v1092, 1
        %vm1129 = vcmp.eq.s32.totalorder %v1093, 1
        %vm1130 = vcmp.eq.s32.totalorder %v1094, 1
        %vm1131 = vcmp.eq.s32.totalorder %v1095, 1
        %vm1132 = vcmp.eq.s32.totalorder %v1096, 1
        %vm1133 = vcmp.eq.s32.totalorder %v1097, 1
        %vm1134 = vcmp.eq.s32.totalorder %v1098, 1
        %vm1135 = vcmp.eq.s32.totalorder %v1099, 1
        %vm1136 = vcmp.eq.s32.totalorder %v1100, 1
        %vm1137 = vcmp.eq.s32.totalorder %v1101, 1
        %vm1138 = vcmp.eq.s32.totalorder %v1102, 1
        %vm1139 = vcmp.eq.s32.totalorder %v1103, 1
        %vm1140 = vcmp.eq.s32.totalorder %v1104, 1
        %vm1141 = vcmp.eq.s32.totalorder %v1105, 1
        %vm1142 = vcmp.eq.s32.totalorder %v1106, 1
        %vm1143 = vcmp.eq.s32.totalorder %v1107, 1
        %vm1144 = vcmp.eq.s32.totalorder %v1108, 1
        %v1145 = vsel %vm1109, %v352, %v424
        %v1146 = vsel %vm1110, %v351, %v423
        %v1147 = vsel %vm1111, %v350, %v422
        %v1148 = vsel %vm1112, %v349, %v421
        %v1149 = vsel %vm1113, %v348, %v420
        %v1150 = vsel %vm1114, %v347, %v419
        %v1151 = vsel %vm1115, %v346, %v418
        %v1152 = vsel %vm1116, %v345, %v417
        %v1153 = vsel %vm1117, %v344, %v416
        %v1154 = vsel %vm1118, %v343, %v415
        %v1155 = vsel %vm1119, %v342, %v414
        %v1156 = vsel %vm1120, %v341, %v413
        %v1157 = vsel %vm1121, %v340, %v412
        %v1158 = vsel %vm1122, %v339, %v411
        %v1159 = vsel %vm1123, %v338, %v410
        %v1160 = vsel %vm1124, %v337, %v409
        %v1161 = vsel %vm1125, %v336, %v408
        %v1162 = vsel %vm1126, %v335, %v407
        %v1163 = vsel %vm1127, %v334, %v406
        %v1164 = vsel %vm1128, %v333, %v405
        %v1165 = vsel %vm1129, %v332, %v404
        %v1166 = vsel %vm1130, %v331, %v403
        %v1167 = vsel %vm1131, %v330, %v402
        %v1168 = vsel %vm1132, %v329, %v401
        %v1169 = vsel %vm1133, %v328, %v400
        %v1170 = vsel %vm1134, %v327, %v399
        %v1171 = vsel %vm1135, %v326, %v398
        %v1172 = vsel %vm1136, %v325, %v397
        %v1173 = vsel %vm1137, %v324, %v396
        %v1174 = vsel %vm1138, %v323, %v395
        %v1175 = vsel %vm1139, %v322, %v394
        %v1176 = vsel %vm1140, %v321, %v393
        %v1177 = vsel %vm1141, %v320, %v392
        %v1178 = vsel %vm1142, %v319, %v391
        %v1179 = vsel %vm1143, %v318, %v390
        %v1180 = vsel %vm1144, %v317, %v425
        %v1181 = vpack.c.bf16 %v1002, %v1001
        %v1182 = vpack.c.bf16 %v1004, %v1003
        %v1183 = vpack.c.bf16 %v1006, %v1005
        %v1184 = vpack.c.bf16 %v1008, %v1007
        %v1185 = vpack.c.bf16 %v1010, %v1009
        %v1186 = vpack.c.bf16 %v1012, %v1011
        %v1187 = vpack.c.bf16 %v1014, %v1013
        %v1188 = vpack.c.bf16 %v1016, %v1015
        %v1189 = vpack.c.bf16 %v1018, %v1017
        %v1190 = vpack.c.bf16 %v1020, %v1019
        %v1191 = vpack.c.bf16 %v1022, %v1021
        %v1192 = vpack.c.bf16 %v1024, %v1023
        %v1193 = vpack.c.bf16 %v1026, %v1025
        %v1194 = vpack.c.bf16 %v1028, %v1027
        %v1195 = vpack.c.bf16 %v1030, %v1029
        %v1196 = vpack.c.bf16 %v1032, %v1031
        %v1197 = vpack.c.bf16 %v1034, %v1033
        %v1198 = vpack.c.bf16 %v1036, %v1035
        %v1199 = vpack.c.bf16 %v239, %v238
        %v1200 = vpack.c.bf16 %v243, %v242
        %v1201 = vpack.c.bf16 %v245, %v244
        %v1202 = vpack.c.bf16 %v247, %v246
        %v1203 = vpack.c.bf16 %v249, %v248
        %v1204 = vpack.c.bf16 %v251, %v250
        %v1205 = vpack.c.bf16 %v253, %v252
        %v1206 = vpack.c.bf16 %v255, %v254
        %v1207 = vpack.c.bf16 %v257, %v256
        %v1208 = vpack.c.bf16 %v259, %v258
        %v1209 = vpack.c.bf16 %v261, %v260
        %v1210 = vpack.c.bf16 %v263, %v262
        %v1211 = vpack.c.bf16 %v265, %v264
        %v1212 = vpack.c.bf16 %v267, %v266
        %v1213 = vpack.c.bf16 %v269, %v268
        %v1214 = vpack.c.bf16 %v271, %v270
        %v1215 = vpack.c.bf16 %v273, %v272
        %v1216 = vpack.c.bf16 %v277, %v276
        %v1217 = vpack.c.bf16 %v1146, %v1145
        %v1218 = vpack.c.bf16 %v1148, %v1147
        %v1219 = vpack.c.bf16 %v1150, %v1149
        %v1220 = vpack.c.bf16 %v1152, %v1151
        %v1221 = vpack.c.bf16 %v1154, %v1153
        %v1222 = vpack.c.bf16 %v1156, %v1155
        %v1223 = vpack.c.bf16 %v1158, %v1157
        %v1224 = vpack.c.bf16 %v1160, %v1159
        %v1225 = vpack.c.bf16 %v1162, %v1161
        %v1226 = vpack.c.bf16 %v1164, %v1163
        %v1227 = vpack.c.bf16 %v1166, %v1165
        %v1228 = vpack.c.bf16 %v1168, %v1167
        %v1229 = vpack.c.bf16 %v1170, %v1169
        %v1230 = vpack.c.bf16 %v1172, %v1171
        %v1231 = vpack.c.bf16 %v1174, %v1173
        %v1232 = vpack.c.bf16 %v1176, %v1175
        %v1233 = vpack.c.bf16 %v1178, %v1177
        %v1234 = vpack.c.bf16 %v1180, %v1179
        %v1235 = vld [vmem:[#allocation5] sm:$0xf]
        %v1236 = vld [vmem:[#allocation5 + $0x4] sm:$0xf]
        %v1237 = vld [vmem:[#allocation5 + $0x8] sm:$0xf]
        %v1238 = vld [vmem:[#allocation5 + $0xc] sm:$0xf]
        %v1239 = vld [vmem:[#allocation5 + $0x10] sm:$0xf]
        %v1240 = vld [vmem:[#allocation5 + $0x14] sm:$0xf]
        %v1241 = vld [vmem:[#allocation5 + $0x18] sm:$0xf]
        %v1242 = vld [vmem:[#allocation5 + $0x1c] sm:$0xf]
        %v1243 = vld [vmem:[#allocation5 + $0x20] sm:$0xf]
        %v1244 = vld [vmem:[#allocation5 + $0x24] sm:$0xf]
        %v1245 = vld [vmem:[#allocation5 + $0x28] sm:$0xf]
        %v1246 = vld [vmem:[#allocation5 + $0x2c] sm:$0xf]
        %v1247 = vld [vmem:[#allocation5 + $0x30] sm:$0xf]
        %v1248 = vld [vmem:[#allocation5 + $0x34] sm:$0xf]
        %v1249 = vld [vmem:[#allocation5 + $0x38] sm:$0xf]
        %v1250 = vld [vmem:[#allocation5 + $0x3c] sm:$0xf]
        %v1251 = vld [vmem:[#allocation5 + $0x40] sm:$0xf]
        %v1252 = vld [vmem:[#allocation5 + $0x44] sm:$0xf]
        %v1253 = vld [vmem:[#allocation5 + $0x48] sm:$0xf]
        %v1254 = vld [vmem:[#allocation5 + $0x4c] sm:$0xf]
        %v1255 = vld [vmem:[#allocation5 + $0x50] sm:$0xf]
        %v1256 = vld [vmem:[#allocation5 + $0x54] sm:$0xf]
        %v1257 = vld [vmem:[#allocation5 + $0x58] sm:$0xf]
        %v1258 = vld [vmem:[#allocation5 + $0x5c] sm:$0xf]
        %v1259 = vld [vmem:[#allocation5 + $0x60] sm:$0xf]
        %v1260 = vld [vmem:[#allocation5 + $0x64] sm:$0xf]
        %v1261 = vld [vmem:[#allocation5 + $0x68] sm:$0xf]
        %v1262 = vld [vmem:[#allocation5 + $0x6c] sm:$0xf]
        %v1263 = vld [vmem:[#allocation5 + $0x70] sm:$0xf]
        %v1264 = vld [vmem:[#allocation5 + $0x74] sm:$0xf]
        %v1265 = vld [vmem:[#allocation5 + $0x78] sm:$0xf]
        %v1266 = vld [vmem:[#allocation5 + $0x7c] sm:$0xf]
        %v1267 = vld [vmem:[#allocation5 + $0x80] sm:$0xf]
        %v1268 = vld [vmem:[#allocation5 + $0x84] sm:$0xf]
        %v1269 = vld [vmem:[#allocation5 + $0x88] sm:$0xf]
        %v1270 = vld [vmem:[#allocation5 + $0x8c] sm:$0xf]
        %v1271 = vld [vmem:[#allocation5 + $0x90] sm:$0xf]
        %v1272 = vld [vmem:[#allocation5 + $0x94] sm:$0xf]
        %v1273 = vld [vmem:[#allocation5 + $0x98] sm:$0xf]
        %v1274 = vld [vmem:[#allocation5 + $0x9c] sm:$0xf]
        %v1275 = vld [vmem:[#allocation5 + $0xa0] sm:$0xf]
        %v1276 = vld [vmem:[#allocation5 + $0xa4] sm:$0xf]
        %v1277 = vld [vmem:[#allocation5 + $0xa8] sm:$0xf]
        %v1278 = vld [vmem:[#allocation5 + $0xac] sm:$0xf]
        %v1279 = vld [vmem:[#allocation5 + $0xb0] sm:$0xf]
        %v1280 = vld [vmem:[#allocation5 + $0xb4] sm:$0xf]
        %v1281 = vld [vmem:[#allocation5 + $0xb8] sm:$0xf]
        %v1282 = vld [vmem:[#allocation5 + $0xbc] sm:$0xf]
        %v1283 = vld [vmem:[#allocation5 + $0xc0] sm:$0xf]
        %v1284 = vld [vmem:[#allocation5 + $0xc4] sm:$0xf]
        %v1285 = vld [vmem:[#allocation5 + $0xc8] sm:$0xf]
        %v1286 = vld [vmem:[#allocation5 + $0xcc] sm:$0xf]
        %v1287 = vld [vmem:[#allocation5 + $0xd0] sm:$0xf]
        %v1288 = vld [vmem:[#allocation5 + $0xd4] sm:$0xf]
        %v1289 = vld [vmem:[#allocation5 + $0xd8] sm:$0xf]
        %v1290 = vld [vmem:[#allocation5 + $0xdc] sm:$0xf]
        %v1291 = vld [vmem:[#allocation5 + $0xe0] sm:$0xf]
        %v1292 = vld [vmem:[#allocation5 + $0xe4] sm:$0xf]
        %v1293 = vld [vmem:[#allocation5 + $0xe8] sm:$0xf]
        %v1294 = vld [vmem:[#allocation5 + $0xec] sm:$0xf]
        %v1295 = vld [vmem:[#allocation5 + $0xf0] sm:$0xf]
        %v1296 = vld [vmem:[#allocation5 + $0xf4] sm:$0xf]
        %v1297 = vld [vmem:[#allocation5 + $0xf8] sm:$0xf]
        %v1298 = vld [vmem:[#allocation5 + $0xfc] sm:$0xf]
        %v1299 = vld [vmem:[#allocation5 + $0x100] sm:$0xf]
        %v1300 = vld [vmem:[#allocation5 + $0x104] sm:$0xf]
        %v1301 = vld [vmem:[#allocation5 + $0x108] sm:$0xf]
        %v1302 = vld [vmem:[#allocation5 + $0x10c] sm:$0xf]
        %v1303 = vld [vmem:[#allocation5 + $0x110] sm:$0xf]
        %v1304 = vld [vmem:[#allocation5 + $0x114] sm:$0xf]
        %v1305 = vld [vmem:[#allocation5 + $0x118] sm:$0xf]
        %v1306 = vld [vmem:[#allocation5 + $0x11c] sm:$0xf]
        %v1307 = vld [vmem:[#allocation5 + $0x120] sm:$0xf]
        %v1308 = vld [vmem:[#allocation5 + $0x124] sm:$0xf]
        %v1309 = vld [vmem:[#allocation5 + $0x128] sm:$0xf]
        %v1310 = vld [vmem:[#allocation5 + $0x12c] sm:$0xf]
        %v1311 = vld [vmem:[#allocation5 + $0x130] sm:$0xf]
        %v1312 = vld [vmem:[#allocation5 + $0x134] sm:$0xf]
        %v1313 = vld [vmem:[#allocation5 + $0x138] sm:$0xf]
        %v1314 = vld [vmem:[#allocation5 + $0x13c] sm:$0xf]
        %v1315 = vld [vmem:[#allocation5 + $0x140] sm:$0xf]
        %v1316 = vld [vmem:[#allocation5 + $0x144] sm:$0xf]
        %v1317 = vld [vmem:[#allocation5 + $0x148] sm:$0xf]
        %v1318 = vld [vmem:[#allocation5 + $0x14c] sm:$0xf]
        %v1319 = vld [vmem:[#allocation5 + $0x150] sm:$0xf]
        %v1320 = vld [vmem:[#allocation5 + $0x154] sm:$0xf]
        %v1321 = vld [vmem:[#allocation5 + $0x158] sm:$0xf]
        %v1322 = vld [vmem:[#allocation5 + $0x15c] sm:$0xf]
        %v1323 = vld [vmem:[#allocation5 + $0x160] sm:$0xf]
        %v1324 = vld [vmem:[#allocation5 + $0x164] sm:$0xf]
        %v1325 = vld [vmem:[#allocation5 + $0x168] sm:$0xf]
        %v1326 = vld [vmem:[#allocation5 + $0x16c] sm:$0xf]
        %v1327 = vld [vmem:[#allocation5 + $0x170] sm:$0xf]
        %v1328 = vld [vmem:[#allocation5 + $0x174] sm:$0xf]
        %v1329 = vld [vmem:[#allocation5 + $0x178] sm:$0xf]
        %v1330 = vld [vmem:[#allocation5 + $0x17c] sm:$0xf]
        %v1331 = vld [vmem:[#allocation5 + $0x180] sm:$0xf]
        %v1332 = vld [vmem:[#allocation5 + $0x184] sm:$0xf]
        %v1333 = vld [vmem:[#allocation5 + $0x188] sm:$0xf]
        %v1334 = vld [vmem:[#allocation5 + $0x18c] sm:$0xf]
        %v1335 = vld [vmem:[#allocation5 + $0x190] sm:$0xf]
        %v1336 = vld [vmem:[#allocation5 + $0x194] sm:$0xf]
        %v1337 = vld [vmem:[#allocation5 + $0x198] sm:$0xf]
        %v1338 = vld [vmem:[#allocation5 + $0x19c] sm:$0xf]
        %v1339 = vld [vmem:[#allocation5 + $0x1a0] sm:$0xf]
        %v1340 = vld [vmem:[#allocation5 + $0x1a4] sm:$0xf]
        %v1341 = vld [vmem:[#allocation5 + $0x1a8] sm:$0xf]
        %v1342 = vld [vmem:[#allocation5 + $0x1ac] sm:$0xf]
        %v1343 = vld [vmem:[#allocation5 + $0x1b0] sm:$0xf]
        %v1344 = vld [vmem:[#allocation5 + $0x1b4] sm:$0xf]
        %v1345 = vld [vmem:[#allocation5 + $0x1b8] sm:$0xf]
        %v1346 = vld [vmem:[#allocation5 + $0x1bc] sm:$0xf]
        %v1347 = vld [vmem:[#allocation5 + $0x1c0] sm:$0xf]
        %v1348 = vld [vmem:[#allocation5 + $0x1c4] sm:$0xf]
        %v1349 = vld [vmem:[#allocation5 + $0x1c8] sm:$0xf]
        %v1350 = vld [vmem:[#allocation5 + $0x1cc] sm:$0xf]
        %v1351 = vld [vmem:[#allocation5 + $0x1d0] sm:$0xf]
        %v1352 = vld [vmem:[#allocation5 + $0x1d4] sm:$0xf]
        %v1353 = vld [vmem:[#allocation5 + $0x1d8] sm:$0xf]
        %v1354 = vld [vmem:[#allocation5 + $0x1dc] sm:$0xf]
        %v1355 = vld [vmem:[#allocation5 + $0x1e0] sm:$0xf]
        %v1356 = vld [vmem:[#allocation5 + $0x1e4] sm:$0xf]
        %v1357 = vld [vmem:[#allocation5 + $0x1e8] sm:$0xf]
        %v1358 = vld [vmem:[#allocation5 + $0x1ec] sm:$0xf]
        %v1359 = vld [vmem:[#allocation5 + $0x1f0] sm:$0xf]
        %v1360 = vld [vmem:[#allocation5 + $0x1f4] sm:$0xf]
        %v1361 = vld [vmem:[#allocation5 + $0x1f8] sm:$0xf]
        %v1362 = vld [vmem:[#allocation5 + $0x1fc] sm:$0xf]
        %v1363 = vld [vmem:[#allocation5 + $0x200] sm:$0xf]
        %v1364 = vld [vmem:[#allocation5 + $0x204] sm:$0xf]
        %v1365 = vld [vmem:[#allocation5 + $0x208] sm:$0xf]
        %v1366 = vld [vmem:[#allocation5 + $0x20c] sm:$0xf]
        %v1367 = vld [vmem:[#allocation5 + $0x210] sm:$0xf]
        %v1368 = vld [vmem:[#allocation5 + $0x214] sm:$0xf]
        %v1369 = vld [vmem:[#allocation5 + $0x218] sm:$0xf]
        %v1370 = vld [vmem:[#allocation5 + $0x21c] sm:$0xf]
        %v1371 = vld [vmem:[#allocation5 + $0x220] sm:$0xf]
        %v1372 = vld [vmem:[#allocation5 + $0x224] sm:$0xf]
        %v1373 = vld [vmem:[#allocation5 + $0x228] sm:$0xf]
        %v1374 = vld [vmem:[#allocation5 + $0x22c] sm:$0xf]
        %v1375 = vld [vmem:[#allocation5 + $0x230] sm:$0xf]
        %v1376 = vld [vmem:[#allocation5 + $0x234] sm:$0xf]
        %v1377 = vld [vmem:[#allocation5 + $0x238] sm:$0xf]
        %v1378 = vld [vmem:[#allocation5 + $0x23c] sm:$0xf]
        %v1379 = vld [vmem:[%s2] sm:$0x1]
        %v1524 = vunpack.c.l.b16 %v1235
        %v1525 = vunpack.c.l.b16 %v1236
        %v1526 = vunpack.c.l.b16 %v1237
        %v1527 = vunpack.c.l.b16 %v1238
        %v1528 = vunpack.c.l.b16 %v1239
        %v1529 = vunpack.c.l.b16 %v1240
        %v1530 = vunpack.c.l.b16 %v1241
        %v1531 = vunpack.c.l.b16 %v1242
        %v1532 = vunpack.c.l.b16 %v1243
        %v1533 = vunpack.c.l.b16 %v1244
        %v1534 = vunpack.c.l.b16 %v1245
        %v1535 = vunpack.c.l.b16 %v1246
        %v1536 = vunpack.c.l.b16 %v1247
        %v1537 = vunpack.c.l.b16 %v1248
        %v1538 = vunpack.c.l.b16 %v1249
        %v1539 = vunpack.c.l.b16 %v1250
        %v1540 = vunpack.c.l.b16 %v1251
        %v1541 = vunpack.c.l.b16 %v1252
        %v1542 = vunpack.c.l.b16 %v1253
        %v1543 = vunpack.c.l.b16 %v1254
        %v1544 = vunpack.c.l.b16 %v1255
        %v1545 = vunpack.c.l.b16 %v1256
        %v1546 = vunpack.c.l.b16 %v1257
        %v1547 = vunpack.c.l.b16 %v1258
        %v1548 = vunpack.c.l.b16 %v1259
        %v1549 = vunpack.c.l.b16 %v1260
        %v1550 = vunpack.c.l.b16 %v1261
        %v1551 = vunpack.c.l.b16 %v1262
        %v1552 = vunpack.c.l.b16 %v1263
        %v1553 = vunpack.c.l.b16 %v1264
        %v1554 = vunpack.c.l.b16 %v1265
        %v1555 = vunpack.c.l.b16 %v1266
        %v1556 = vunpack.c.l.b16 %v1267
        %v1557 = vunpack.c.l.b16 %v1268
        %v1558 = vunpack.c.l.b16 %v1269
        %v1559 = vunpack.c.l.b16 %v1270
        %v1560 = vunpack.c.l.b16 %v1271
        %v1561 = vunpack.c.l.b16 %v1272
        %v1562 = vunpack.c.l.b16 %v1273
        %v1563 = vunpack.c.l.b16 %v1274
        %v1564 = vunpack.c.l.b16 %v1275
        %v1565 = vunpack.c.l.b16 %v1276
        %v1566 = vunpack.c.l.b16 %v1277
        %v1567 = vunpack.c.l.b16 %v1278
        %v1568 = vunpack.c.l.b16 %v1279
        %v1569 = vunpack.c.l.b16 %v1280
        %v1570 = vunpack.c.l.b16 %v1281
        %v1571 = vunpack.c.l.b16 %v1282
        %v1572 = vunpack.c.l.b16 %v1283
        %v1573 = vunpack.c.l.b16 %v1284
        %v1574 = vunpack.c.l.b16 %v1285
        %v1575 = vunpack.c.l.b16 %v1286
        %v1576 = vunpack.c.l.b16 %v1287
        %v1577 = vunpack.c.l.b16 %v1288
        %v1578 = vunpack.c.l.b16 %v1289
        %v1579 = vunpack.c.l.b16 %v1290
        %v1580 = vunpack.c.l.b16 %v1291
        %v1581 = vunpack.c.l.b16 %v1292
        %v1582 = vunpack.c.l.b16 %v1293
        %v1583 = vunpack.c.l.b16 %v1294
        %v1584 = vunpack.c.l.b16 %v1295
        %v1585 = vunpack.c.l.b16 %v1296
        %v1586 = vunpack.c.l.b16 %v1297
        %v1587 = vunpack.c.l.b16 %v1298
        %v1588 = vunpack.c.l.b16 %v1299
        %v1589 = vunpack.c.l.b16 %v1300
        %v1590 = vunpack.c.l.b16 %v1301
        %v1591 = vunpack.c.l.b16 %v1302
        %v1592 = vunpack.c.l.b16 %v1303
        %v1593 = vunpack.c.l.b16 %v1304
        %v1594 = vunpack.c.l.b16 %v1305
        %v1595 = vunpack.c.l.b16 %v1306
        %v1596 = vunpack.c.l.b16 %v1307
        %v1597 = vunpack.c.l.b16 %v1308
        %v1598 = vunpack.c.l.b16 %v1309
        %v1599 = vunpack.c.l.b16 %v1310
        %v1600 = vunpack.c.l.b16 %v1311
        %v1601 = vunpack.c.l.b16 %v1312
        %v1602 = vunpack.c.l.b16 %v1313
        %v1603 = vunpack.c.l.b16 %v1314
        %v1604 = vunpack.c.l.b16 %v1315
        %v1605 = vunpack.c.l.b16 %v1316
        %v1606 = vunpack.c.l.b16 %v1317
        %v1607 = vunpack.c.l.b16 %v1318
        %v1608 = vunpack.c.l.b16 %v1319
        %v1609 = vunpack.c.l.b16 %v1320
        %v1610 = vunpack.c.l.b16 %v1321
        %v1611 = vunpack.c.l.b16 %v1322
        %v1612 = vunpack.c.l.b16 %v1323
        %v1613 = vunpack.c.l.b16 %v1324
        %v1614 = vunpack.c.l.b16 %v1325
        %v1615 = vunpack.c.l.b16 %v1326
        %v1616 = vunpack.c.l.b16 %v1327
        %v1617 = vunpack.c.l.b16 %v1328
        %v1618 = vunpack.c.l.b16 %v1329
        %v1619 = vunpack.c.l.b16 %v1330
        %v1620 = vunpack.c.l.b16 %v1331
        %v1621 = vunpack.c.l.b16 %v1332
        %v1622 = vunpack.c.l.b16 %v1333
        %v1623 = vunpack.c.l.b16 %v1334
        %v1624 = vunpack.c.l.b16 %v1335
        %v1625 = vunpack.c.l.b16 %v1336
        %v1626 = vunpack.c.l.b16 %v1337
        %v1627 = vunpack.c.l.b16 %v1338
        %v1628 = vunpack.c.l.b16 %v1339
        %v1629 = vunpack.c.l.b16 %v1340
        %v1630 = vunpack.c.l.b16 %v1341
        %v1631 = vunpack.c.l.b16 %v1342
        %v1632 = vunpack.c.l.b16 %v1343
        %v1633 = vunpack.c.l.b16 %v1344
        %v1634 = vunpack.c.l.b16 %v1345
        %v1635 = vunpack.c.l.b16 %v1346
        %v1636 = vunpack.c.l.b16 %v1347
        %v1637 = vunpack.c.l.b16 %v1348
        %v1638 = vunpack.c.l.b16 %v1349
        %v1639 = vunpack.c.l.b16 %v1350
        %v1640 = vunpack.c.l.b16 %v1351
        %v1641 = vunpack.c.l.b16 %v1352
        %v1642 = vunpack.c.l.b16 %v1353
        %v1643 = vunpack.c.l.b16 %v1354
        %v1644 = vunpack.c.l.b16 %v1355
        %v1645 = vunpack.c.l.b16 %v1356
        %v1646 = vunpack.c.l.b16 %v1357
        %v1647 = vunpack.c.l.b16 %v1358
        %v1648 = vunpack.c.l.b16 %v1359
        %v1649 = vunpack.c.l.b16 %v1360
        %v1650 = vunpack.c.l.b16 %v1361
        %v1651 = vunpack.c.l.b16 %v1362
        %v1652 = vunpack.c.l.b16 %v1363
        %v1653 = vunpack.c.l.b16 %v1364
        %v1654 = vunpack.c.l.b16 %v1365
        %v1655 = vunpack.c.l.b16 %v1366
        %v1656 = vunpack.c.l.b16 %v1367
        %v1657 = vunpack.c.l.b16 %v1368
        %v1658 = vunpack.c.l.b16 %v1369
        %v1659 = vunpack.c.l.b16 %v1370
        %v1660 = vunpack.c.l.b16 %v1371
        %v1661 = vunpack.c.l.b16 %v1372
        %v1662 = vunpack.c.l.b16 %v1373
        %v1663 = vunpack.c.l.b16 %v1374
        %v1664 = vunpack.c.l.b16 %v1375
        %v1665 = vunpack.c.l.b16 %v1376
        %v1666 = vunpack.c.l.b16 %v1377
        %v1667 = vunpack.c.l.b16 %v1378
        %v1668 = vpack.c.b16 %v1525, %v1524
        %v1669 = vpack.c.b16 %v1527, %v1526
        %v1670 = vpack.c.b16 %v1529, %v1528
        %v1671 = vpack.c.b16 %v1531, %v1530
        %v1672 = vpack.c.b16 %v1533, %v1532
        %v1673 = vpack.c.b16 %v1535, %v1534
        %v1674 = vpack.c.b16 %v1537, %v1536
        %v1675 = vpack.c.b16 %v1539, %v1538
        %v1676 = vpack.c.b16 %v1541, %v1540
        %v1677 = vpack.c.b16 %v1543, %v1542
        %v1678 = vpack.c.b16 %v1545, %v1544
        %v1679 = vpack.c.b16 %v1547, %v1546
        %v1680 = vpack.c.b16 %v1549, %v1548
        %v1681 = vpack.c.b16 %v1551, %v1550
        %v1682 = vpack.c.b16 %v1553, %v1552
        %v1683 = vpack.c.b16 %v1555, %v1554
        %v1684 = vpack.c.b16 %v1557, %v1556
        %v1685 = vpack.c.b16 %v1559, %v1558
        %v1686 = vpack.c.b16 %v1561, %v1560
        %v1687 = vpack.c.b16 %v1563, %v1562
        %v1688 = vpack.c.b16 %v1565, %v1564
        %v1689 = vpack.c.b16 %v1567, %v1566
        %v1690 = vpack.c.b16 %v1569, %v1568
        %v1691 = vpack.c.b16 %v1571, %v1570
        %v1692 = vpack.c.b16 %v1573, %v1572
        %v1693 = vpack.c.b16 %v1575, %v1574
        %v1694 = vpack.c.b16 %v1577, %v1576
        %v1695 = vpack.c.b16 %v1579, %v1578
        %v1696 = vpack.c.b16 %v1581, %v1580
        %v1697 = vpack.c.b16 %v1583, %v1582
        %v1698 = vpack.c.b16 %v1585, %v1584
        %v1699 = vpack.c.b16 %v1587, %v1586
        %v1700 = vpack.c.b16 %v1589, %v1588
        %v1701 = vpack.c.b16 %v1591, %v1590
        %v1702 = vpack.c.b16 %v1593, %v1592
        %v1703 = vpack.c.b16 %v1595, %v1594
        %v1704 = vpack.c.b16 %v1597, %v1596
        %v1705 = vpack.c.b16 %v1599, %v1598
        %v1706 = vpack.c.b16 %v1601, %v1600
        %v1707 = vpack.c.b16 %v1603, %v1602
        %v1708 = vpack.c.b16 %v1605, %v1604
        %v1709 = vpack.c.b16 %v1607, %v1606
        %v1710 = vpack.c.b16 %v1609, %v1608
        %v1711 = vpack.c.b16 %v1611, %v1610
        %v1712 = vpack.c.b16 %v1613, %v1612
        %v1713 = vpack.c.b16 %v1615, %v1614
        %v1714 = vpack.c.b16 %v1617, %v1616
        %v1715 = vpack.c.b16 %v1619, %v1618
        %v1716 = vpack.c.b16 %v1621, %v1620
        %v1717 = vpack.c.b16 %v1623, %v1622
        %v1718 = vpack.c.b16 %v1625, %v1624
        %v1719 = vpack.c.b16 %v1627, %v1626
        %v1720 = vpack.c.b16 %v1629, %v1628
        %v1721 = vpack.c.b16 %v1631, %v1630
        %v1722 = vpack.c.b16 %v1633, %v1632
        %v1723 = vpack.c.b16 %v1635, %v1634
        %v1724 = vpack.c.b16 %v1637, %v1636
        %v1725 = vpack.c.b16 %v1639, %v1638
        %v1726 = vpack.c.b16 %v1641, %v1640
        %v1727 = vpack.c.b16 %v1643, %v1642
        %v1728 = vpack.c.b16 %v1645, %v1644
        %v1729 = vpack.c.b16 %v1647, %v1646
        %v1730 = vpack.c.b16 %v1649, %v1648
        %v1731 = vpack.c.b16 %v1651, %v1650
        %v1732 = vpack.c.b16 %v1653, %v1652
        %v1733 = vpack.c.b16 %v1655, %v1654
        %v1734 = vpack.c.b16 %v1657, %v1656
        %v1735 = vpack.c.b16 %v1659, %v1658
        %v1736 = vpack.c.b16 %v1661, %v1660
        %v1737 = vpack.c.b16 %v1663, %v1662
        %v1738 = vpack.c.b16 %v1665, %v1664
        %v1739 = vpack.c.b16 %v1667, %v1666
        %1812 = vmatprep.subr.bf16.mxu0 0
        %1813 = vmatpush1.bf16.msra.mxu0 %v1675
        %1814 = vmatprep.subr.bf16.mxu0 0
        %1815 = vmatpush1.bf16.msra.mxu0 %v1674
        %1816 = vmatprep.subr.bf16.mxu0 0
        %1817 = vmatpush1.bf16.msra.mxu0 %v1673
        %1818 = vmatprep.subr.bf16.mxu0 0
        %1819 = vmatpush1.bf16.msra.mxu0 %v1672
        %1820 = vmatprep.subr.bf16.mxu0 0
        %1821 = vmatpush1.bf16.msra.mxu0 %v1671
        %1822 = vmatprep.subr.bf16.mxu0 0
        %1823 = vmatpush1.bf16.msra.mxu0 %v1670
        %1824 = vmatprep.subr.bf16.mxu0 0
        %1825 = vmatpush1.bf16.msra.mxu0 %v1669
        %1826 = vmatprep.subr.bf16.mxu0 0
        %1827 = vmatpush1.bf16.msra.mxu0 %v1668
        %1828 = vmatprep.subr.bf16.mxu0 0
        %1829 = vmatpush2.bf16.msra.mxu0 %v1683
        %1830 = vmatprep.subr.bf16.mxu0 0
        %1831 = vmatpush2.bf16.msra.mxu0 %v1682
        %1832 = vmatprep.subr.bf16.mxu0 0
        %1833 = vmatpush2.bf16.msra.mxu0 %v1681
        %1834 = vmatprep.subr.bf16.mxu0 0
        %1835 = vmatpush2.bf16.msra.mxu0 %v1680
        %1836 = vmatprep.subr.bf16.mxu0 0
        %1837 = vmatpush2.bf16.msra.mxu0 %v1679
        %1838 = vmatprep.subr.bf16.mxu0 0
        %1839 = vmatpush2.bf16.msra.mxu0 %v1678
        %1840 = vmatprep.subr.bf16.mxu0 0
        %1841 = vmatpush2.bf16.msra.mxu0 %v1677
        %1842 = vmatprep.subr.bf16.mxu0 0
        %1843 = vmatpush2.bf16.msra.mxu0 %v1676
        %1844 = vmatprep.mubr.bf16.mxu0 %v1199
        %1845 = vmatmul.mubr.bf16.gmra.mxu0 %v1181
        %v1846 = vpop.f32.mrf.mxu0
        %v1847 = vadd.f32 0.0, %v1846
        %v1848 = vpop.f32.mrf.mxu0
        %v1849 = vpop.f32.mrf.mxu0
        %v1850 = vadd.f32 0.0, %v1849
        %v1851 = vpop.f32.mrf.mxu0
        %1852 = vmatprep.mubr.bf16.mxu0 %v1200
        %1853 = vmatmul.mubr.bf16.gmra.mxu0 %v1182
        %v1854 = vpop.f32.mrf.mxu0
        %v1855 = vadd.f32 0.0, %v1854
        %v1856 = vpop.f32.mrf.mxu0
        %v1857 = vpop.f32.mrf.mxu0
        %v1858 = vadd.f32 0.0, %v1857
        %v1859 = vpop.f32.mrf.mxu0
        %1860 = vmatprep.mubr.bf16.mxu0 %v1201
        %1861 = vmatmul.mubr.bf16.gmra.mxu0 %v1183
        %v1862 = vpop.f32.mrf.mxu0
        %v1863 = vadd.f32 0.0, %v1862
        %v1864 = vpop.f32.mrf.mxu0
        %v1865 = vpop.f32.mrf.mxu0
        %v1866 = vadd.f32 0.0, %v1865
        %v1867 = vpop.f32.mrf.mxu0
        %1868 = vmatprep.mubr.bf16.mxu0 %v1202
        %1869 = vmatmul.mubr.bf16.gmra.mxu0 %v1184
        %v1870 = vpop.f32.mrf.mxu0
        %v1871 = vadd.f32 0.0, %v1870
        %v1872 = vpop.f32.mrf.mxu0
        %v1873 = vpop.f32.mrf.mxu0
        %v1874 = vadd.f32 0.0, %v1873
        %v1875 = vpop.f32.mrf.mxu0
        %1876 = vmatprep.mubr.bf16.mxu0 %v1203
        %1877 = vmatmul.mubr.bf16.gmra.mxu0 %v1185
        %v1878 = vpop.f32.mrf.mxu0
        %v1879 = vadd.f32 0.0, %v1878
        %v1880 = vpop.f32.mrf.mxu0
        %v1881 = vpop.f32.mrf.mxu0
        %v1882 = vadd.f32 0.0, %v1881
        %v1883 = vpop.f32.mrf.mxu0
        %1884 = vmatprep.mubr.bf16.mxu0 %v1204
        %1885 = vmatmul.mubr.bf16.gmra.mxu0 %v1186
        %v1886 = vpop.f32.mrf.mxu0
        %v1887 = vadd.f32 0.0, %v1886
        %v1888 = vpop.f32.mrf.mxu0
        %v1889 = vpop.f32.mrf.mxu0
        %v1890 = vadd.f32 0.0, %v1889
        %v1891 = vpop.f32.mrf.mxu0
        %1892 = vmatprep.mubr.bf16.mxu0 %v1205
        %1893 = vmatmul.mubr.bf16.gmra.mxu0 %v1187
        %v1894 = vpop.f32.mrf.mxu0
        %v1895 = vadd.f32 0.0, %v1894
        %v1896 = vpop.f32.mrf.mxu0
        %v1897 = vpop.f32.mrf.mxu0
        %v1898 = vadd.f32 0.0, %v1897
        %v1899 = vpop.f32.mrf.mxu0
        %1900 = vmatprep.mubr.bf16.mxu0 %v1206
        %1901 = vmatmul.mubr.bf16.gmra.mxu0 %v1188
        %v1902 = vpop.f32.mrf.mxu0
        %v1903 = vadd.f32 0.0, %v1902
        %v1904 = vpop.f32.mrf.mxu0
        %v1905 = vpop.f32.mrf.mxu0
        %v1906 = vadd.f32 0.0, %v1905
        %v1907 = vpop.f32.mrf.mxu0
        %1908 = vmatprep.mubr.bf16.mxu0 %v1207
        %1909 = vmatmul.mubr.bf16.gmra.mxu0 %v1189
        %v1910 = vpop.f32.mrf.mxu0
        %v1911 = vadd.f32 0.0, %v1910
        %v1912 = vpop.f32.mrf.mxu0
        %v1913 = vpop.f32.mrf.mxu0
        %v1914 = vadd.f32 0.0, %v1913
        %v1915 = vpop.f32.mrf.mxu0
        %1916 = vmatprep.mubr.bf16.mxu0 %v1208
        %1917 = vmatmul.mubr.bf16.gmra.mxu0 %v1190
        %v1918 = vpop.f32.mrf.mxu0
        %v1919 = vadd.f32 0.0, %v1918
        %v1920 = vpop.f32.mrf.mxu0
        %v1921 = vpop.f32.mrf.mxu0
        %v1922 = vadd.f32 0.0, %v1921
        %v1923 = vpop.f32.mrf.mxu0
        %1924 = vmatprep.mubr.bf16.mxu0 %v1209
        %1925 = vmatmul.mubr.bf16.gmra.mxu0 %v1191
        %v1926 = vpop.f32.mrf.mxu0
        %v1927 = vadd.f32 0.0, %v1926
        %v1928 = vpop.f32.mrf.mxu0
        %v1929 = vpop.f32.mrf.mxu0
        %v1930 = vadd.f32 0.0, %v1929
        %v1931 = vpop.f32.mrf.mxu0
        %1932 = vmatprep.mubr.bf16.mxu0 %v1210
        %1933 = vmatmul.mubr.bf16.gmra.mxu0 %v1192
        %v1934 = vpop.f32.mrf.mxu0
        %v1935 = vadd.f32 0.0, %v1934
        %v1936 = vpop.f32.mrf.mxu0
        %v1937 = vpop.f32.mrf.mxu0
        %v1938 = vadd.f32 0.0, %v1937
        %v1939 = vpop.f32.mrf.mxu0
        %1940 = vmatprep.mubr.bf16.mxu0 %v1211
        %1941 = vmatmul.mubr.bf16.gmra.mxu0 %v1193
        %v1942 = vpop.f32.mrf.mxu0
        %v1943 = vadd.f32 0.0, %v1942
        %v1944 = vpop.f32.mrf.mxu0
        %v1945 = vpop.f32.mrf.mxu0
        %v1946 = vadd.f32 0.0, %v1945
        %v1947 = vpop.f32.mrf.mxu0
        %1948 = vmatprep.mubr.bf16.mxu0 %v1212
        %1949 = vmatmul.mubr.bf16.gmra.mxu0 %v1194
        %v1950 = vpop.f32.mrf.mxu0
        %v1951 = vadd.f32 0.0, %v1950
        %v1952 = vpop.f32.mrf.mxu0
        %v1953 = vpop.f32.mrf.mxu0
        %v1954 = vadd.f32 0.0, %v1953
        %v1955 = vpop.f32.mrf.mxu0
        %1956 = vmatprep.mubr.bf16.mxu0 %v1213
        %1957 = vmatmul.mubr.bf16.gmra.mxu0 %v1195
        %v1958 = vpop.f32.mrf.mxu0
        %v1959 = vadd.f32 0.0, %v1958
        %v1960 = vpop.f32.mrf.mxu0
        %v1961 = vpop.f32.mrf.mxu0
        %v1962 = vadd.f32 0.0, %v1961
        %v1963 = vpop.f32.mrf.mxu0
        %1964 = vmatprep.mubr.bf16.mxu0 %v1214
        %1965 = vmatmul.mubr.bf16.gmra.mxu0 %v1196
        %v1966 = vpop.f32.mrf.mxu0
        %v1967 = vadd.f32 0.0, %v1966
        %v1968 = vpop.f32.mrf.mxu0
        %v1969 = vpop.f32.mrf.mxu0
        %v1970 = vadd.f32 0.0, %v1969
        %v1971 = vpop.f32.mrf.mxu0
        %1972 = vdwg.mxu0
        %1973 = vmatprep.subr.bf16.mxu0 0
        %1974 = vmatpush1.bf16.msra.mxu0 %v1691
        %1975 = vmatprep.subr.bf16.mxu0 0
        %1976 = vmatpush1.bf16.msra.mxu0 %v1690
        %1977 = vmatprep.subr.bf16.mxu0 0
        %1978 = vmatpush1.bf16.msra.mxu0 %v1689
        %1979 = vmatprep.subr.bf16.mxu0 0
        %1980 = vmatpush1.bf16.msra.mxu0 %v1688
        %1981 = vmatprep.subr.bf16.mxu0 0
        %1982 = vmatpush1.bf16.msra.mxu0 %v1687
        %1983 = vmatprep.subr.bf16.mxu0 0
        %1984 = vmatpush1.bf16.msra.mxu0 %v1686
        %1985 = vmatprep.subr.bf16.mxu0 0
        %1986 = vmatpush1.bf16.msra.mxu0 %v1685
        %1987 = vmatprep.subr.bf16.mxu0 0
        %1988 = vmatpush1.bf16.msra.mxu0 %v1684
        %1989 = vmatprep.subr.bf16.mxu0 0
        %1990 = vmatpush2.bf16.msra.mxu0 %v1699
        %1991 = vmatprep.subr.bf16.mxu0 0
        %1992 = vmatpush2.bf16.msra.mxu0 %v1698
        %1993 = vmatprep.subr.bf16.mxu0 0
        %1994 = vmatpush2.bf16.msra.mxu0 %v1697
        %1995 = vmatprep.subr.bf16.mxu0 0
        %1996 = vmatpush2.bf16.msra.mxu0 %v1696
        %1997 = vmatprep.subr.bf16.mxu0 0
        %1998 = vmatpush2.bf16.msra.mxu0 %v1695
        %1999 = vmatprep.subr.bf16.mxu0 0
        %2000 = vmatpush2.bf16.msra.mxu0 %v1694
        %2001 = vmatprep.subr.bf16.mxu0 0
        %2002 = vmatpush2.bf16.msra.mxu0 %v1693
        %2003 = vmatprep.subr.bf16.mxu0 0
        %2004 = vmatpush2.bf16.msra.mxu0 %v1692
        %2005 = vmatprep.mubr.bf16.mxu0 %v1182
        %2006 = vmatmul.mubr.bf16.gmra.mxu0 %v1217
        %v2007 = vpop.f32.mrf.mxu0
        %v2008 = vadd.f32 %v1847, %v2007
        %v2009 = vpop.f32.mrf.mxu0
        %v2010 = vpop.f32.mrf.mxu0
        %v2011 = vadd.f32 %v1850, %v2010
        %v2012 = vpop.f32.mrf.mxu0
        %2013 = vmatprep.mubr.bf16.mxu0 %v1183
        %2014 = vmatmul.mubr.bf16.gmra.mxu0 %v1218
        %v2015 = vpop.f32.mrf.mxu0
        %v2016 = vadd.f32 %v1855, %v2015
        %v2017 = vpop.f32.mrf.mxu0
        %v2018 = vpop.f32.mrf.mxu0
        %v2019 = vadd.f32 %v1858, %v2018
        %v2020 = vpop.f32.mrf.mxu0
        %2021 = vmatprep.mubr.bf16.mxu0 %v1184
        %2022 = vmatmul.mubr.bf16.gmra.mxu0 %v1219
        %v2023 = vpop.f32.mrf.mxu0
        %v2024 = vadd.f32 %v1863, %v2023
        %v2025 = vpop.f32.mrf.mxu0
        %v2026 = vpop.f32.mrf.mxu0
        %v2027 = vadd.f32 %v1866, %v2026
        %v2028 = vpop.f32.mrf.mxu0
        %2029 = vmatprep.mubr.bf16.mxu0 %v1185
        %2030 = vmatmul.mubr.bf16.gmra.mxu0 %v1220
        %v2031 = vpop.f32.mrf.mxu0
        %v2032 = vadd.f32 %v1871, %v2031
        %v2033 = vpop.f32.mrf.mxu0
        %v2034 = vpop.f32.mrf.mxu0
        %v2035 = vadd.f32 %v1874, %v2034
        %v2036 = vpop.f32.mrf.mxu0
        %2037 = vmatprep.mubr.bf16.mxu0 %v1186
        %2038 = vmatmul.mubr.bf16.gmra.mxu0 %v1221
        %v2039 = vpop.f32.mrf.mxu0
        %v2040 = vadd.f32 %v1879, %v2039
        %v2041 = vpop.f32.mrf.mxu0
        %v2042 = vpop.f32.mrf.mxu0
        %v2043 = vadd.f32 %v1882, %v2042
        %v2044 = vpop.f32.mrf.mxu0
        %2045 = vmatprep.mubr.bf16.mxu0 %v1187
        %2046 = vmatmul.mubr.bf16.gmra.mxu0 %v1222
        %v2047 = vpop.f32.mrf.mxu0
        %v2048 = vadd.f32 %v1887, %v2047
        %v2049 = vpop.f32.mrf.mxu0
        %v2050 = vpop.f32.mrf.mxu0
        %v2051 = vadd.f32 %v1890, %v2050
        %v2052 = vpop.f32.mrf.mxu0
        %2053 = vmatprep.mubr.bf16.mxu0 %v1188
        %2054 = vmatmul.mubr.bf16.gmra.mxu0 %v1223
        %v2055 = vpop.f32.mrf.mxu0
        %v2056 = vadd.f32 %v1895, %v2055
        %v2057 = vpop.f32.mrf.mxu0
        %v2058 = vpop.f32.mrf.mxu0
        %v2059 = vadd.f32 %v1898, %v2058
        %v2060 = vpop.f32.mrf.mxu0
        %2061 = vmatprep.mubr.bf16.mxu0 %v1189
        %2062 = vmatmul.mubr.bf16.gmra.mxu0 %v1224
        %v2063 = vpop.f32.mrf.mxu0
        %v2064 = vadd.f32 %v1903, %v2063
        %v2065 = vpop.f32.mrf.mxu0
        %v2066 = vpop.f32.mrf.mxu0
        %v2067 = vadd.f32 %v1906, %v2066
        %v2068 = vpop.f32.mrf.mxu0
        %2069 = vmatprep.mubr.bf16.mxu0 %v1190
        %2070 = vmatmul.mubr.bf16.gmra.mxu0 %v1225
        %v2071 = vpop.f32.mrf.mxu0
        %v2072 = vadd.f32 %v1911, %v2071
        %v2073 = vpop.f32.mrf.mxu0
        %v2074 = vpop.f32.mrf.mxu0
        %v2075 = vadd.f32 %v1914, %v2074
        %v2076 = vpop.f32.mrf.mxu0
        %2077 = vmatprep.mubr.bf16.mxu0 %v1191
        %2078 = vmatmul.mubr.bf16.gmra.mxu0 %v1226
        %v2079 = vpop.f32.mrf.mxu0
        %v2080 = vadd.f32 %v1919, %v2079
        %v2081 = vpop.f32.mrf.mxu0
        %v2082 = vpop.f32.mrf.mxu0
        %v2083 = vadd.f32 %v1922, %v2082
        %v2084 = vpop.f32.mrf.mxu0
        %2085 = vmatprep.mubr.bf16.mxu0 %v1192
        %2086 = vmatmul.mubr.bf16.gmra.mxu0 %v1227
        %v2087 = vpop.f32.mrf.mxu0
        %v2088 = vadd.f32 %v1927, %v2087
        %v2089 = vpop.f32.mrf.mxu0
        %v2090 = vpop.f32.mrf.mxu0
        %v2091 = vadd.f32 %v1930, %v2090
        %v2092 = vpop.f32.mrf.mxu0
        %2093 = vmatprep.mubr.bf16.mxu0 %v1193
        %2094 = vmatmul.mubr.bf16.gmra.mxu0 %v1228
        %v2095 = vpop.f32.mrf.mxu0
        %v2096 = vadd.f32 %v1935, %v2095
        %v2097 = vpop.f32.mrf.mxu0
        %v2098 = vpop.f32.mrf.mxu0
        %v2099 = vadd.f32 %v1938, %v2098
        %v2100 = vpop.f32.mrf.mxu0
        %2101 = vmatprep.mubr.bf16.mxu0 %v1194
        %2102 = vmatmul.mubr.bf16.gmra.mxu0 %v1229
        %v2103 = vpop.f32.mrf.mxu0
        %v2104 = vadd.f32 %v1943, %v2103
        %v2105 = vpop.f32.mrf.mxu0
        %v2106 = vpop.f32.mrf.mxu0
        %v2107 = vadd.f32 %v1946, %v2106
        %v2108 = vpop.f32.mrf.mxu0
        %2109 = vmatprep.mubr.bf16.mxu0 %v1195
        %2110 = vmatmul.mubr.bf16.gmra.mxu0 %v1230
        %v2111 = vpop.f32.mrf.mxu0
        %v2112 = vadd.f32 %v1951, %v2111
        %v2113 = vpop.f32.mrf.mxu0
        %v2114 = vpop.f32.mrf.mxu0
        %v2115 = vadd.f32 %v1954, %v2114
        %v2116 = vpop.f32.mrf.mxu0
        %2117 = vmatprep.mubr.bf16.mxu0 %v1196
        %2118 = vmatmul.mubr.bf16.gmra.mxu0 %v1231
        %v2119 = vpop.f32.mrf.mxu0
        %v2120 = vadd.f32 %v1959, %v2119
        %v2121 = vpop.f32.mrf.mxu0
        %v2122 = vpop.f32.mrf.mxu0
        %v2123 = vadd.f32 %v1962, %v2122
        %v2124 = vpop.f32.mrf.mxu0
        %2125 = vmatprep.mubr.bf16.mxu0 %v1197
        %2126 = vmatmul.mubr.bf16.gmra.mxu0 %v1232
        %v2127 = vpop.f32.mrf.mxu0
        %v2128 = vadd.f32 %v1967, %v2127
        %v2129 = vpop.f32.mrf.mxu0
        %v2130 = vpop.f32.mrf.mxu0
        %v2131 = vadd.f32 %v1970, %v2130
        %v2132 = vpop.f32.mrf.mxu0
        %2133 = vdwg.mxu0
        %2134 = vmatprep.subr.bf16.mxu0 0
        %2135 = vmatpush1.bf16.msra.mxu0 %v1707
        %2136 = vmatprep.subr.bf16.mxu0 0
        %2137 = vmatpush1.bf16.msra.mxu0 %v1706
        %2138 = vmatprep.subr.bf16.mxu0 0
        %2139 = vmatpush1.bf16.msra.mxu0 %v1705
        %2140 = vmatprep.subr.bf16.mxu0 0
        %2141 = vmatpush1.bf16.msra.mxu0 %v1704
        %2142 = vmatprep.subr.bf16.mxu0 0
        %2143 = vmatpush1.bf16.msra.mxu0 %v1703
        %2144 = vmatprep.subr.bf16.mxu0 0
        %2145 = vmatpush1.bf16.msra.mxu0 %v1702
        %2146 = vmatprep.subr.bf16.mxu0 0
        %2147 = vmatpush1.bf16.msra.mxu0 %v1701
        %2148 = vmatprep.subr.bf16.mxu0 0
        %2149 = vmatpush1.bf16.msra.mxu0 %v1700
        %2150 = vmatprep.subr.bf16.mxu0 0
        %2151 = vmatpush2.bf16.msra.mxu0 %v1715
        %2152 = vmatprep.subr.bf16.mxu0 0
        %2153 = vmatpush2.bf16.msra.mxu0 %v1714
        %2154 = vmatprep.subr.bf16.mxu0 0
        %2155 = vmatpush2.bf16.msra.mxu0 %v1713
        %2156 = vmatprep.subr.bf16.mxu0 0
        %2157 = vmatpush2.bf16.msra.mxu0 %v1712
        %2158 = vmatprep.subr.bf16.mxu0 0
        %2159 = vmatpush2.bf16.msra.mxu0 %v1711
        %2160 = vmatprep.subr.bf16.mxu0 0
        %2161 = vmatpush2.bf16.msra.mxu0 %v1710
        %2162 = vmatprep.subr.bf16.mxu0 0
        %2163 = vmatpush2.bf16.msra.mxu0 %v1709
        %2164 = vmatprep.subr.bf16.mxu0 0
        %2165 = vmatpush2.bf16.msra.mxu0 %v1708
        %2166 = vmatprep.mubr.bf16.mxu0 %v1218
        %2167 = vmatmul.mubr.bf16.gmra.mxu0 %v1200
        %v2168 = vpop.f32.mrf.mxu0
        %v2169 = vadd.f32 %v2008, %v2168
        %v2170 = vpop.f32.mrf.mxu0
        %v2171 = vpop.f32.mrf.mxu0
        %v2172 = vadd.f32 %v2011, %v2171
        %v2173 = vpop.f32.mrf.mxu0
        %2174 = vmatprep.mubr.bf16.mxu0 %v1219
        %2175 = vmatmul.mubr.bf16.gmra.mxu0 %v1201
        %v2176 = vpop.f32.mrf.mxu0
        %v2177 = vadd.f32 %v2016, %v2176
        %v2178 = vpop.f32.mrf.mxu0
        %v2179 = vpop.f32.mrf.mxu0
        %v2180 = vadd.f32 %v2019, %v2179
        %v2181 = vpop.f32.mrf.mxu0
        %2182 = vmatprep.mubr.bf16.mxu0 %v1220
        %2183 = vmatmul.mubr.bf16.gmra.mxu0 %v1202
        %v2184 = vpop.f32.mrf.mxu0
        %v2185 = vadd.f32 %v2024, %v2184
        %v2186 = vpop.f32.mrf.mxu0
        %v2187 = vpop.f32.mrf.mxu0
        %v2188 = vadd.f32 %v2027, %v2187
        %v2189 = vpop.f32.mrf.mxu0
        %2190 = vmatprep.mubr.bf16.mxu0 %v1221
        %2191 = vmatmul.mubr.bf16.gmra.mxu0 %v1203
        %v2192 = vpop.f32.mrf.mxu0
        %v2193 = vadd.f32 %v2032, %v2192
        %v2194 = vpop.f32.mrf.mxu0
        %v2195 = vpop.f32.mrf.mxu0
        %v2196 = vadd.f32 %v2035, %v2195
        %v2197 = vpop.f32.mrf.mxu0
        %2198 = vmatprep.mubr.bf16.mxu0 %v1222
        %2199 = vmatmul.mubr.bf16.gmra.mxu0 %v1204
        %v2200 = vpop.f32.mrf.mxu0
        %v2201 = vadd.f32 %v2040, %v2200
        %v2202 = vpop.f32.mrf.mxu0
        %v2203 = vpop.f32.mrf.mxu0
        %v2204 = vadd.f32 %v2043, %v2203
        %v2205 = vpop.f32.mrf.mxu0
        %2206 = vmatprep.mubr.bf16.mxu0 %v1223
        %2207 = vmatmul.mubr.bf16.gmra.mxu0 %v1205
        %v2208 = vpop.f32.mrf.mxu0
        %v2209 = vadd.f32 %v2048, %v2208
        %v2210 = vpop.f32.mrf.mxu0
        %v2211 = vpop.f32.mrf.mxu0
        %v2212 = vadd.f32 %v2051, %v2211
        %v2213 = vpop.f32.mrf.mxu0
        %2214 = vmatprep.mubr.bf16.mxu0 %v1224
        %2215 = vmatmul.mubr.bf16.gmra.mxu0 %v1206
        %v2216 = vpop.f32.mrf.mxu0
        %v2217 = vadd.f32 %v2056, %v2216
        %v2218 = vpop.f32.mrf.mxu0
        %v2219 = vpop.f32.mrf.mxu0
        %v2220 = vadd.f32 %v2059, %v2219
        %v2221 = vpop.f32.mrf.mxu0
        %2222 = vmatprep.mubr.bf16.mxu0 %v1225
        %2223 = vmatmul.mubr.bf16.gmra.mxu0 %v1207
        %v2224 = vpop.f32.mrf.mxu0
        %v2225 = vadd.f32 %v2064, %v2224
        %v2226 = vpop.f32.mrf.mxu0
        %v2227 = vpop.f32.mrf.mxu0
        %v2228 = vadd.f32 %v2067, %v2227
        %v2229 = vpop.f32.mrf.mxu0
        %2230 = vmatprep.mubr.bf16.mxu0 %v1226
        %2231 = vmatmul.mubr.bf16.gmra.mxu0 %v1208
        %v2232 = vpop.f32.mrf.mxu0
        %v2233 = vadd.f32 %v2072, %v2232
        %v2234 = vpop.f32.mrf.mxu0
        %v2235 = vpop.f32.mrf.mxu0
        %v2236 = vadd.f32 %v2075, %v2235
        %v2237 = vpop.f32.mrf.mxu0
        %2238 = vmatprep.mubr.bf16.mxu0 %v1227
        %2239 = vmatmul.mubr.bf16.gmra.mxu0 %v1209
        %v2240 = vpop.f32.mrf.mxu0
        %v2241 = vadd.f32 %v2080, %v2240
        %v2242 = vpop.f32.mrf.mxu0
        %v2243 = vpop.f32.mrf.mxu0
        %v2244 = vadd.f32 %v2083, %v2243
        %v2245 = vpop.f32.mrf.mxu0
        %2246 = vmatprep.mubr.bf16.mxu0 %v1228
        %2247 = vmatmul.mubr.bf16.gmra.mxu0 %v1210
        %v2248 = vpop.f32.mrf.mxu0
        %v2249 = vadd.f32 %v2088, %v2248
        %v2250 = vpop.f32.mrf.mxu0
        %v2251 = vpop.f32.mrf.mxu0
        %v2252 = vadd.f32 %v2091, %v2251
        %v2253 = vpop.f32.mrf.mxu0
        %2254 = vmatprep.mubr.bf16.mxu0 %v1229
        %2255 = vmatmul.mubr.bf16.gmra.mxu0 %v1211
        %v2256 = vpop.f32.mrf.mxu0
        %v2257 = vadd.f32 %v2096, %v2256
        %v2258 = vpop.f32.mrf.mxu0
        %v2259 = vpop.f32.mrf.mxu0
        %v2260 = vadd.f32 %v2099, %v2259
        %v2261 = vpop.f32.mrf.mxu0
        %2262 = vmatprep.mubr.bf16.mxu0 %v1230
        %2263 = vmatmul.mubr.bf16.gmra.mxu0 %v1212
        %v2264 = vpop.f32.mrf.mxu0
        %v2265 = vadd.f32 %v2104, %v2264
        %v2266 = vpop.f32.mrf.mxu0
        %v2267 = vpop.f32.mrf.mxu0
        %v2268 = vadd.f32 %v2107, %v2267
        %v2269 = vpop.f32.mrf.mxu0
        %2270 = vmatprep.mubr.bf16.mxu0 %v1231
        %2271 = vmatmul.mubr.bf16.gmra.mxu0 %v1213
        %v2272 = vpop.f32.mrf.mxu0
        %v2273 = vadd.f32 %v2112, %v2272
        %v2274 = vpop.f32.mrf.mxu0
        %v2275 = vpop.f32.mrf.mxu0
        %v2276 = vadd.f32 %v2115, %v2275
        %v2277 = vpop.f32.mrf.mxu0
        %2278 = vmatprep.mubr.bf16.mxu0 %v1232
        %2279 = vmatmul.mubr.bf16.gmra.mxu0 %v1214
        %v2280 = vpop.f32.mrf.mxu0
        %v2281 = vadd.f32 %v2120, %v2280
        %v2282 = vpop.f32.mrf.mxu0
        %v2283 = vpop.f32.mrf.mxu0
        %v2284 = vadd.f32 %v2123, %v2283
        %v2285 = vpop.f32.mrf.mxu0
        %2286 = vmatprep.mubr.bf16.mxu0 %v1233
        %2287 = vmatmul.mubr.bf16.gmra.mxu0 %v1215
        %v2288 = vpop.f32.mrf.mxu0
        %v2289 = vadd.f32 %v2128, %v2288
        %v2290 = vpop.f32.mrf.mxu0
        %v2291 = vpop.f32.mrf.mxu0
        %v2292 = vadd.f32 %v2131, %v2291
        %v2293 = vpop.f32.mrf.mxu0
        %2294 = vdwg.mxu0
        %2295 = vmatprep.subr.bf16.mxu0 0
        %2296 = vmatpush1.bf16.msra.mxu0 %v1723
        %2297 = vmatprep.subr.bf16.mxu0 0
        %2298 = vmatpush1.bf16.msra.mxu0 %v1722
        %2299 = vmatprep.subr.bf16.mxu0 0
        %2300 = vmatpush1.bf16.msra.mxu0 %v1721
        %2301 = vmatprep.subr.bf16.mxu0 0
        %2302 = vmatpush1.bf16.msra.mxu0 %v1720
        %2303 = vmatprep.subr.bf16.mxu0 0
        %2304 = vmatpush1.bf16.msra.mxu0 %v1719
        %2305 = vmatprep.subr.bf16.mxu0 0
        %2306 = vmatpush1.bf16.msra.mxu0 %v1718
        %2307 = vmatprep.subr.bf16.mxu0 0
        %2308 = vmatpush1.bf16.msra.mxu0 %v1717
        %2309 = vmatprep.subr.bf16.mxu0 0
        %2310 = vmatpush1.bf16.msra.mxu0 %v1716
        %2311 = vmatprep.subr.bf16.mxu0 0
        %2312 = vmatpush2.bf16.msra.mxu0 %v1731
        %2313 = vmatprep.subr.bf16.mxu0 0
        %2314 = vmatpush2.bf16.msra.mxu0 %v1730
        %2315 = vmatprep.subr.bf16.mxu0 0
        %2316 = vmatpush2.bf16.msra.mxu0 %v1729
        %2317 = vmatprep.subr.bf16.mxu0 0
        %2318 = vmatpush2.bf16.msra.mxu0 %v1728
        %2319 = vmatprep.subr.bf16.mxu0 0
        %2320 = vmatpush2.bf16.msra.mxu0 %v1727
        %2321 = vmatprep.subr.bf16.mxu0 0
        %2322 = vmatpush2.bf16.msra.mxu0 %v1726
        %2323 = vmatprep.subr.bf16.mxu0 0
        %2324 = vmatpush2.bf16.msra.mxu0 %v1725
        %2325 = vmatprep.subr.bf16.mxu0 0
        %2326 = vmatpush2.bf16.msra.mxu0 %v1724
        %2327 = vmatprep.mubr.bf16.mxu0 %v1201
        %2328 = vmatmul.mubr.bf16.gmra.mxu0 %v1183
        %v2329 = vpop.f32.mrf.mxu0
        %v2330 = vadd.f32 %v2169, %v2329
        %v2331 = vpop.f32.mrf.mxu0
        %v2332 = vpop.f32.mrf.mxu0
        %v2333 = vadd.f32 %v2172, %v2332
        %v2334 = vpop.f32.mrf.mxu0
        %2335 = vmatprep.mubr.bf16.mxu0 %v1202
        %2336 = vmatmul.mubr.bf16.gmra.mxu0 %v1184
        %v2337 = vpop.f32.mrf.mxu0
        %v2338 = vadd.f32 %v2177, %v2337
        %v2339 = vpop.f32.mrf.mxu0
        %v2340 = vpop.f32.mrf.mxu0
        %v2341 = vadd.f32 %v2180, %v2340
        %v2342 = vpop.f32.mrf.mxu0
        %2343 = vmatprep.mubr.bf16.mxu0 %v1203
        %2344 = vmatmul.mubr.bf16.gmra.mxu0 %v1185
        %v2345 = vpop.f32.mrf.mxu0
        %v2346 = vadd.f32 %v2185, %v2345
        %v2347 = vpop.f32.mrf.mxu0
        %v2348 = vpop.f32.mrf.mxu0
        %v2349 = vadd.f32 %v2188, %v2348
        %v2350 = vpop.f32.mrf.mxu0
        %2351 = vmatprep.mubr.bf16.mxu0 %v1204
        %2352 = vmatmul.mubr.bf16.gmra.mxu0 %v1186
        %v2353 = vpop.f32.mrf.mxu0
        %v2354 = vadd.f32 %v2193, %v2353
        %v2355 = vpop.f32.mrf.mxu0
        %v2356 = vpop.f32.mrf.mxu0
        %v2357 = vadd.f32 %v2196, %v2356
        %v2358 = vpop.f32.mrf.mxu0
        %2359 = vmatprep.mubr.bf16.mxu0 %v1205
        %2360 = vmatmul.mubr.bf16.gmra.mxu0 %v1187
        %v2361 = vpop.f32.mrf.mxu0
        %v2362 = vadd.f32 %v2201, %v2361
        %v2363 = vpop.f32.mrf.mxu0
        %v2364 = vpop.f32.mrf.mxu0
        %v2365 = vadd.f32 %v2204, %v2364
        %v2366 = vpop.f32.mrf.mxu0
        %2367 = vmatprep.mubr.bf16.mxu0 %v1206
        %2368 = vmatmul.mubr.bf16.gmra.mxu0 %v1188
        %v2369 = vpop.f32.mrf.mxu0
        %v2370 = vadd.f32 %v2209, %v2369
        %v2371 = vpop.f32.mrf.mxu0
        %v2372 = vpop.f32.mrf.mxu0
        %v2373 = vadd.f32 %v2212, %v2372
        %v2374 = vpop.f32.mrf.mxu0
        %2375 = vmatprep.mubr.bf16.mxu0 %v1207
        %2376 = vmatmul.mubr.bf16.gmra.mxu0 %v1189
        %v2377 = vpop.f32.mrf.mxu0
        %v2378 = vadd.f32 %v2217, %v2377
        %v2379 = vpop.f32.mrf.mxu0
        %v2380 = vpop.f32.mrf.mxu0
        %v2381 = vadd.f32 %v2220, %v2380
        %v2382 = vpop.f32.mrf.mxu0
        %2383 = vmatprep.mubr.bf16.mxu0 %v1208
        %2384 = vmatmul.mubr.bf16.gmra.mxu0 %v1190
        %v2385 = vpop.f32.mrf.mxu0
        %v2386 = vadd.f32 %v2225, %v2385
        %v2387 = vpop.f32.mrf.mxu0
        %v2388 = vpop.f32.mrf.mxu0
        %v2389 = vadd.f32 %v2228, %v2388
        %v2390 = vpop.f32.mrf.mxu0
        %2391 = vmatprep.mubr.bf16.mxu0 %v1209
        %2392 = vmatmul.mubr.bf16.gmra.mxu0 %v1191
        %v2393 = vpop.f32.mrf.mxu0
        %v2394 = vadd.f32 %v2233, %v2393
        %v2395 = vpop.f32.mrf.mxu0
        %v2396 = vpop.f32.mrf.mxu0
        %v2397 = vadd.f32 %v2236, %v2396
        %v2398 = vpop.f32.mrf.mxu0
        %2399 = vmatprep.mubr.bf16.mxu0 %v1210
        %2400 = vmatmul.mubr.bf16.gmra.mxu0 %v1192
        %v2401 = vpop.f32.mrf.mxu0
        %v2402 = vadd.f32 %v2241, %v2401
        %v2403 = vpop.f32.mrf.mxu0
        %v2404 = vpop.f32.mrf.mxu0
        %v2405 = vadd.f32 %v2244, %v2404
        %v2406 = vpop.f32.mrf.mxu0
        %2407 = vmatprep.mubr.bf16.mxu0 %v1211
        %2408 = vmatmul.mubr.bf16.gmra.mxu0 %v1193
        %v2409 = vpop.f32.mrf.mxu0
        %v2410 = vadd.f32 %v2249, %v2409
        %v2411 = vpop.f32.mrf.mxu0
        %v2412 = vpop.f32.mrf.mxu0
        %v2413 = vadd.f32 %v2252, %v2412
        %v2414 = vpop.f32.mrf.mxu0
        %2415 = vmatprep.mubr.bf16.mxu0 %v1212
        %2416 = vmatmul.mubr.bf16.gmra.mxu0 %v1194
        %v2417 = vpop.f32.mrf.mxu0
        %v2418 = vadd.f32 %v2257, %v2417
        %v2419 = vpop.f32.mrf.mxu0
        %v2420 = vpop.f32.mrf.mxu0
        %v2421 = vadd.f32 %v2260, %v2420
        %v2422 = vpop.f32.mrf.mxu0
        %2423 = vmatprep.mubr.bf16.mxu0 %v1213
        %2424 = vmatmul.mubr.bf16.gmra.mxu0 %v1195
        %v2425 = vpop.f32.mrf.mxu0
        %v2426 = vadd.f32 %v2265, %v2425
        %v2427 = vpop.f32.mrf.mxu0
        %v2428 = vpop.f32.mrf.mxu0
        %v2429 = vadd.f32 %v2268, %v2428
        %v2430 = vpop.f32.mrf.mxu0
        %2431 = vmatprep.mubr.bf16.mxu0 %v1214
        %2432 = vmatmul.mubr.bf16.gmra.mxu0 %v1196
        %v2433 = vpop.f32.mrf.mxu0
        %v2434 = vadd.f32 %v2273, %v2433
        %v2435 = vpop.f32.mrf.mxu0
        %v2436 = vpop.f32.mrf.mxu0
        %v2437 = vadd.f32 %v2276, %v2436
        %v2438 = vpop.f32.mrf.mxu0
        %2439 = vmatprep.mubr.bf16.mxu0 %v1215
        %2440 = vmatmul.mubr.bf16.gmra.mxu0 %v1197
        %v2441 = vpop.f32.mrf.mxu0
        %v2442 = vadd.f32 %v2281, %v2441
        %v2443 = vpop.f32.mrf.mxu0
        %v2444 = vpop.f32.mrf.mxu0
        %v2445 = vadd.f32 %v2284, %v2444
        %v2446 = vpop.f32.mrf.mxu0
        %2447 = vmatprep.mubr.bf16.mxu0 %v1216
        %2448 = vmatmul.mubr.bf16.gmra.mxu0 %v1198
        %v2449 = vpop.f32.mrf.mxu0
        %v2450 = vadd.f32 %v2289, %v2449
        %v2451 = vpop.f32.mrf.mxu0
        %v2452 = vpop.f32.mrf.mxu0
        %v2453 = vadd.f32 %v2292, %v2452
        %v2454 = vpop.f32.mrf.mxu0
        %2455 = vdwg.mxu0
        %2456 = vmatprep.subr.bf16.mxu0 0
        %2457 = vmatpush1.bf16.msra.mxu0 %v1739
        %2458 = vmatprep.subr.bf16.mxu0 0
        %2459 = vmatpush1.bf16.msra.mxu0 %v1738
        %2460 = vmatprep.subr.bf16.mxu0 0
        %2461 = vmatpush1.bf16.msra.mxu0 %v1737
        %2462 = vmatprep.subr.bf16.mxu0 0
        %2463 = vmatpush1.bf16.msra.mxu0 %v1736
        %2464 = vmatprep.subr.bf16.mxu0 0
        %2465 = vmatpush1.bf16.msra.mxu0 %v1735
        %2466 = vmatprep.subr.bf16.mxu0 0
        %2467 = vmatpush1.bf16.msra.mxu0 %v1734
        %2468 = vmatprep.subr.bf16.mxu0 0
        %2469 = vmatpush1.bf16.msra.mxu0 %v1733
        %2470 = vmatprep.subr.bf16.mxu0 0
        %2471 = vmatpush1.bf16.msra.mxu0 %v1732
        %2472 = vmatprep.subr.bf16.mxu0 0
        %2473 = vmatpush2.bf16.msra.mxu0 0
        %2474 = vmatprep.subr.bf16.mxu0 0
        %2475 = vmatpush2.bf16.msra.mxu0 0
        %2476 = vmatprep.subr.bf16.mxu0 0
        %2477 = vmatpush2.bf16.msra.mxu0 0
        %2478 = vmatprep.subr.bf16.mxu0 0
        %2479 = vmatpush2.bf16.msra.mxu0 0
        %2480 = vmatprep.subr.bf16.mxu0 0
        %2481 = vmatpush2.bf16.msra.mxu0 0
        %2482 = vmatprep.subr.bf16.mxu0 0
        %2483 = vmatpush2.bf16.msra.mxu0 0
        %2484 = vmatprep.subr.bf16.mxu0 0
        %2485 = vmatpush2.bf16.msra.mxu0 0
        %2486 = vmatprep.subr.bf16.mxu0 0
        %2487 = vmatpush2.bf16.msra.mxu0 0
        %2488 = vmatprep.mubr.bf16.mxu0 0
        %2489 = vmatmul.mubr.bf16.gmra.mxu0 %v1219
        %v2490 = vpop.f32.mrf.mxu0
        %v2491 = vadd.f32 %v2330, %v2490
        %v2492 = vpop.f32.mrf.mxu0
        %v2493 = vpop.f32.mrf.mxu0
        %v2494 = vadd.f32 %v2333, %v2493
        %v2495 = vpop.f32.mrf.mxu0
        %2496 = vmatprep.mubr.bf16.mxu0 0
        %2497 = vmatmul.mubr.bf16.gmra.mxu0 %v1220
        %v2498 = vpop.f32.mrf.mxu0
        %v2499 = vadd.f32 %v2338, %v2498
        %v2500 = vpop.f32.mrf.mxu0
        %v2501 = vpop.f32.mrf.mxu0
        %v2502 = vadd.f32 %v2341, %v2501
        %v2503 = vpop.f32.mrf.mxu0
        %2504 = vmatprep.mubr.bf16.mxu0 0
        %2505 = vmatmul.mubr.bf16.gmra.mxu0 %v1221
        %v2506 = vpop.f32.mrf.mxu0
        %v2507 = vadd.f32 %v2346, %v2506
        %v2508 = vpop.f32.mrf.mxu0
        %v2509 = vpop.f32.mrf.mxu0
        %v2510 = vadd.f32 %v2349, %v2509
        %v2511 = vpop.f32.mrf.mxu0
        %2512 = vmatprep.mubr.bf16.mxu0 0
        %2513 = vmatmul.mubr.bf16.gmra.mxu0 %v1222
        %v2514 = vpop.f32.mrf.mxu0
        %v2515 = vadd.f32 %v2354, %v2514
        %v2516 = vpop.f32.mrf.mxu0
        %v2517 = vpop.f32.mrf.mxu0
        %v2518 = vadd.f32 %v2357, %v2517
        %v2519 = vpop.f32.mrf.mxu0
        %2520 = vmatprep.mubr.bf16.mxu0 0
        %2521 = vmatmul.mubr.bf16.gmra.mxu0 %v1223
        %v2522 = vpop.f32.mrf.mxu0
        %v2523 = vadd.f32 %v2362, %v2522
        %v2524 = vpop.f32.mrf.mxu0
        %v2525 = vpop.f32.mrf.mxu0
        %v2526 = vadd.f32 %v2365, %v2525
        %v2527 = vpop.f32.mrf.mxu0
        %2528 = vmatprep.mubr.bf16.mxu0 0
        %2529 = vmatmul.mubr.bf16.gmra.mxu0 %v1224
        %v2530 = vpop.f32.mrf.mxu0
        %v2531 = vadd.f32 %v2370, %v2530
        %v2532 = vpop.f32.mrf.mxu0
        %v2533 = vpop.f32.mrf.mxu0
        %v2534 = vadd.f32 %v2373, %v2533
        %v2535 = vpop.f32.mrf.mxu0
        %2536 = vmatprep.mubr.bf16.mxu0 0
        %2537 = vmatmul.mubr.bf16.gmra.mxu0 %v1225
        %v2538 = vpop.f32.mrf.mxu0
        %v2539 = vadd.f32 %v2378, %v2538
        %v2540 = vpop.f32.mrf.mxu0
        %v2541 = vpop.f32.mrf.mxu0
        %v2542 = vadd.f32 %v2381, %v2541
        %v2543 = vpop.f32.mrf.mxu0
        %2544 = vmatprep.mubr.bf16.mxu0 0
        %2545 = vmatmul.mubr.bf16.gmra.mxu0 %v1226
        %v2546 = vpop.f32.mrf.mxu0
        %v2547 = vadd.f32 %v2386, %v2546
        %v2548 = vpop.f32.mrf.mxu0
        %v2549 = vpop.f32.mrf.mxu0
        %v2550 = vadd.f32 %v2389, %v2549
        %v2551 = vpop.f32.mrf.mxu0
        %2552 = vmatprep.mubr.bf16.mxu0 0
        %2553 = vmatmul.mubr.bf16.gmra.mxu0 %v1227
        %v2554 = vpop.f32.mrf.mxu0
        %v2555 = vadd.f32 %v2394, %v2554
        %v2556 = vpop.f32.mrf.mxu0
        %v2557 = vpop.f32.mrf.mxu0
        %v2558 = vadd.f32 %v2397, %v2557
        %v2559 = vpop.f32.mrf.mxu0
        %2560 = vmatprep.mubr.bf16.mxu0 0
        %2561 = vmatmul.mubr.bf16.gmra.mxu0 %v1228
        %v2562 = vpop.f32.mrf.mxu0
        %v2563 = vadd.f32 %v2402, %v2562
        %v2564 = vpop.f32.mrf.mxu0
        %v2565 = vpop.f32.mrf.mxu0
        %v2566 = vadd.f32 %v2405, %v2565
        %v2567 = vpop.f32.mrf.mxu0
        %2568 = vmatprep.mubr.bf16.mxu0 0
        %2569 = vmatmul.mubr.bf16.gmra.mxu0 %v1229
        %v2570 = vpop.f32.mrf.mxu0
        %v2571 = vadd.f32 %v2410, %v2570
        %v2572 = vpop.f32.mrf.mxu0
        %v2573 = vpop.f32.mrf.mxu0
        %v2574 = vadd.f32 %v2413, %v2573
        %v2575 = vpop.f32.mrf.mxu0
        %2576 = vmatprep.mubr.bf16.mxu0 0
        %2577 = vmatmul.mubr.bf16.gmra.mxu0 %v1230
        %v2578 = vpop.f32.mrf.mxu0
        %v2579 = vadd.f32 %v2418, %v2578
        %v2580 = vpop.f32.mrf.mxu0
        %v2581 = vpop.f32.mrf.mxu0
        %v2582 = vadd.f32 %v2421, %v2581
        %v2583 = vpop.f32.mrf.mxu0
        %2584 = vmatprep.mubr.bf16.mxu0 0
        %2585 = vmatmul.mubr.bf16.gmra.mxu0 %v1231
        %v2586 = vpop.f32.mrf.mxu0
        %v2587 = vadd.f32 %v2426, %v2586
        %v2588 = vpop.f32.mrf.mxu0
        %v2589 = vpop.f32.mrf.mxu0
        %v2590 = vadd.f32 %v2429, %v2589
        %v2591 = vpop.f32.mrf.mxu0
        %2592 = vmatprep.mubr.bf16.mxu0 0
        %2593 = vmatmul.mubr.bf16.gmra.mxu0 %v1232
        %v2594 = vpop.f32.mrf.mxu0
        %v2595 = vadd.f32 %v2434, %v2594
        %v2596 = vpop.f32.mrf.mxu0
        %v2597 = vpop.f32.mrf.mxu0
        %v2598 = vadd.f32 %v2437, %v2597
        %v2599 = vpop.f32.mrf.mxu0
        %2600 = vmatprep.mubr.bf16.mxu0 0
        %2601 = vmatmul.mubr.bf16.gmra.mxu0 %v1233
        %v2602 = vpop.f32.mrf.mxu0
        %v2603 = vadd.f32 %v2442, %v2602
        %v2604 = vpop.f32.mrf.mxu0
        %v2605 = vpop.f32.mrf.mxu0
        %v2606 = vadd.f32 %v2445, %v2605
        %v2607 = vpop.f32.mrf.mxu0
        %2608 = vmatprep.mubr.bf16.mxu0 0
        %2609 = vmatmul.mubr.bf16.gmra.mxu0 %v1234
        %v2610 = vpop.f32.mrf.mxu0
        %v2611 = vadd.f32 %v2450, %v2610
        %v2612 = vpop.f32.mrf.mxu0
        %v2613 = vpop.f32.mrf.mxu0
        %v2614 = vadd.f32 %v2453, %v2613
        %v2615 = vpop.f32.mrf.mxu0
        %2616 = vdwg.mxu0
        %v2617 = vadd.f32 %v2491, %v242
        %v2618 = vadd.f32 %v2494, %v243
        %v2619 = vadd.f32 %v2499, %v244
        %v2620 = vadd.f32 %v2502, %v245
        %v2621 = vadd.f32 %v2507, %v246
        %v2622 = vadd.f32 %v2510, %v247
        %v2623 = vadd.f32 %v2515, %v248
        %v2624 = vadd.f32 %v2518, %v249
        %v2625 = vadd.f32 %v2523, %v250
        %v2626 = vadd.f32 %v2526, %v251
        %v2627 = vadd.f32 %v2531, %v252
        %v2628 = vadd.f32 %v2534, %v253
        %v2629 = vadd.f32 %v2539, %v254
        %v2630 = vadd.f32 %v2542, %v255
        %v2631 = vadd.f32 %v2547, %v256
        %v2632 = vadd.f32 %v2550, %v257
        %v2633 = vadd.f32 %v2555, %v258
        %v2634 = vadd.f32 %v2558, %v259
        %v2635 = vadd.f32 %v2563, %v260
        %v2636 = vadd.f32 %v2566, %v261
        %v2637 = vadd.f32 %v2571, %v262
        %v2638 = vadd.f32 %v2574, %v263
        %v2639 = vadd.f32 %v2579, %v264
        %v2640 = vadd.f32 %v2582, %v265
        %v2641 = vadd.f32 %v2587, %v266
        %v2642 = vadd.f32 %v2590, %v267
        %v2643 = vadd.f32 %v2595, %v268
        %v2644 = vadd.f32 %v2598, %v269
        %v2645 = vadd.f32 %v2603, %v270
        %v2646 = vadd.f32 %v2606, %v271
        %v2647 = vadd.f32 %v2611, %v272
        %v2648 = vadd.f32 %v2614, %v273
        %v2650 = vlaneseq
        %v2651 = vshrl.u32 %v2650, 7
        %v2652 = vsub.s32 0, %v2651
        %v2653 = vrot.slane %v1379, %v2652
        %v2655 = vadd.f32 %v2617, %v2653
        %v2656 = vadd.f32 %v2618, %v2653
        %v2657 = vadd.f32 %v2619, %v2653
        %v2658 = vadd.f32 %v2620, %v2653
        %v2659 = vadd.f32 %v2621, %v2653
        %v2660 = vadd.f32 %v2622, %v2653
        %v2661 = vadd.f32 %v2623, %v2653
        %v2662 = vadd.f32 %v2624, %v2653
        %v2663 = vadd.f32 %v2625, %v2653
        %v2664 = vadd.f32 %v2626, %v2653
        %v2665 = vadd.f32 %v2627, %v2653
        %v2666 = vadd.f32 %v2628, %v2653
        %v2667 = vadd.f32 %v2629, %v2653
        %v2668 = vadd.f32 %v2630, %v2653
        %v2669 = vadd.f32 %v2631, %v2653
        %v2670 = vadd.f32 %v2632, %v2653
        %v2671 = vadd.f32 %v2633, %v2653
        %v2672 = vadd.f32 %v2634, %v2653
        %v2673 = vadd.f32 %v2635, %v2653
        %v2674 = vadd.f32 %v2636, %v2653
        %v2675 = vadd.f32 %v2637, %v2653
        %v2676 = vadd.f32 %v2638, %v2653
        %v2677 = vadd.f32 %v2639, %v2653
        %v2678 = vadd.f32 %v2640, %v2653
        %v2679 = vadd.f32 %v2641, %v2653
        %v2680 = vadd.f32 %v2642, %v2653
        %v2681 = vadd.f32 %v2643, %v2653
        %v2682 = vadd.f32 %v2644, %v2653
        %v2683 = vadd.f32 %v2645, %v2653
        %v2684 = vadd.f32 %v2646, %v2653
        %v2685 = vadd.f32 %v2647, %v2653
        %v2686 = vadd.f32 %v2648, %v2653
        %2687 = vst [vmem:[%s226] sm:$0xff] %v2655
        %2688 = vst [vmem:[%s226 + $0x8] sm:$0xff] %v2656
        %2689 = vst [vmem:[%s226 + $0x10] sm:$0xff] %v2657
        %2690 = vst [vmem:[%s226 + $0x18] sm:$0xff] %v2658
        %2691 = vst [vmem:[%s226 + $0x20] sm:$0xff] %v2659
        %2692 = vst [vmem:[%s226 + $0x28] sm:$0xff] %v2660
        %2693 = vst [vmem:[%s226 + $0x30] sm:$0xff] %v2661
        %2694 = vst [vmem:[%s226 + $0x38] sm:$0xff] %v2662
        %2695 = vst [vmem:[%s226 + $0x40] sm:$0xff] %v2663
        %2696 = vst [vmem:[%s226 + $0x48] sm:$0xff] %v2664
        %2697 = vst [vmem:[%s226 + $0x50] sm:$0xff] %v2665
        %2698 = vst [vmem:[%s226 + $0x58] sm:$0xff] %v2666
        %2699 = vst [vmem:[%s226 + $0x60] sm:$0xff] %v2667
        %2700 = vst [vmem:[%s226 + $0x68] sm:$0xff] %v2668
        %2701 = vst [vmem:[%s226 + $0x70] sm:$0xff] %v2669
        %2702 = vst [vmem:[%s226 + $0x78] sm:$0xff] %v2670
        %2703 = vst [vmem:[%s226 + $0x80] sm:$0xff] %v2671
        %2704 = vst [vmem:[%s226 + $0x88] sm:$0xff] %v2672
        %2705 = vst [vmem:[%s226 + $0x90] sm:$0xff] %v2673
        %2706 = vst [vmem:[%s226 + $0x98] sm:$0xff] %v2674
        %2707 = vst [vmem:[%s226 + $0xa0] sm:$0xff] %v2675
        %2708 = vst [vmem:[%s226 + $0xa8] sm:$0xff] %v2676
        %2709 = vst [vmem:[%s226 + $0xb0] sm:$0xff] %v2677
        %2710 = vst [vmem:[%s226 + $0xb8] sm:$0xff] %v2678
        %2711 = vst [vmem:[%s226 + $0xc0] sm:$0xff] %v2679
        %2712 = vst [vmem:[%s226 + $0xc8] sm:$0xff] %v2680
        %2713 = vst [vmem:[%s226 + $0xd0] sm:$0xff] %v2681
        %2714 = vst [vmem:[%s226 + $0xd8] sm:$0xff] %v2682
        %2715 = vst [vmem:[%s226 + $0xe0] sm:$0xff] %v2683
        %2716 = vst [vmem:[%s226 + $0xe8] sm:$0xff] %v2684
        %2717 = vst [vmem:[%s226 + $0xf0] sm:$0xff] %v2685
        %2718 = vst [vmem:[%s226 + $0xf8] sm:$0xff] %v2686
        %s2719 = sand.u32 %s120, 1
        %s2720 = scalar_lea.sflag [#allocation4], %s2719
        %s2721 = sand.u32 %s120, 1
        %s2722 = smul.addr %s2721, 256
        %s2723 = scalar_lea.vmem [#allocation7], %s2722
        // Predicated region
        $region41: #{tpu_custom_call.1} parent=31 // pred_check
          %p2724 = pneg %p130
        $region42: #{tpu_custom_call.1} parent=31 // pred_check_branch
          %2726 = sbr.rel (%p2724) target = $region44
        $region43: #{tpu_custom_call.1} parent=31 // pred_region
          %s2727 = smul.u32 16, %s27
          %s2729 = ssub.s32 4096, 4096
          %2730 = vsyncadd %s2720, %s2729
          %s2731 = smul.addr %s2727, 2
          %s2732 = sadd.s32 %s28, %s2731
          %s2733 = smul.addr %s26, 32
          %s2734 = sadd.s32 %s2732, %s2733
          %s2735 = smul.addr %s2734, 128
          %s2736 = scalar_lea.hbm %s3, %s2735
          %s2737 = sshll.u32 %s2723, 4
          %s2738 = int_to_ptr.vmem [resolvable:$true] %s2737
          %2743 = dma.vmem_to_hbm [thread:$0]  %s2738, 4096, %s2736, %s2720, 128, 128, 8
        $region44: #{tpu_custom_call.1} parent=31 // pred_fallthru
          _
      $region32: #{tpu_custom_call.1} parent=5 // pred_fallthru
        _
      %p2744 = scmp.le.s32.totalorder 2, %s16
      // Predicated region
      $region45: #{tpu_custom_call.1} parent=5 // pred_check
        %p2745 = pneg %p2744
      $region46: #{tpu_custom_call.1} parent=5 // pred_check_branch
        %2747 = sbr.rel (%p2745) target = $region48
      $region47: #{tpu_custom_call.1} parent=5 // pred_region
        %s2748 = ssub.s32 %s16, 2
        // Predicated region
        $region49: #{tpu_custom_call.1} parent=47 // pred_check
          %p2749 = pneg %p136
        $region50: #{tpu_custom_call.1} parent=47 // pred_check_branch
          %2751 = sbr.rel (%p2749) target = $region52
        $region51: #{tpu_custom_call.1} parent=47 // pred_region
          %s2752 = sand.u32 %s121, 1
          %s2753 = scalar_lea.sflag [#allocation4], %s2752
          %s2754 = sand.u32 %s121, 1
          %s2755 = smul.addr %s2754, 256
          %s2756 = scalar_lea.vmem [#allocation7], %s2755
          %2757 = dma.done %s2753, 4096
        $region52: #{tpu_custom_call.1} parent=47 // pred_fallthru
          _
      $region48: #{tpu_custom_call.1} parent=5 // pred_fallthru
        _
    $region6: #{tpu_custom_call.1} parent=1 // loop_footer
      %s20 = sadd.s32 1, %s16
    $region7: #{tpu_custom_call.1} parent=1 // loop_footer_branch
      %15 = sbr.rel target = $region3
    $region8: #{tpu_custom_call.1} parent=1 // loop_exit
      _
    %2758 = vsyncpa [#allocation3], 1
    %s2759 = scalar_lea.sflag [#allocation3], 1
    %2760 = vsyncpa %s2759, 1
    %2761 = vsyncpa [#allocation6], 1
    %2762 = vsyncpa [#allocation4], 1
    %s2763 = scalar_lea.sflag [#allocation4], 1
    %2764 = vsyncpa %s2763, 1

// kernel: tpu_custom_call.1
$region0: #{tpu_custom_call.1}
  #allocation0 [shape = 'u32[]', space=smem, size = 0x4, offset = 0x4, fixed_abs, tag = 'smem constant byte address 0x4 - core index']
  #allocation1 [shape = 'u32[144,128]{1,0:T(1,128)}', space=vmem, size = 0x12000, scoped, tag = 'internal scratch']
  %s0 = inlined_call_operand.hbm [shape: f32[2,16,16,128], index: 0, kind: input, shape index: {}]
  %s1 = inlined_call_operand.hbm [shape: bf16[1152,128], index: 1, kind: input, shape index: {}]
  %s2 = inlined_call_operand.vmem [shape: f32[1,128], index: 2, kind: input, shape index: {}]
  %s3 = inlined_call_operand.hbm [shape: f32[2,16,16,128], index: 3, kind: output, shape index: {}]
  %s4 = sld [smem:[#allocation0]]
  $region53: #{tpu_custom_call.1} parent=0
    _
  %s6 = ssub.s32 1, %s4
  %s7 = scalar_select 0, %s6, %s4
  $region1: #{tpu_custom_call.1} parent=0
    #allocation2 [shape = 'u8[262144]{0}', space=vmem, size = 0x40000, scoped, tag = 'input window, operand 0']
    #allocation3 [shape = 's32[2]{0}', space=sflag, size = 0x8, scoped, tag = 'scoped memory for tpu_custom_call.1']
    #allocation4 [shape = 's32[2]{0}', space=sflag, size = 0x8, scoped, tag = 'scoped memory for tpu_custom_call.1']
    #allocation5 [shape = 'u8[294912]{0}', space=vmem, size = 0x48000, scoped, tag = 'input window, operand 1, single buffered']
    #allocation6 [shape = 's32[1]{0}', space=sflag, size = 0x4, scoped, tag = 'scoped memory for tpu_custom_call.1']
    #allocation7 [shape = 'u8[262144]{0}', space=vmem, size = 0x40000, scoped, tag = 'output window, operand 0']
    %8 = vsyncpa [#allocation3], 0
    %s9 = scalar_lea.sflag [#allocation3], 1
    %10 = vsyncpa %s9, 0
    %11 = vsyncpa [#allocation6], 0
    %12 = vsyncpa [#allocation4], 0
    %s13 = scalar_lea.sflag [#allocation4], 1
    %14 = vsyncpa %s13, 0
    loop: start=0, step=1, limit=4
    $region2: #{tpu_custom_call.1} parent=1 // loop_pre_header
      _
    $region3: #{tpu_custom_call.1} parent=1 // loop_header
      %s16 = sphi 0, %s20
      %p17 = scmp.ge.s32.totalorder %s16, 4
      %s23 = sphi 0, %s42
      %s24 = sphi 0, %s38
      %s25 = sphi 0, %s34
      %s26 = sphi 0, %s23
      %s27 = sphi 0, %s24
      %s28 = sphi 0, %s25
      %s29 = sphi 0, %s26
      %s30 = sphi 0, %s27
      %s31 = sphi 0, %s28
      %s45 = sphi 0, %s47
      %s48 = sphi 0, %s45
      %s49 = sphi 0, %s48
      %s65 = sphi 0, %s49
      %s69 = sphi 0, %s69
      %s71 = sphi 0, %s69
      %s72 = sphi 0, %s71
      %s86 = sphi 0, %s72
      %s90 = sphi 0, %s90
      %s92 = sphi 0, %s90
      %s93 = sphi 0, %s92
      %s107 = sphi 0, %s93
      %s117 = sphi 0, %s119
      %s120 = sphi 0, %s117
      %s121 = sphi 0, %s120
      %s137 = sphi 0, %s121
    $region4: #{tpu_custom_call.1} parent=1 // loop_header_branch
      %19 = sbr.rel (%p17) target = $region8
    $region5: #{tpu_custom_call.1} parent=1 // loop_body
      %s21 = ssub.s32 %s16, 1
      %s22 = ssub.s32 %s16, 2
      %s32 = sadd.s32 1, %s25
      %p33 = scmp.ge.s32.totalorder %s32, 1
      %s34 = scalar_select %p33, 0, %s32
      %s35 = sadd.s32 1, %s24
      %s36 = scalar_select %p33, %s35, %s24
      %p37 = scmp.ge.s32.totalorder %s36, 1
      %s38 = scalar_select %p37, 0, %s36
      %s39 = sadd.s32 1, %s23
      %s40 = scalar_select %p37, %s39, %s23
      %p41 = scmp.ge.s32.totalorder %s40, 2
      %s42 = scalar_select %p41, 0, %s40
      %s43 = ssub.s32 %s23, %s42
      %p44 = scmp.eq.s32.totalorder %s43, 0
      %s46 = sadd.s32 %s45, 1
      %s47 = scalar_select %p44, %s45, %s46
      %p50 = pneg %p44
      %p51 = scmp.eq.s32.totalorder %s16, 1
      %p52 = por %p50, %p51
      %p53 = scmp.ne.s32.totalorder %s45, %s48
      %p54 = scmp.eq.s32.totalorder %s16, 0
      %p55 = por %p53, %p54
      %p56 = scmp.ne.s32.totalorder %s45, %s48
      %p57 = scmp.eq.s32.totalorder %s21, 1
      %p58 = por %p56, %p57
      %p59 = scmp.ne.s32.totalorder %s48, %s49
      %p60 = scmp.eq.s32.totalorder %s21, 0
      %p61 = por %p59, %p60
      %p62 = scmp.ne.s32.totalorder %s48, %s49
      %p63 = scmp.eq.s32.totalorder %s22, 1
      %p64 = por %p62, %p63
      %p66 = scmp.ne.s32.totalorder %s49, %s65
      %p67 = scmp.eq.s32.totalorder %s22, 0
      %p68 = por %p66, %p67
      %s70 = sadd.s32 %s69, 1
      %p73 = scmp.eq.s32.totalorder %s16, 1
      %p74 = scmp.ne.s32.totalorder %s69, %s71
      %p75 = scmp.eq.s32.totalorder %s16, 0
      %p76 = por %p74, %p75
      %p77 = scmp.ne.s32.totalorder %s69, %s71
      %p78 = scmp.eq.s32.totalorder %s21, 1
      %p79 = por %p77, %p78
      %p80 = scmp.ne.s32.totalorder %s71, %s72
      %p81 = scmp.eq.s32.totalorder %s21, 0
      %p82 = por %p80, %p81
      %p83 = scmp.ne.s32.totalorder %s71, %s72
      %p84 = scmp.eq.s32.totalorder %s22, 1
      %p85 = por %p83, %p84
      %p87 = scmp.ne.s32.totalorder %s72, %s86
      %p88 = scmp.eq.s32.totalorder %s22, 0
      %p89 = por %p87, %p88
      %s91 = sadd.s32 %s90, 1
      %p94 = scmp.eq.s32.totalorder %s16, 1
      %p95 = scmp.ne.s32.totalorder %s90, %s92
      %p96 = scmp.eq.s32.totalorder %s16, 0
      %p97 = por %p95, %p96
      %p98 = scmp.ne.s32.totalorder %s90, %s92
      %p99 = scmp.eq.s32.totalorder %s21, 1
      %p100 = por %p98, %p99
      %p101 = scmp.ne.s32.totalorder %s92, %s93
      %p102 = scmp.eq.s32.totalorder %s21, 0
      %p103 = por %p101, %p102
      %p104 = scmp.ne.s32.totalorder %s92, %s93
      %p105 = scmp.eq.s32.totalorder %s22, 1
      %p106 = por %p104, %p105
      %p108 = scmp.ne.s32.totalorder %s93, %s107
      %p109 = scmp.eq.s32.totalorder %s22, 0
      %p110 = por %p108, %p109
      %s111 = ssub.s32 %s23, %s42
      %s112 = ssub.s32 %s24, %s38
      %s113 = sor.u32 %s111, %s112
      %s114 = ssub.s32 %s25, %s34
      %s115 = sor.u32 %s113, %s114
      %p116 = scmp.eq.s32.totalorder %s115, 0
      %s118 = sadd.s32 %s117, 1
      %s119 = scalar_select %p116, %s117, %s118
      %p122 = pneg %p116
      %p123 = scmp.eq.s32.totalorder %s16, 1
      %p124 = por %p122, %p123
      %p125 = scmp.ne.s32.totalorder %s117, %s120
      %p126 = scmp.eq.s32.totalorder %s16, 0
      %p127 = por %p125, %p126
      %p128 = scmp.ne.s32.totalorder %s117, %s120
      %p129 = scmp.eq.s32.totalorder %s21, 1
      %p130 = por %p128, %p129
      %p131 = scmp.ne.s32.totalorder %s120, %s121
      %p132 = scmp.eq.s32.totalorder %s21, 0
      %p133 = por %p131, %p132
      %p134 = scmp.ne.s32.totalorder %s120, %s121
      %p135 = scmp.eq.s32.totalorder %s22, 1
      %p136 = por %p134, %p135
      %p138 = scmp.ne.s32.totalorder %s121, %s137
      %p139 = scmp.eq.s32.totalorder %s22, 0
      %p140 = por %p138, %p139
      %p141 = scmp.le.s32.totalorder 1, %s16
      %p142 = scmp.lt.s32.totalorder %s16, 3
      %p143 = pnand %p141, %p142
      %p144 = pneg %p143
      // Predicated region
      $region9: #{tpu_custom_call.1} parent=5 // pred_check
        _
      $region10: #{tpu_custom_call.1} parent=5 // pred_check_branch
        %146 = sbr.rel (%p143) target = $region12
      $region11: #{tpu_custom_call.1} parent=5 // pred_region
        %s147 = ssub.s32 %s16, 1
        // Predicated region
        $region13: #{tpu_custom_call.1} parent=11 // pred_check
          %p148 = pneg %p82
        $region14: #{tpu_custom_call.1} parent=11 // pred_check_branch
          %150 = sbr.rel (%p148) target = $region16
        $region15: #{tpu_custom_call.1} parent=11 // pred_region
          %s152 = ssub.s32 9216, 9216
          %153 = vsyncadd [#allocation6], %s152
          %s154 = sshll.u32 [#allocation5], 4
          %s155 = int_to_ptr.vmem [resolvable:$true] %s154
          %160 = dma.hbm_to_vmem [thread:$0]  %s1, 9216, %s155, [#allocation6], 64, 64, 4
        $region16: #{tpu_custom_call.1} parent=11 // pred_fallthru
          _
        // Predicated region
        $region17: #{tpu_custom_call.1} parent=11 // pred_check
          %p161 = pneg %p103
        $region18: #{tpu_custom_call.1} parent=11 // pred_check_branch
          %163 = sbr.rel (%p161) target = $region20
        $region19: #{tpu_custom_call.1} parent=11 // pred_region
          _
        $region20: #{tpu_custom_call.1} parent=11 // pred_fallthru
          _
      $region12: #{tpu_custom_call.1} parent=5 // pred_fallthru
        _
      %p164 = scmp.lt.s32.totalorder %s16, 2
      // Predicated region
      $region21: #{tpu_custom_call.1} parent=5 // pred_check
        %p165 = pneg %p164
      $region22: #{tpu_custom_call.1} parent=5 // pred_check_branch
        %167 = sbr.rel (%p165) target = $region24
      $region23: #{tpu_custom_call.1} parent=5 // pred_region
        // Predicated region
        $region25: #{tpu_custom_call.1} parent=23 // pred_check
          %p168 = pneg %p55
        $region26: #{tpu_custom_call.1} parent=23 // pred_check_branch
          %170 = sbr.rel (%p168) target = $region28
        $region27: #{tpu_custom_call.1} parent=23 // pred_region
          %s171 = sand.u32 %s45, 1
          %s172 = scalar_lea.sflag [#allocation3], %s171
          %s173 = sand.u32 %s45, 1
          %s174 = smul.addr %s173, 256
          %s175 = scalar_lea.vmem [#allocation2], %s174
          %s177 = ssub.s32 4096, 4096
          %178 = vsyncadd %s172, %s177
          %s179 = smul.addr %s23, 32
          %s180 = smul.addr %s179, 128
          %s181 = scalar_lea.hbm %s0, %s180
          %s182 = sshll.u32 %s175, 4
          %s183 = int_to_ptr.vmem [resolvable:$true] %s182
          %188 = dma.hbm_to_vmem [thread:$0]  %s181, 4096, %s183, %s172, 128, 128, 8
        $region28: #{tpu_custom_call.1} parent=23 // pred_fallthru
          _
      $region24: #{tpu_custom_call.1} parent=5 // pred_fallthru
        _
      %p189 = scmp.le.s32.totalorder 1, %s16
      %p190 = scmp.lt.s32.totalorder %s16, 3
      %p191 = pnand %p189, %p190
      %p192 = pneg %p191
      // Predicated region
      $region29: #{tpu_custom_call.1} parent=5 // pred_check
        _
      $region30: #{tpu_custom_call.1} parent=5 // pred_check_branch
        %194 = sbr.rel (%p191) target = $region32
      $region31: #{tpu_custom_call.1} parent=5 // pred_region
        %s195 = ssub.s32 %s16, 1
        %s196 = sand.u32 %s48, 1
        %s197 = scalar_lea.sflag [#allocation3], %s196
        %s198 = sand.u32 %s48, 1
        %s199 = smul.addr %s198, 256
        %s200 = scalar_lea.vmem [#allocation2], %s199
        // Predicated region
        $region33: #{tpu_custom_call.1} parent=31 // pred_check
          %p201 = pneg %p61
        $region34: #{tpu_custom_call.1} parent=31 // pred_check_branch
          %203 = sbr.rel (%p201) target = $region36
        $region35: #{tpu_custom_call.1} parent=31 // pred_region
          %204 = dma.done %s197, 4096
        $region36: #{tpu_custom_call.1} parent=31 // pred_fallthru
          _
        // Predicated region
        $region37: #{tpu_custom_call.1} parent=31 // pred_check
          %p205 = pneg %p82
        $region38: #{tpu_custom_call.1} parent=31 // pred_check_branch
          %207 = sbr.rel (%p205) target = $region40
        $region39: #{tpu_custom_call.1} parent=31 // pred_region
          %208 = dma.done [#allocation6], 9216
        $region40: #{tpu_custom_call.1} parent=31 // pred_fallthru
          _
        %s209 = sand.u32 %s48, 1
        %s210 = scalar_lea.sflag [#allocation3], %s209
        %s211 = sand.u32 %s48, 1
        %s212 = smul.addr %s211, 256
        %s213 = scalar_lea.vmem [#allocation2], %s212
        %p214 = pneg %p61
        %p215 = pneg %p58
        %p216 = pneg %p82
        %p217 = pneg %p79
        %p218 = pneg %p103
        %p219 = pneg %p100
        %p220 = pneg %p133
        %p221 = pneg %p130
        %s222 = sand.u32 %s120, 1
        %s223 = scalar_lea.sflag [#allocation4], %s222
        %s224 = sand.u32 %s120, 1
        %s225 = smul.addr %s224, 256
        %s226 = scalar_lea.vmem [#allocation7], %s225
        %s227 = smul.u32 16, %s27
        %s229 = smul.u32 %s27, 16
        %p230 = scmp.eq.s32.totalorder %s229, 0
        %s231 = ssub.s32 %s229, 1
        %s232 = scalar_select %p230, 1, %s231
        %s233 = sadd.s32 %s229, 16
        %p234 = scmp.eq.s32.totalorder %s233, 16
        %s235 = scalar_select %p234, 14, %s233
        %s236 = smul.u32 %s232, 16
        %s237 = scalar_lea.vmem %s200, %s236 [#allocation2]
        %v238 = vld [vmem:[%s237] sm:$0xff]
        %v239 = vld [vmem:[%s237 + $0x8] sm:$0xff]
        %s240 = smul.u32 %s229, 16
        %s241 = scalar_lea.vmem %s200, %s240 [#allocation2]
        %v242 = vld [vmem:[%s241] sm:$0xff]
        %v243 = vld [vmem:[%s241 + $0x8] sm:$0xff]
        %v244 = vld [vmem:[%s241 + $0x10] sm:$0xff]
        %v245 = vld [vmem:[%s241 + $0x18] sm:$0xff]
        %v246 = vld [vmem:[%s241 + $0x20] sm:$0xff]
        %v247 = vld [vmem:[%s241 + $0x28] sm:$0xff]
        %v248 = vld [vmem:[%s241 + $0x30] sm:$0xff]
        %v249 = vld [vmem:[%s241 + $0x38] sm:$0xff]
        %v250 = vld [vmem:[%s241 + $0x40] sm:$0xff]
        %v251 = vld [vmem:[%s241 + $0x48] sm:$0xff]
        %v252 = vld [vmem:[%s241 + $0x50] sm:$0xff]
        %v253 = vld [vmem:[%s241 + $0x58] sm:$0xff]
        %v254 = vld [vmem:[%s241 + $0x60] sm:$0xff]
        %v255 = vld [vmem:[%s241 + $0x68] sm:$0xff]
        %v256 = vld [vmem:[%s241 + $0x70] sm:$0xff]
        %v257 = vld [vmem:[%s241 + $0x78] sm:$0xff]
        %v258 = vld [vmem:[%s241 + $0x80] sm:$0xff]
        %v259 = vld [vmem:[%s241 + $0x88] sm:$0xff]
        %v260 = vld [vmem:[%s241 + $0x90] sm:$0xff]
        %v261 = vld [vmem:[%s241 + $0x98] sm:$0xff]
        %v262 = vld [vmem:[%s241 + $0xa0] sm:$0xff]
        %v263 = vld [vmem:[%s241 + $0xa8] sm:$0xff]
        %v264 = vld [vmem:[%s241 + $0xb0] sm:$0xff]
        %v265 = vld [vmem:[%s241 + $0xb8] sm:$0xff]
        %v266 = vld [vmem:[%s241 + $0xc0] sm:$0xff]
        %v267 = vld [vmem:[%s241 + $0xc8] sm:$0xff]
        %v268 = vld [vmem:[%s241 + $0xd0] sm:$0xff]
        %v269 = vld [vmem:[%s241 + $0xd8] sm:$0xff]
        %v270 = vld [vmem:[%s241 + $0xe0] sm:$0xff]
        %v271 = vld [vmem:[%s241 + $0xe8] sm:$0xff]
        %v272 = vld [vmem:[%s241 + $0xf0] sm:$0xff]
        %v273 = vld [vmem:[%s241 + $0xf8] sm:$0xff]
        %s274 = smul.u32 %s235, 16
        %s275 = scalar_lea.vmem %s200, %s274 [#allocation2]
        %v276 = vld [vmem:[%s275] sm:$0xff]
        %v277 = vld [vmem:[%s275 + $0x8] sm:$0xff]
        %v296 = vrot.slane %v238, 1
        %v297 = vrot.slane %v242, 1
        %v298 = vrot.slane %v244, 1
        %v299 = vrot.slane %v246, 1
        %v300 = vrot.slane %v248, 1
        %v301 = vrot.slane %v250, 1
        %v302 = vrot.slane %v252, 1
        %v303 = vrot.slane %v254, 1
        %v304 = vrot.slane %v256, 1
        %v305 = vrot.slane %v258, 1
        %v306 = vrot.slane %v260, 1
        %v307 = vrot.slane %v262, 1
        %v308 = vrot.slane %v264, 1
        %v309 = vrot.slane %v266, 1
        %v310 = vrot.slane %v268, 1
        %v311 = vrot.slane %v270, 1
        %v312 = vrot.slane %v272, 1
        %v313 = vrot.slane %v276, 1
        %vm350 = vcmask 1040384
        %v351 = vrot.slane %v238, 7
        %v352 = vrot.slane %v239, 7
        %v353 = vsel %vm350, %v351, %v352
        %v354 = vrot.slane %v242, 7
        %v355 = vrot.slane %v243, 7
        %v356 = vsel %vm350, %v354, %v355
        %v357 = vrot.slane %v244, 7
        %v358 = vrot.slane %v245, 7
        %v359 = vsel %vm350, %v357, %v358
        %v360 = vrot.slane %v246, 7
        %v361 = vrot.slane %v247, 7
        %v362 = vsel %vm350, %v360, %v361
        %v363 = vrot.slane %v248, 7
        %v364 = vrot.slane %v249, 7
        %v365 = vsel %vm350, %v363, %v364
        %v366 = vrot.slane %v250, 7
        %v367 = vrot.slane %v251, 7
        %v368 = vsel %vm350, %v366, %v367
        %v369 = vrot.slane %v252, 7
        %v370 = vrot.slane %v253, 7
        %v371 = vsel %vm350, %v369, %v370
        %v372 = vrot.slane %v254, 7
        %v373 = vrot.slane %v255, 7
        %v374 = vsel %vm350, %v372, %v373
        %v375 = vrot.slane %v256, 7
        %v376 = vrot.slane %v257, 7
        %v377 = vsel %vm350, %v375, %v376
        %v378 = vrot.slane %v258, 7
        %v379 = vrot.slane %v259, 7
        %v380 = vsel %vm350, %v378, %v379
        %v381 = vrot.slane %v260, 7
        %v382 = vrot.slane %v261, 7
        %v383 = vsel %vm350, %v381, %v382
        %v384 = vrot.slane %v262, 7
        %v385 = vrot.slane %v263, 7
        %v386 = vsel %vm350, %v384, %v385
        %v387 = vrot.slane %v264, 7
        %v388 = vrot.slane %v265, 7
        %v389 = vsel %vm350, %v387, %v388
        %v390 = vrot.slane %v266, 7
        %v391 = vrot.slane %v267, 7
        %v392 = vsel %vm350, %v390, %v391
        %v393 = vrot.slane %v268, 7
        %v394 = vrot.slane %v269, 7
        %v395 = vsel %vm350, %v393, %v394
        %v396 = vrot.slane %v270, 7
        %v397 = vrot.slane %v271, 7
        %v398 = vsel %vm350, %v396, %v397
        %v399 = vrot.slane %v272, 7
        %v400 = vrot.slane %v273, 7
        %v401 = vsel %vm350, %v399, %v400
        %v402 = vrot.slane %v276, 7
        %v403 = vrot.slane %v277, 7
        %v404 = vsel %vm350, %v402, %v403
        %v441 = vsel %vm350, %v296, %v351
        %v442 = vsel %vm350, %v297, %v354
        %v443 = vsel %vm350, %v298, %v357
        %v444 = vsel %vm350, %v299, %v360
        %v445 = vsel %vm350, %v300, %v363
        %v446 = vsel %vm350, %v301, %v366
        %v447 = vsel %vm350, %v302, %v369
        %v448 = vsel %vm350, %v303, %v372
        %v449 = vsel %vm350, %v304, %v375
        %v450 = vsel %vm350, %v305, %v378
        %v451 = vsel %vm350, %v306, %v381
        %v452 = vsel %vm350, %v307, %v384
        %v453 = vsel %vm350, %v308, %v387
        %v454 = vsel %vm350, %v309, %v390
        %v455 = vsel %vm350, %v310, %v393
        %v456 = vsel %vm350, %v311, %v396
        %v457 = vsel %vm350, %v312, %v399
        %v458 = vsel %vm350, %v313, %v402
        %vm459 = vcmask 1046528
        %v460 = vrot.slane %v239, 1
        %v461 = vsel %vm459, %v296, %v460
        %v462 = vrot.slane %v243, 1
        %v463 = vsel %vm459, %v297, %v462
        %v464 = vrot.slane %v245, 1
        %v465 = vsel %vm459, %v298, %v464
        %v466 = vrot.slane %v247, 1
        %v467 = vsel %vm459, %v299, %v466
        %v468 = vrot.slane %v249, 1
        %v469 = vsel %vm459, %v300, %v468
        %v470 = vrot.slane %v251, 1
        %v471 = vsel %vm459, %v301, %v470
        %v472 = vrot.slane %v253, 1
        %v473 = vsel %vm459, %v302, %v472
        %v474 = vrot.slane %v255, 1
        %v475 = vsel %vm459, %v303, %v474
        %v476 = vrot.slane %v257, 1
        %v477 = vsel %vm459, %v304, %v476
        %v478 = vrot.slane %v259, 1
        %v479 = vsel %vm459, %v305, %v478
        %v480 = vrot.slane %v261, 1
        %v481 = vsel %vm459, %v306, %v480
        %v482 = vrot.slane %v263, 1
        %v483 = vsel %vm459, %v307, %v482
        %v484 = vrot.slane %v265, 1
        %v485 = vsel %vm459, %v308, %v484
        %v486 = vrot.slane %v267, 1
        %v487 = vsel %vm459, %v309, %v486
        %v488 = vrot.slane %v269, 1
        %v489 = vsel %vm459, %v310, %v488
        %v490 = vrot.slane %v271, 1
        %v491 = vsel %vm459, %v311, %v490
        %v492 = vrot.slane %v273, 1
        %v493 = vsel %vm459, %v312, %v492
        %v494 = vrot.slane %v277, 1
        %v495 = vsel %vm459, %v313, %v494
        %v550 = vsel %vm459, %v460, %v352
        %v551 = vsel %vm459, %v462, %v355
        %v552 = vsel %vm459, %v464, %v358
        %v553 = vsel %vm459, %v466, %v361
        %v554 = vsel %vm459, %v468, %v364
        %v555 = vsel %vm459, %v470, %v367
        %v556 = vsel %vm459, %v472, %v370
        %v557 = vsel %vm459, %v474, %v373
        %v558 = vsel %vm459, %v476, %v376
        %v559 = vsel %vm459, %v478, %v379
        %v560 = vsel %vm459, %v480, %v382
        %v561 = vsel %vm459, %v482, %v385
        %v562 = vsel %vm459, %v484, %v388
        %v563 = vsel %vm459, %v486, %v391
        %v564 = vsel %vm459, %v488, %v394
        %v565 = vsel %vm459, %v490, %v397
        %v566 = vsel %vm459, %v492, %v400
        %v567 = vsel %vm459, %v494, %v403
        %v568 = vpack.c.bf16 %v353, %v441
        %v569 = vpack.c.bf16 %v356, %v442
        %v570 = vpack.c.bf16 %v359, %v443
        %v571 = vpack.c.bf16 %v362, %v444
        %v572 = vpack.c.bf16 %v365, %v445
        %v573 = vpack.c.bf16 %v368, %v446
        %v574 = vpack.c.bf16 %v371, %v447
        %v575 = vpack.c.bf16 %v374, %v448
        %v576 = vpack.c.bf16 %v377, %v449
        %v577 = vpack.c.bf16 %v380, %v450
        %v578 = vpack.c.bf16 %v383, %v451
        %v579 = vpack.c.bf16 %v386, %v452
        %v580 = vpack.c.bf16 %v389, %v453
        %v581 = vpack.c.bf16 %v392, %v454
        %v582 = vpack.c.bf16 %v395, %v455
        %v583 = vpack.c.bf16 %v398, %v456
        %v584 = vpack.c.bf16 %v401, %v457
        %v585 = vpack.c.bf16 %v404, %v458
        %v586 = vpack.c.bf16 %v239, %v238
        %v587 = vpack.c.bf16 %v243, %v242
        %v588 = vpack.c.bf16 %v245, %v244
        %v589 = vpack.c.bf16 %v247, %v246
        %v590 = vpack.c.bf16 %v249, %v248
        %v591 = vpack.c.bf16 %v251, %v250
        %v592 = vpack.c.bf16 %v253, %v252
        %v593 = vpack.c.bf16 %v255, %v254
        %v594 = vpack.c.bf16 %v257, %v256
        %v595 = vpack.c.bf16 %v259, %v258
        %v596 = vpack.c.bf16 %v261, %v260
        %v597 = vpack.c.bf16 %v263, %v262
        %v598 = vpack.c.bf16 %v265, %v264
        %v599 = vpack.c.bf16 %v267, %v266
        %v600 = vpack.c.bf16 %v269, %v268
        %v601 = vpack.c.bf16 %v271, %v270
        %v602 = vpack.c.bf16 %v273, %v272
        %v603 = vpack.c.bf16 %v277, %v276
        %v604 = vpack.c.bf16 %v550, %v461
        %v605 = vpack.c.bf16 %v551, %v463
        %v606 = vpack.c.bf16 %v552, %v465
        %v607 = vpack.c.bf16 %v553, %v467
        %v608 = vpack.c.bf16 %v554, %v469
        %v609 = vpack.c.bf16 %v555, %v471
        %v610 = vpack.c.bf16 %v556, %v473
        %v611 = vpack.c.bf16 %v557, %v475
        %v612 = vpack.c.bf16 %v558, %v477
        %v613 = vpack.c.bf16 %v559, %v479
        %v614 = vpack.c.bf16 %v560, %v481
        %v615 = vpack.c.bf16 %v561, %v483
        %v616 = vpack.c.bf16 %v562, %v485
        %v617 = vpack.c.bf16 %v563, %v487
        %v618 = vpack.c.bf16 %v564, %v489
        %v619 = vpack.c.bf16 %v565, %v491
        %v620 = vpack.c.bf16 %v566, %v493
        %v621 = vpack.c.bf16 %v567, %v495
        %v622 = vld [vmem:[#allocation5] sm:$0xf]
        %v623 = vld [vmem:[#allocation5 + $0x4] sm:$0xf]
        %v624 = vld [vmem:[#allocation5 + $0x8] sm:$0xf]
        %v625 = vld [vmem:[#allocation5 + $0xc] sm:$0xf]
        %v626 = vld [vmem:[#allocation5 + $0x10] sm:$0xf]
        %v627 = vld [vmem:[#allocation5 + $0x14] sm:$0xf]
        %v628 = vld [vmem:[#allocation5 + $0x18] sm:$0xf]
        %v629 = vld [vmem:[#allocation5 + $0x1c] sm:$0xf]
        %v630 = vld [vmem:[#allocation5 + $0x20] sm:$0xf]
        %v631 = vld [vmem:[#allocation5 + $0x24] sm:$0xf]
        %v632 = vld [vmem:[#allocation5 + $0x28] sm:$0xf]
        %v633 = vld [vmem:[#allocation5 + $0x2c] sm:$0xf]
        %v634 = vld [vmem:[#allocation5 + $0x30] sm:$0xf]
        %v635 = vld [vmem:[#allocation5 + $0x34] sm:$0xf]
        %v636 = vld [vmem:[#allocation5 + $0x38] sm:$0xf]
        %v637 = vld [vmem:[#allocation5 + $0x3c] sm:$0xf]
        %v638 = vld [vmem:[#allocation5 + $0x40] sm:$0xf]
        %v639 = vld [vmem:[#allocation5 + $0x44] sm:$0xf]
        %v640 = vld [vmem:[#allocation5 + $0x48] sm:$0xf]
        %v641 = vld [vmem:[#allocation5 + $0x4c] sm:$0xf]
        %v642 = vld [vmem:[#allocation5 + $0x50] sm:$0xf]
        %v643 = vld [vmem:[#allocation5 + $0x54] sm:$0xf]
        %v644 = vld [vmem:[#allocation5 + $0x58] sm:$0xf]
        %v645 = vld [vmem:[#allocation5 + $0x5c] sm:$0xf]
        %v646 = vld [vmem:[#allocation5 + $0x60] sm:$0xf]
        %v647 = vld [vmem:[#allocation5 + $0x64] sm:$0xf]
        %v648 = vld [vmem:[#allocation5 + $0x68] sm:$0xf]
        %v649 = vld [vmem:[#allocation5 + $0x6c] sm:$0xf]
        %v650 = vld [vmem:[#allocation5 + $0x70] sm:$0xf]
        %v651 = vld [vmem:[#allocation5 + $0x74] sm:$0xf]
        %v652 = vld [vmem:[#allocation5 + $0x78] sm:$0xf]
        %v653 = vld [vmem:[#allocation5 + $0x7c] sm:$0xf]
        %v654 = vld [vmem:[#allocation5 + $0x80] sm:$0xf]
        %v655 = vld [vmem:[#allocation5 + $0x84] sm:$0xf]
        %v656 = vld [vmem:[#allocation5 + $0x88] sm:$0xf]
        %v657 = vld [vmem:[#allocation5 + $0x8c] sm:$0xf]
        %v658 = vld [vmem:[#allocation5 + $0x90] sm:$0xf]
        %v659 = vld [vmem:[#allocation5 + $0x94] sm:$0xf]
        %v660 = vld [vmem:[#allocation5 + $0x98] sm:$0xf]
        %v661 = vld [vmem:[#allocation5 + $0x9c] sm:$0xf]
        %v662 = vld [vmem:[#allocation5 + $0xa0] sm:$0xf]
        %v663 = vld [vmem:[#allocation5 + $0xa4] sm:$0xf]
        %v664 = vld [vmem:[#allocation5 + $0xa8] sm:$0xf]
        %v665 = vld [vmem:[#allocation5 + $0xac] sm:$0xf]
        %v666 = vld [vmem:[#allocation5 + $0xb0] sm:$0xf]
        %v667 = vld [vmem:[#allocation5 + $0xb4] sm:$0xf]
        %v668 = vld [vmem:[#allocation5 + $0xb8] sm:$0xf]
        %v669 = vld [vmem:[#allocation5 + $0xbc] sm:$0xf]
        %v670 = vld [vmem:[#allocation5 + $0xc0] sm:$0xf]
        %v671 = vld [vmem:[#allocation5 + $0xc4] sm:$0xf]
        %v672 = vld [vmem:[#allocation5 + $0xc8] sm:$0xf]
        %v673 = vld [vmem:[#allocation5 + $0xcc] sm:$0xf]
        %v674 = vld [vmem:[#allocation5 + $0xd0] sm:$0xf]
        %v675 = vld [vmem:[#allocation5 + $0xd4] sm:$0xf]
        %v676 = vld [vmem:[#allocation5 + $0xd8] sm:$0xf]
        %v677 = vld [vmem:[#allocation5 + $0xdc] sm:$0xf]
        %v678 = vld [vmem:[#allocation5 + $0xe0] sm:$0xf]
        %v679 = vld [vmem:[#allocation5 + $0xe4] sm:$0xf]
        %v680 = vld [vmem:[#allocation5 + $0xe8] sm:$0xf]
        %v681 = vld [vmem:[#allocation5 + $0xec] sm:$0xf]
        %v682 = vld [vmem:[#allocation5 + $0xf0] sm:$0xf]
        %v683 = vld [vmem:[#allocation5 + $0xf4] sm:$0xf]
        %v684 = vld [vmem:[#allocation5 + $0xf8] sm:$0xf]
        %v685 = vld [vmem:[#allocation5 + $0xfc] sm:$0xf]
        %v686 = vld [vmem:[#allocation5 + $0x100] sm:$0xf]
        %v687 = vld [vmem:[#allocation5 + $0x104] sm:$0xf]
        %v688 = vld [vmem:[#allocation5 + $0x108] sm:$0xf]
        %v689 = vld [vmem:[#allocation5 + $0x10c] sm:$0xf]
        %v690 = vld [vmem:[#allocation5 + $0x110] sm:$0xf]
        %v691 = vld [vmem:[#allocation5 + $0x114] sm:$0xf]
        %v692 = vld [vmem:[#allocation5 + $0x118] sm:$0xf]
        %v693 = vld [vmem:[#allocation5 + $0x11c] sm:$0xf]
        %v694 = vld [vmem:[#allocation5 + $0x120] sm:$0xf]
        %v695 = vld [vmem:[#allocation5 + $0x124] sm:$0xf]
        %v696 = vld [vmem:[#allocation5 + $0x128] sm:$0xf]
        %v697 = vld [vmem:[#allocation5 + $0x12c] sm:$0xf]
        %v698 = vld [vmem:[#allocation5 + $0x130] sm:$0xf]
        %v699 = vld [vmem:[#allocation5 + $0x134] sm:$0xf]
        %v700 = vld [vmem:[#allocation5 + $0x138] sm:$0xf]
        %v701 = vld [vmem:[#allocation5 + $0x13c] sm:$0xf]
        %v702 = vld [vmem:[#allocation5 + $0x140] sm:$0xf]
        %v703 = vld [vmem:[#allocation5 + $0x144] sm:$0xf]
        %v704 = vld [vmem:[#allocation5 + $0x148] sm:$0xf]
        %v705 = vld [vmem:[#allocation5 + $0x14c] sm:$0xf]
        %v706 = vld [vmem:[#allocation5 + $0x150] sm:$0xf]
        %v707 = vld [vmem:[#allocation5 + $0x154] sm:$0xf]
        %v708 = vld [vmem:[#allocation5 + $0x158] sm:$0xf]
        %v709 = vld [vmem:[#allocation5 + $0x15c] sm:$0xf]
        %v710 = vld [vmem:[#allocation5 + $0x160] sm:$0xf]
        %v711 = vld [vmem:[#allocation5 + $0x164] sm:$0xf]
        %v712 = vld [vmem:[#allocation5 + $0x168] sm:$0xf]
        %v713 = vld [vmem:[#allocation5 + $0x16c] sm:$0xf]
        %v714 = vld [vmem:[#allocation5 + $0x170] sm:$0xf]
        %v715 = vld [vmem:[#allocation5 + $0x174] sm:$0xf]
        %v716 = vld [vmem:[#allocation5 + $0x178] sm:$0xf]
        %v717 = vld [vmem:[#allocation5 + $0x17c] sm:$0xf]
        %v718 = vld [vmem:[#allocation5 + $0x180] sm:$0xf]
        %v719 = vld [vmem:[#allocation5 + $0x184] sm:$0xf]
        %v720 = vld [vmem:[#allocation5 + $0x188] sm:$0xf]
        %v721 = vld [vmem:[#allocation5 + $0x18c] sm:$0xf]
        %v722 = vld [vmem:[#allocation5 + $0x190] sm:$0xf]
        %v723 = vld [vmem:[#allocation5 + $0x194] sm:$0xf]
        %v724 = vld [vmem:[#allocation5 + $0x198] sm:$0xf]
        %v725 = vld [vmem:[#allocation5 + $0x19c] sm:$0xf]
        %v726 = vld [vmem:[#allocation5 + $0x1a0] sm:$0xf]
        %v727 = vld [vmem:[#allocation5 + $0x1a4] sm:$0xf]
        %v728 = vld [vmem:[#allocation5 + $0x1a8] sm:$0xf]
        %v729 = vld [vmem:[#allocation5 + $0x1ac] sm:$0xf]
        %v730 = vld [vmem:[#allocation5 + $0x1b0] sm:$0xf]
        %v731 = vld [vmem:[#allocation5 + $0x1b4] sm:$0xf]
        %v732 = vld [vmem:[#allocation5 + $0x1b8] sm:$0xf]
        %v733 = vld [vmem:[#allocation5 + $0x1bc] sm:$0xf]
        %v734 = vld [vmem:[#allocation5 + $0x1c0] sm:$0xf]
        %v735 = vld [vmem:[#allocation5 + $0x1c4] sm:$0xf]
        %v736 = vld [vmem:[#allocation5 + $0x1c8] sm:$0xf]
        %v737 = vld [vmem:[#allocation5 + $0x1cc] sm:$0xf]
        %v738 = vld [vmem:[#allocation5 + $0x1d0] sm:$0xf]
        %v739 = vld [vmem:[#allocation5 + $0x1d4] sm:$0xf]
        %v740 = vld [vmem:[#allocation5 + $0x1d8] sm:$0xf]
        %v741 = vld [vmem:[#allocation5 + $0x1dc] sm:$0xf]
        %v742 = vld [vmem:[#allocation5 + $0x1e0] sm:$0xf]
        %v743 = vld [vmem:[#allocation5 + $0x1e4] sm:$0xf]
        %v744 = vld [vmem:[#allocation5 + $0x1e8] sm:$0xf]
        %v745 = vld [vmem:[#allocation5 + $0x1ec] sm:$0xf]
        %v746 = vld [vmem:[#allocation5 + $0x1f0] sm:$0xf]
        %v747 = vld [vmem:[#allocation5 + $0x1f4] sm:$0xf]
        %v748 = vld [vmem:[#allocation5 + $0x1f8] sm:$0xf]
        %v749 = vld [vmem:[#allocation5 + $0x1fc] sm:$0xf]
        %v750 = vld [vmem:[#allocation5 + $0x200] sm:$0xf]
        %v751 = vld [vmem:[#allocation5 + $0x204] sm:$0xf]
        %v752 = vld [vmem:[#allocation5 + $0x208] sm:$0xf]
        %v753 = vld [vmem:[#allocation5 + $0x20c] sm:$0xf]
        %v754 = vld [vmem:[#allocation5 + $0x210] sm:$0xf]
        %v755 = vld [vmem:[#allocation5 + $0x214] sm:$0xf]
        %v756 = vld [vmem:[#allocation5 + $0x218] sm:$0xf]
        %v757 = vld [vmem:[#allocation5 + $0x21c] sm:$0xf]
        %v758 = vld [vmem:[#allocation5 + $0x220] sm:$0xf]
        %v759 = vld [vmem:[#allocation5 + $0x224] sm:$0xf]
        %v760 = vld [vmem:[#allocation5 + $0x228] sm:$0xf]
        %v761 = vld [vmem:[#allocation5 + $0x22c] sm:$0xf]
        %v762 = vld [vmem:[#allocation5 + $0x230] sm:$0xf]
        %v763 = vld [vmem:[#allocation5 + $0x234] sm:$0xf]
        %v764 = vld [vmem:[#allocation5 + $0x238] sm:$0xf]
        %v765 = vld [vmem:[#allocation5 + $0x23c] sm:$0xf]
        %v766 = vld [vmem:[%s2] sm:$0x1]
        %v911 = vunpack.c.l.b16 %v622
        %v912 = vunpack.c.l.b16 %v623
        %v913 = vunpack.c.l.b16 %v624
        %v914 = vunpack.c.l.b16 %v625
        %v915 = vunpack.c.l.b16 %v626
        %v916 = vunpack.c.l.b16 %v627
        %v917 = vunpack.c.l.b16 %v628
        %v918 = vunpack.c.l.b16 %v629
        %v919 = vunpack.c.l.b16 %v630
        %v920 = vunpack.c.l.b16 %v631
        %v921 = vunpack.c.l.b16 %v632
        %v922 = vunpack.c.l.b16 %v633
        %v923 = vunpack.c.l.b16 %v634
        %v924 = vunpack.c.l.b16 %v635
        %v925 = vunpack.c.l.b16 %v636
        %v926 = vunpack.c.l.b16 %v637
        %v927 = vunpack.c.l.b16 %v638
        %v928 = vunpack.c.l.b16 %v639
        %v929 = vunpack.c.l.b16 %v640
        %v930 = vunpack.c.l.b16 %v641
        %v931 = vunpack.c.l.b16 %v642
        %v932 = vunpack.c.l.b16 %v643
        %v933 = vunpack.c.l.b16 %v644
        %v934 = vunpack.c.l.b16 %v645
        %v935 = vunpack.c.l.b16 %v646
        %v936 = vunpack.c.l.b16 %v647
        %v937 = vunpack.c.l.b16 %v648
        %v938 = vunpack.c.l.b16 %v649
        %v939 = vunpack.c.l.b16 %v650
        %v940 = vunpack.c.l.b16 %v651
        %v941 = vunpack.c.l.b16 %v652
        %v942 = vunpack.c.l.b16 %v653
        %v943 = vunpack.c.l.b16 %v654
        %v944 = vunpack.c.l.b16 %v655
        %v945 = vunpack.c.l.b16 %v656
        %v946 = vunpack.c.l.b16 %v657
        %v947 = vunpack.c.l.b16 %v658
        %v948 = vunpack.c.l.b16 %v659
        %v949 = vunpack.c.l.b16 %v660
        %v950 = vunpack.c.l.b16 %v661
        %v951 = vunpack.c.l.b16 %v662
        %v952 = vunpack.c.l.b16 %v663
        %v953 = vunpack.c.l.b16 %v664
        %v954 = vunpack.c.l.b16 %v665
        %v955 = vunpack.c.l.b16 %v666
        %v956 = vunpack.c.l.b16 %v667
        %v957 = vunpack.c.l.b16 %v668
        %v958 = vunpack.c.l.b16 %v669
        %v959 = vunpack.c.l.b16 %v670
        %v960 = vunpack.c.l.b16 %v671
        %v961 = vunpack.c.l.b16 %v672
        %v962 = vunpack.c.l.b16 %v673
        %v963 = vunpack.c.l.b16 %v674
        %v964 = vunpack.c.l.b16 %v675
        %v965 = vunpack.c.l.b16 %v676
        %v966 = vunpack.c.l.b16 %v677
        %v967 = vunpack.c.l.b16 %v678
        %v968 = vunpack.c.l.b16 %v679
        %v969 = vunpack.c.l.b16 %v680
        %v970 = vunpack.c.l.b16 %v681
        %v971 = vunpack.c.l.b16 %v682
        %v972 = vunpack.c.l.b16 %v683
        %v973 = vunpack.c.l.b16 %v684
        %v974 = vunpack.c.l.b16 %v685
        %v975 = vunpack.c.l.b16 %v686
        %v976 = vunpack.c.l.b16 %v687
        %v977 = vunpack.c.l.b16 %v688
        %v978 = vunpack.c.l.b16 %v689
        %v979 = vunpack.c.l.b16 %v690
        %v980 = vunpack.c.l.b16 %v691
        %v981 = vunpack.c.l.b16 %v692
        %v982 = vunpack.c.l.b16 %v693
        %v983 = vunpack.c.l.b16 %v694
        %v984 = vunpack.c.l.b16 %v695
        %v985 = vunpack.c.l.b16 %v696
        %v986 = vunpack.c.l.b16 %v697
        %v987 = vunpack.c.l.b16 %v698
        %v988 = vunpack.c.l.b16 %v699
        %v989 = vunpack.c.l.b16 %v700
        %v990 = vunpack.c.l.b16 %v701
        %v991 = vunpack.c.l.b16 %v702
        %v992 = vunpack.c.l.b16 %v703
        %v993 = vunpack.c.l.b16 %v704
        %v994 = vunpack.c.l.b16 %v705
        %v995 = vunpack.c.l.b16 %v706
        %v996 = vunpack.c.l.b16 %v707
        %v997 = vunpack.c.l.b16 %v708
        %v998 = vunpack.c.l.b16 %v709
        %v999 = vunpack.c.l.b16 %v710
        %v1000 = vunpack.c.l.b16 %v711
        %v1001 = vunpack.c.l.b16 %v712
        %v1002 = vunpack.c.l.b16 %v713
        %v1003 = vunpack.c.l.b16 %v714
        %v1004 = vunpack.c.l.b16 %v715
        %v1005 = vunpack.c.l.b16 %v716
        %v1006 = vunpack.c.l.b16 %v717
        %v1007 = vunpack.c.l.b16 %v718
        %v1008 = vunpack.c.l.b16 %v719
        %v1009 = vunpack.c.l.b16 %v720
        %v1010 = vunpack.c.l.b16 %v721
        %v1011 = vunpack.c.l.b16 %v722
        %v1012 = vunpack.c.l.b16 %v723
        %v1013 = vunpack.c.l.b16 %v724
        %v1014 = vunpack.c.l.b16 %v725
        %v1015 = vunpack.c.l.b16 %v726
        %v1016 = vunpack.c.l.b16 %v727
        %v1017 = vunpack.c.l.b16 %v728
        %v1018 = vunpack.c.l.b16 %v729
        %v1019 = vunpack.c.l.b16 %v730
        %v1020 = vunpack.c.l.b16 %v731
        %v1021 = vunpack.c.l.b16 %v732
        %v1022 = vunpack.c.l.b16 %v733
        %v1023 = vunpack.c.l.b16 %v734
        %v1024 = vunpack.c.l.b16 %v735
        %v1025 = vunpack.c.l.b16 %v736
        %v1026 = vunpack.c.l.b16 %v737
        %v1027 = vunpack.c.l.b16 %v738
        %v1028 = vunpack.c.l.b16 %v739
        %v1029 = vunpack.c.l.b16 %v740
        %v1030 = vunpack.c.l.b16 %v741
        %v1031 = vunpack.c.l.b16 %v742
        %v1032 = vunpack.c.l.b16 %v743
        %v1033 = vunpack.c.l.b16 %v744
        %v1034 = vunpack.c.l.b16 %v745
        %v1035 = vunpack.c.l.b16 %v746
        %v1036 = vunpack.c.l.b16 %v747
        %v1037 = vunpack.c.l.b16 %v748
        %v1038 = vunpack.c.l.b16 %v749
        %v1039 = vunpack.c.l.b16 %v750
        %v1040 = vunpack.c.l.b16 %v751
        %v1041 = vunpack.c.l.b16 %v752
        %v1042 = vunpack.c.l.b16 %v753
        %v1043 = vunpack.c.l.b16 %v754
        %v1044 = vunpack.c.l.b16 %v755
        %v1045 = vunpack.c.l.b16 %v756
        %v1046 = vunpack.c.l.b16 %v757
        %v1047 = vunpack.c.l.b16 %v758
        %v1048 = vunpack.c.l.b16 %v759
        %v1049 = vunpack.c.l.b16 %v760
        %v1050 = vunpack.c.l.b16 %v761
        %v1051 = vunpack.c.l.b16 %v762
        %v1052 = vunpack.c.l.b16 %v763
        %v1053 = vunpack.c.l.b16 %v764
        %v1054 = vunpack.c.l.b16 %v765
        %v1055 = vpack.c.b16 %v912, %v911
        %v1056 = vpack.c.b16 %v914, %v913
        %v1057 = vpack.c.b16 %v916, %v915
        %v1058 = vpack.c.b16 %v918, %v917
        %v1059 = vpack.c.b16 %v920, %v919
        %v1060 = vpack.c.b16 %v922, %v921
        %v1061 = vpack.c.b16 %v924, %v923
        %v1062 = vpack.c.b16 %v926, %v925
        %v1063 = vpack.c.b16 %v928, %v927
        %v1064 = vpack.c.b16 %v930, %v929
        %v1065 = vpack.c.b16 %v932, %v931
        %v1066 = vpack.c.b16 %v934, %v933
        %v1067 = vpack.c.b16 %v936, %v935
        %v1068 = vpack.c.b16 %v938, %v937
        %v1069 = vpack.c.b16 %v940, %v939
        %v1070 = vpack.c.b16 %v942, %v941
        %v1071 = vpack.c.b16 %v944, %v943
        %v1072 = vpack.c.b16 %v946, %v945
        %v1073 = vpack.c.b16 %v948, %v947
        %v1074 = vpack.c.b16 %v950, %v949
        %v1075 = vpack.c.b16 %v952, %v951
        %v1076 = vpack.c.b16 %v954, %v953
        %v1077 = vpack.c.b16 %v956, %v955
        %v1078 = vpack.c.b16 %v958, %v957
        %v1079 = vpack.c.b16 %v960, %v959
        %v1080 = vpack.c.b16 %v962, %v961
        %v1081 = vpack.c.b16 %v964, %v963
        %v1082 = vpack.c.b16 %v966, %v965
        %v1083 = vpack.c.b16 %v968, %v967
        %v1084 = vpack.c.b16 %v970, %v969
        %v1085 = vpack.c.b16 %v972, %v971
        %v1086 = vpack.c.b16 %v974, %v973
        %v1087 = vpack.c.b16 %v976, %v975
        %v1088 = vpack.c.b16 %v978, %v977
        %v1089 = vpack.c.b16 %v980, %v979
        %v1090 = vpack.c.b16 %v982, %v981
        %v1091 = vpack.c.b16 %v984, %v983
        %v1092 = vpack.c.b16 %v986, %v985
        %v1093 = vpack.c.b16 %v988, %v987
        %v1094 = vpack.c.b16 %v990, %v989
        %v1095 = vpack.c.b16 %v992, %v991
        %v1096 = vpack.c.b16 %v994, %v993
        %v1097 = vpack.c.b16 %v996, %v995
        %v1098 = vpack.c.b16 %v998, %v997
        %v1099 = vpack.c.b16 %v1000, %v999
        %v1100 = vpack.c.b16 %v1002, %v1001
        %v1101 = vpack.c.b16 %v1004, %v1003
        %v1102 = vpack.c.b16 %v1006, %v1005
        %v1103 = vpack.c.b16 %v1008, %v1007
        %v1104 = vpack.c.b16 %v1010, %v1009
        %v1105 = vpack.c.b16 %v1012, %v1011
        %v1106 = vpack.c.b16 %v1014, %v1013
        %v1107 = vpack.c.b16 %v1016, %v1015
        %v1108 = vpack.c.b16 %v1018, %v1017
        %v1109 = vpack.c.b16 %v1020, %v1019
        %v1110 = vpack.c.b16 %v1022, %v1021
        %v1111 = vpack.c.b16 %v1024, %v1023
        %v1112 = vpack.c.b16 %v1026, %v1025
        %v1113 = vpack.c.b16 %v1028, %v1027
        %v1114 = vpack.c.b16 %v1030, %v1029
        %v1115 = vpack.c.b16 %v1032, %v1031
        %v1116 = vpack.c.b16 %v1034, %v1033
        %v1117 = vpack.c.b16 %v1036, %v1035
        %v1118 = vpack.c.b16 %v1038, %v1037
        %v1119 = vpack.c.b16 %v1040, %v1039
        %v1120 = vpack.c.b16 %v1042, %v1041
        %v1121 = vpack.c.b16 %v1044, %v1043
        %v1122 = vpack.c.b16 %v1046, %v1045
        %v1123 = vpack.c.b16 %v1048, %v1047
        %v1124 = vpack.c.b16 %v1050, %v1049
        %v1125 = vpack.c.b16 %v1052, %v1051
        %v1126 = vpack.c.b16 %v1054, %v1053
        %1199 = vmatprep.subr.bf16.mxu0 0
        %1200 = vmatpush1.bf16.msra.mxu0 %v1062
        %1201 = vmatprep.subr.bf16.mxu0 0
        %1202 = vmatpush1.bf16.msra.mxu0 %v1061
        %1203 = vmatprep.subr.bf16.mxu0 0
        %1204 = vmatpush1.bf16.msra.mxu0 %v1060
        %1205 = vmatprep.subr.bf16.mxu0 0
        %1206 = vmatpush1.bf16.msra.mxu0 %v1059
        %1207 = vmatprep.subr.bf16.mxu0 0
        %1208 = vmatpush1.bf16.msra.mxu0 %v1058
        %1209 = vmatprep.subr.bf16.mxu0 0
        %1210 = vmatpush1.bf16.msra.mxu0 %v1057
        %1211 = vmatprep.subr.bf16.mxu0 0
        %1212 = vmatpush1.bf16.msra.mxu0 %v1056
        %1213 = vmatprep.subr.bf16.mxu0 0
        %1214 = vmatpush1.bf16.msra.mxu0 %v1055
        %1215 = vmatprep.subr.bf16.mxu0 0
        %1216 = vmatpush2.bf16.msra.mxu0 %v1070
        %1217 = vmatprep.subr.bf16.mxu0 0
        %1218 = vmatpush2.bf16.msra.mxu0 %v1069
        %1219 = vmatprep.subr.bf16.mxu0 0
        %1220 = vmatpush2.bf16.msra.mxu0 %v1068
        %1221 = vmatprep.subr.bf16.mxu0 0
        %1222 = vmatpush2.bf16.msra.mxu0 %v1067
        %1223 = vmatprep.subr.bf16.mxu0 0
        %1224 = vmatpush2.bf16.msra.mxu0 %v1066
        %1225 = vmatprep.subr.bf16.mxu0 0
        %1226 = vmatpush2.bf16.msra.mxu0 %v1065
        %1227 = vmatprep.subr.bf16.mxu0 0
        %1228 = vmatpush2.bf16.msra.mxu0 %v1064
        %1229 = vmatprep.subr.bf16.mxu0 0
        %1230 = vmatpush2.bf16.msra.mxu0 %v1063
        %1231 = vmatprep.mubr.bf16.mxu0 %v586
        %1232 = vmatmul.mubr.bf16.gmra.mxu0 %v568
        %v1233 = vpop.f32.mrf.mxu0
        %v1234 = vadd.f32 0.0, %v1233
        %v1235 = vpop.f32.mrf.mxu0
        %v1236 = vpop.f32.mrf.mxu0
        %v1237 = vadd.f32 0.0, %v1236
        %v1238 = vpop.f32.mrf.mxu0
        %1239 = vmatprep.mubr.bf16.mxu0 %v587
        %1240 = vmatmul.mubr.bf16.gmra.mxu0 %v569
        %v1241 = vpop.f32.mrf.mxu0
        %v1242 = vadd.f32 0.0, %v1241
        %v1243 = vpop.f32.mrf.mxu0
        %v1244 = vpop.f32.mrf.mxu0
        %v1245 = vadd.f32 0.0, %v1244
        %v1246 = vpop.f32.mrf.mxu0
        %1247 = vmatprep.mubr.bf16.mxu0 %v588
        %1248 = vmatmul.mubr.bf16.gmra.mxu0 %v570
        %v1249 = vpop.f32.mrf.mxu0
        %v1250 = vadd.f32 0.0, %v1249
        %v1251 = vpop.f32.mrf.mxu0
        %v1252 = vpop.f32.mrf.mxu0
        %v1253 = vadd.f32 0.0, %v1252
        %v1254 = vpop.f32.mrf.mxu0
        %1255 = vmatprep.mubr.bf16.mxu0 %v589
        %1256 = vmatmul.mubr.bf16.gmra.mxu0 %v571
        %v1257 = vpop.f32.mrf.mxu0
        %v1258 = vadd.f32 0.0, %v1257
        %v1259 = vpop.f32.mrf.mxu0
        %v1260 = vpop.f32.mrf.mxu0
        %v1261 = vadd.f32 0.0, %v1260
        %v1262 = vpop.f32.mrf.mxu0
        %1263 = vmatprep.mubr.bf16.mxu0 %v590
        %1264 = vmatmul.mubr.bf16.gmra.mxu0 %v572
        %v1265 = vpop.f32.mrf.mxu0
        %v1266 = vadd.f32 0.0, %v1265
        %v1267 = vpop.f32.mrf.mxu0
        %v1268 = vpop.f32.mrf.mxu0
        %v1269 = vadd.f32 0.0, %v1268
        %v1270 = vpop.f32.mrf.mxu0
        %1271 = vmatprep.mubr.bf16.mxu0 %v591
        %1272 = vmatmul.mubr.bf16.gmra.mxu0 %v573
        %v1273 = vpop.f32.mrf.mxu0
        %v1274 = vadd.f32 0.0, %v1273
        %v1275 = vpop.f32.mrf.mxu0
        %v1276 = vpop.f32.mrf.mxu0
        %v1277 = vadd.f32 0.0, %v1276
        %v1278 = vpop.f32.mrf.mxu0
        %1279 = vmatprep.mubr.bf16.mxu0 %v592
        %1280 = vmatmul.mubr.bf16.gmra.mxu0 %v574
        %v1281 = vpop.f32.mrf.mxu0
        %v1282 = vadd.f32 0.0, %v1281
        %v1283 = vpop.f32.mrf.mxu0
        %v1284 = vpop.f32.mrf.mxu0
        %v1285 = vadd.f32 0.0, %v1284
        %v1286 = vpop.f32.mrf.mxu0
        %1287 = vmatprep.mubr.bf16.mxu0 %v593
        %1288 = vmatmul.mubr.bf16.gmra.mxu0 %v575
        %v1289 = vpop.f32.mrf.mxu0
        %v1290 = vadd.f32 0.0, %v1289
        %v1291 = vpop.f32.mrf.mxu0
        %v1292 = vpop.f32.mrf.mxu0
        %v1293 = vadd.f32 0.0, %v1292
        %v1294 = vpop.f32.mrf.mxu0
        %1295 = vmatprep.mubr.bf16.mxu0 %v594
        %1296 = vmatmul.mubr.bf16.gmra.mxu0 %v576
        %v1297 = vpop.f32.mrf.mxu0
        %v1298 = vadd.f32 0.0, %v1297
        %v1299 = vpop.f32.mrf.mxu0
        %v1300 = vpop.f32.mrf.mxu0
        %v1301 = vadd.f32 0.0, %v1300
        %v1302 = vpop.f32.mrf.mxu0
        %1303 = vmatprep.mubr.bf16.mxu0 %v595
        %1304 = vmatmul.mubr.bf16.gmra.mxu0 %v577
        %v1305 = vpop.f32.mrf.mxu0
        %v1306 = vadd.f32 0.0, %v1305
        %v1307 = vpop.f32.mrf.mxu0
        %v1308 = vpop.f32.mrf.mxu0
        %v1309 = vadd.f32 0.0, %v1308
        %v1310 = vpop.f32.mrf.mxu0
        %1311 = vmatprep.mubr.bf16.mxu0 %v596
        %1312 = vmatmul.mubr.bf16.gmra.mxu0 %v578
        %v1313 = vpop.f32.mrf.mxu0
        %v1314 = vadd.f32 0.0, %v1313
        %v1315 = vpop.f32.mrf.mxu0
        %v1316 = vpop.f32.mrf.mxu0
        %v1317 = vadd.f32 0.0, %v1316
        %v1318 = vpop.f32.mrf.mxu0
        %1319 = vmatprep.mubr.bf16.mxu0 %v597
        %1320 = vmatmul.mubr.bf16.gmra.mxu0 %v579
        %v1321 = vpop.f32.mrf.mxu0
        %v1322 = vadd.f32 0.0, %v1321
        %v1323 = vpop.f32.mrf.mxu0
        %v1324 = vpop.f32.mrf.mxu0
        %v1325 = vadd.f32 0.0, %v1324
        %v1326 = vpop.f32.mrf.mxu0
        %1327 = vmatprep.mubr.bf16.mxu0 %v598
        %1328 = vmatmul.mubr.bf16.gmra.mxu0 %v580
        %v1329 = vpop.f32.mrf.mxu0
        %v1330 = vadd.f32 0.0, %v1329
        %v1331 = vpop.f32.mrf.mxu0
        %v1332 = vpop.f32.mrf.mxu0
        %v1333 = vadd.f32 0.0, %v1332
        %v1334 = vpop.f32.mrf.mxu0
        %1335 = vmatprep.mubr.bf16.mxu0 %v599
        %1336 = vmatmul.mubr.bf16.gmra.mxu0 %v581
        %v1337 = vpop.f32.mrf.mxu0
        %v1338 = vadd.f32 0.0, %v1337
        %v1339 = vpop.f32.mrf.mxu0
        %v1340 = vpop.f32.mrf.mxu0
        %v1341 = vadd.f32 0.0, %v1340
        %v1342 = vpop.f32.mrf.mxu0
        %1343 = vmatprep.mubr.bf16.mxu0 %v600
        %1344 = vmatmul.mubr.bf16.gmra.mxu0 %v582
        %v1345 = vpop.f32.mrf.mxu0
        %v1346 = vadd.f32 0.0, %v1345
        %v1347 = vpop.f32.mrf.mxu0
        %v1348 = vpop.f32.mrf.mxu0
        %v1349 = vadd.f32 0.0, %v1348
        %v1350 = vpop.f32.mrf.mxu0
        %1351 = vmatprep.mubr.bf16.mxu0 %v601
        %1352 = vmatmul.mubr.bf16.gmra.mxu0 %v583
        %v1353 = vpop.f32.mrf.mxu0
        %v1354 = vadd.f32 0.0, %v1353
        %v1355 = vpop.f32.mrf.mxu0
        %v1356 = vpop.f32.mrf.mxu0
        %v1357 = vadd.f32 0.0, %v1356
        %v1358 = vpop.f32.mrf.mxu0
        %1359 = vdwg.mxu0
        %1360 = vmatprep.subr.bf16.mxu0 0
        %1361 = vmatpush1.bf16.msra.mxu0 %v1078
        %1362 = vmatprep.subr.bf16.mxu0 0
        %1363 = vmatpush1.bf16.msra.mxu0 %v1077
        %1364 = vmatprep.subr.bf16.mxu0 0
        %1365 = vmatpush1.bf16.msra.mxu0 %v1076
        %1366 = vmatprep.subr.bf16.mxu0 0
        %1367 = vmatpush1.bf16.msra.mxu0 %v1075
        %1368 = vmatprep.subr.bf16.mxu0 0
        %1369 = vmatpush1.bf16.msra.mxu0 %v1074
        %1370 = vmatprep.subr.bf16.mxu0 0
        %1371 = vmatpush1.bf16.msra.mxu0 %v1073
        %1372 = vmatprep.subr.bf16.mxu0 0
        %1373 = vmatpush1.bf16.msra.mxu0 %v1072
        %1374 = vmatprep.subr.bf16.mxu0 0
        %1375 = vmatpush1.bf16.msra.mxu0 %v1071
        %1376 = vmatprep.subr.bf16.mxu0 0
        %1377 = vmatpush2.bf16.msra.mxu0 %v1086
        %1378 = vmatprep.subr.bf16.mxu0 0
        %1379 = vmatpush2.bf16.msra.mxu0 %v1085
        %1380 = vmatprep.subr.bf16.mxu0 0
        %1381 = vmatpush2.bf16.msra.mxu0 %v1084
        %1382 = vmatprep.subr.bf16.mxu0 0
        %1383 = vmatpush2.bf16.msra.mxu0 %v1083
        %1384 = vmatprep.subr.bf16.mxu0 0
        %1385 = vmatpush2.bf16.msra.mxu0 %v1082
        %1386 = vmatprep.subr.bf16.mxu0 0
        %1387 = vmatpush2.bf16.msra.mxu0 %v1081
        %1388 = vmatprep.subr.bf16.mxu0 0
        %1389 = vmatpush2.bf16.msra.mxu0 %v1080
        %1390 = vmatprep.subr.bf16.mxu0 0
        %1391 = vmatpush2.bf16.msra.mxu0 %v1079
        %1392 = vmatprep.mubr.bf16.mxu0 %v569
        %1393 = vmatmul.mubr.bf16.gmra.mxu0 %v604
        %v1394 = vpop.f32.mrf.mxu0
        %v1395 = vadd.f32 %v1234, %v1394
        %v1396 = vpop.f32.mrf.mxu0
        %v1397 = vpop.f32.mrf.mxu0
        %v1398 = vadd.f32 %v1237, %v1397
        %v1399 = vpop.f32.mrf.mxu0
        %1400 = vmatprep.mubr.bf16.mxu0 %v570
        %1401 = vmatmul.mubr.bf16.gmra.mxu0 %v605
        %v1402 = vpop.f32.mrf.mxu0
        %v1403 = vadd.f32 %v1242, %v1402
        %v1404 = vpop.f32.mrf.mxu0
        %v1405 = vpop.f32.mrf.mxu0
        %v1406 = vadd.f32 %v1245, %v1405
        %v1407 = vpop.f32.mrf.mxu0
        %1408 = vmatprep.mubr.bf16.mxu0 %v571
        %1409 = vmatmul.mubr.bf16.gmra.mxu0 %v606
        %v1410 = vpop.f32.mrf.mxu0
        %v1411 = vadd.f32 %v1250, %v1410
        %v1412 = vpop.f32.mrf.mxu0
        %v1413 = vpop.f32.mrf.mxu0
        %v1414 = vadd.f32 %v1253, %v1413
        %v1415 = vpop.f32.mrf.mxu0
        %1416 = vmatprep.mubr.bf16.mxu0 %v572
        %1417 = vmatmul.mubr.bf16.gmra.mxu0 %v607
        %v1418 = vpop.f32.mrf.mxu0
        %v1419 = vadd.f32 %v1258, %v1418
        %v1420 = vpop.f32.mrf.mxu0
        %v1421 = vpop.f32.mrf.mxu0
        %v1422 = vadd.f32 %v1261, %v1421
        %v1423 = vpop.f32.mrf.mxu0
        %1424 = vmatprep.mubr.bf16.mxu0 %v573
        %1425 = vmatmul.mubr.bf16.gmra.mxu0 %v608
        %v1426 = vpop.f32.mrf.mxu0
        %v1427 = vadd.f32 %v1266, %v1426
        %v1428 = vpop.f32.mrf.mxu0
        %v1429 = vpop.f32.mrf.mxu0
        %v1430 = vadd.f32 %v1269, %v1429
        %v1431 = vpop.f32.mrf.mxu0
        %1432 = vmatprep.mubr.bf16.mxu0 %v574
        %1433 = vmatmul.mubr.bf16.gmra.mxu0 %v609
        %v1434 = vpop.f32.mrf.mxu0
        %v1435 = vadd.f32 %v1274, %v1434
        %v1436 = vpop.f32.mrf.mxu0
        %v1437 = vpop.f32.mrf.mxu0
        %v1438 = vadd.f32 %v1277, %v1437
        %v1439 = vpop.f32.mrf.mxu0
        %1440 = vmatprep.mubr.bf16.mxu0 %v575
        %1441 = vmatmul.mubr.bf16.gmra.mxu0 %v610
        %v1442 = vpop.f32.mrf.mxu0
        %v1443 = vadd.f32 %v1282, %v1442
        %v1444 = vpop.f32.mrf.mxu0
        %v1445 = vpop.f32.mrf.mxu0
        %v1446 = vadd.f32 %v1285, %v1445
        %v1447 = vpop.f32.mrf.mxu0
        %1448 = vmatprep.mubr.bf16.mxu0 %v576
        %1449 = vmatmul.mubr.bf16.gmra.mxu0 %v611
        %v1450 = vpop.f32.mrf.mxu0
        %v1451 = vadd.f32 %v1290, %v1450
        %v1452 = vpop.f32.mrf.mxu0
        %v1453 = vpop.f32.mrf.mxu0
        %v1454 = vadd.f32 %v1293, %v1453
        %v1455 = vpop.f32.mrf.mxu0
        %1456 = vmatprep.mubr.bf16.mxu0 %v577
        %1457 = vmatmul.mubr.bf16.gmra.mxu0 %v612
        %v1458 = vpop.f32.mrf.mxu0
        %v1459 = vadd.f32 %v1298, %v1458
        %v1460 = vpop.f32.mrf.mxu0
        %v1461 = vpop.f32.mrf.mxu0
        %v1462 = vadd.f32 %v1301, %v1461
        %v1463 = vpop.f32.mrf.mxu0
        %1464 = vmatprep.mubr.bf16.mxu0 %v578
        %1465 = vmatmul.mubr.bf16.gmra.mxu0 %v613
        %v1466 = vpop.f32.mrf.mxu0
        %v1467 = vadd.f32 %v1306, %v1466
        %v1468 = vpop.f32.mrf.mxu0
        %v1469 = vpop.f32.mrf.mxu0
        %v1470 = vadd.f32 %v1309, %v1469
        %v1471 = vpop.f32.mrf.mxu0
        %1472 = vmatprep.mubr.bf16.mxu0 %v579
        %1473 = vmatmul.mubr.bf16.gmra.mxu0 %v614
        %v1474 = vpop.f32.mrf.mxu0
        %v1475 = vadd.f32 %v1314, %v1474
        %v1476 = vpop.f32.mrf.mxu0
        %v1477 = vpop.f32.mrf.mxu0
        %v1478 = vadd.f32 %v1317, %v1477
        %v1479 = vpop.f32.mrf.mxu0
        %1480 = vmatprep.mubr.bf16.mxu0 %v580
        %1481 = vmatmul.mubr.bf16.gmra.mxu0 %v615
        %v1482 = vpop.f32.mrf.mxu0
        %v1483 = vadd.f32 %v1322, %v1482
        %v1484 = vpop.f32.mrf.mxu0
        %v1485 = vpop.f32.mrf.mxu0
        %v1486 = vadd.f32 %v1325, %v1485
        %v1487 = vpop.f32.mrf.mxu0
        %1488 = vmatprep.mubr.bf16.mxu0 %v581
        %1489 = vmatmul.mubr.bf16.gmra.mxu0 %v616
        %v1490 = vpop.f32.mrf.mxu0
        %v1491 = vadd.f32 %v1330, %v1490
        %v1492 = vpop.f32.mrf.mxu0
        %v1493 = vpop.f32.mrf.mxu0
        %v1494 = vadd.f32 %v1333, %v1493
        %v1495 = vpop.f32.mrf.mxu0
        %1496 = vmatprep.mubr.bf16.mxu0 %v582
        %1497 = vmatmul.mubr.bf16.gmra.mxu0 %v617
        %v1498 = vpop.f32.mrf.mxu0
        %v1499 = vadd.f32 %v1338, %v1498
        %v1500 = vpop.f32.mrf.mxu0
        %v1501 = vpop.f32.mrf.mxu0
        %v1502 = vadd.f32 %v1341, %v1501
        %v1503 = vpop.f32.mrf.mxu0
        %1504 = vmatprep.mubr.bf16.mxu0 %v583
        %1505 = vmatmul.mubr.bf16.gmra.mxu0 %v618
        %v1506 = vpop.f32.mrf.mxu0
        %v1507 = vadd.f32 %v1346, %v1506
        %v1508 = vpop.f32.mrf.mxu0
        %v1509 = vpop.f32.mrf.mxu0
        %v1510 = vadd.f32 %v1349, %v1509
        %v1511 = vpop.f32.mrf.mxu0
        %1512 = vmatprep.mubr.bf16.mxu0 %v584
        %1513 = vmatmul.mubr.bf16.gmra.mxu0 %v619
        %v1514 = vpop.f32.mrf.mxu0
        %v1515 = vadd.f32 %v1354, %v1514
        %v1516 = vpop.f32.mrf.mxu0
        %v1517 = vpop.f32.mrf.mxu0
        %v1518 = vadd.f32 %v1357, %v1517
        %v1519 = vpop.f32.mrf.mxu0
        %1520 = vdwg.mxu0
        %1521 = vmatprep.subr.bf16.mxu0 0
        %1522 = vmatpush1.bf16.msra.mxu0 %v1094
        %1523 = vmatprep.subr.bf16.mxu0 0
        %1524 = vmatpush1.bf16.msra.mxu0 %v1093
        %1525 = vmatprep.subr.bf16.mxu0 0
        %1526 = vmatpush1.bf16.msra.mxu0 %v1092
        %1527 = vmatprep.subr.bf16.mxu0 0
        %1528 = vmatpush1.bf16.msra.mxu0 %v1091
        %1529 = vmatprep.subr.bf16.mxu0 0
        %1530 = vmatpush1.bf16.msra.mxu0 %v1090
        %1531 = vmatprep.subr.bf16.mxu0 0
        %1532 = vmatpush1.bf16.msra.mxu0 %v1089
        %1533 = vmatprep.subr.bf16.mxu0 0
        %1534 = vmatpush1.bf16.msra.mxu0 %v1088
        %1535 = vmatprep.subr.bf16.mxu0 0
        %1536 = vmatpush1.bf16.msra.mxu0 %v1087
        %1537 = vmatprep.subr.bf16.mxu0 0
        %1538 = vmatpush2.bf16.msra.mxu0 %v1102
        %1539 = vmatprep.subr.bf16.mxu0 0
        %1540 = vmatpush2.bf16.msra.mxu0 %v1101
        %1541 = vmatprep.subr.bf16.mxu0 0
        %1542 = vmatpush2.bf16.msra.mxu0 %v1100
        %1543 = vmatprep.subr.bf16.mxu0 0
        %1544 = vmatpush2.bf16.msra.mxu0 %v1099
        %1545 = vmatprep.subr.bf16.mxu0 0
        %1546 = vmatpush2.bf16.msra.mxu0 %v1098
        %1547 = vmatprep.subr.bf16.mxu0 0
        %1548 = vmatpush2.bf16.msra.mxu0 %v1097
        %1549 = vmatprep.subr.bf16.mxu0 0
        %1550 = vmatpush2.bf16.msra.mxu0 %v1096
        %1551 = vmatprep.subr.bf16.mxu0 0
        %1552 = vmatpush2.bf16.msra.mxu0 %v1095
        %1553 = vmatprep.mubr.bf16.mxu0 %v605
        %1554 = vmatmul.mubr.bf16.gmra.mxu0 %v587
        %v1555 = vpop.f32.mrf.mxu0
        %v1556 = vadd.f32 %v1395, %v1555
        %v1557 = vpop.f32.mrf.mxu0
        %v1558 = vpop.f32.mrf.mxu0
        %v1559 = vadd.f32 %v1398, %v1558
        %v1560 = vpop.f32.mrf.mxu0
        %1561 = vmatprep.mubr.bf16.mxu0 %v606
        %1562 = vmatmul.mubr.bf16.gmra.mxu0 %v588
        %v1563 = vpop.f32.mrf.mxu0
        %v1564 = vadd.f32 %v1403, %v1563
        %v1565 = vpop.f32.mrf.mxu0
        %v1566 = vpop.f32.mrf.mxu0
        %v1567 = vadd.f32 %v1406, %v1566
        %v1568 = vpop.f32.mrf.mxu0
        %1569 = vmatprep.mubr.bf16.mxu0 %v607
        %1570 = vmatmul.mubr.bf16.gmra.mxu0 %v589
        %v1571 = vpop.f32.mrf.mxu0
        %v1572 = vadd.f32 %v1411, %v1571
        %v1573 = vpop.f32.mrf.mxu0
        %v1574 = vpop.f32.mrf.mxu0
        %v1575 = vadd.f32 %v1414, %v1574
        %v1576 = vpop.f32.mrf.mxu0
        %1577 = vmatprep.mubr.bf16.mxu0 %v608
        %1578 = vmatmul.mubr.bf16.gmra.mxu0 %v590
        %v1579 = vpop.f32.mrf.mxu0
        %v1580 = vadd.f32 %v1419, %v1579
        %v1581 = vpop.f32.mrf.mxu0
        %v1582 = vpop.f32.mrf.mxu0
        %v1583 = vadd.f32 %v1422, %v1582
        %v1584 = vpop.f32.mrf.mxu0
        %1585 = vmatprep.mubr.bf16.mxu0 %v609
        %1586 = vmatmul.mubr.bf16.gmra.mxu0 %v591
        %v1587 = vpop.f32.mrf.mxu0
        %v1588 = vadd.f32 %v1427, %v1587
        %v1589 = vpop.f32.mrf.mxu0
        %v1590 = vpop.f32.mrf.mxu0
        %v1591 = vadd.f32 %v1430, %v1590
        %v1592 = vpop.f32.mrf.mxu0
        %1593 = vmatprep.mubr.bf16.mxu0 %v610
        %1594 = vmatmul.mubr.bf16.gmra.mxu0 %v592
        %v1595 = vpop.f32.mrf.mxu0
        %v1596 = vadd.f32 %v1435, %v1595
        %v1597 = vpop.f32.mrf.mxu0
        %v1598 = vpop.f32.mrf.mxu0
        %v1599 = vadd.f32 %v1438, %v1598
        %v1600 = vpop.f32.mrf.mxu0
        %1601 = vmatprep.mubr.bf16.mxu0 %v611
        %1602 = vmatmul.mubr.bf16.gmra.mxu0 %v593
        %v1603 = vpop.f32.mrf.mxu0
        %v1604 = vadd.f32 %v1443, %v1603
        %v1605 = vpop.f32.mrf.mxu0
        %v1606 = vpop.f32.mrf.mxu0
        %v1607 = vadd.f32 %v1446, %v1606
        %v1608 = vpop.f32.mrf.mxu0
        %1609 = vmatprep.mubr.bf16.mxu0 %v612
        %1610 = vmatmul.mubr.bf16.gmra.mxu0 %v594
        %v1611 = vpop.f32.mrf.mxu0
        %v1612 = vadd.f32 %v1451, %v1611
        %v1613 = vpop.f32.mrf.mxu0
        %v1614 = vpop.f32.mrf.mxu0
        %v1615 = vadd.f32 %v1454, %v1614
        %v1616 = vpop.f32.mrf.mxu0
        %1617 = vmatprep.mubr.bf16.mxu0 %v613
        %1618 = vmatmul.mubr.bf16.gmra.mxu0 %v595
        %v1619 = vpop.f32.mrf.mxu0
        %v1620 = vadd.f32 %v1459, %v1619
        %v1621 = vpop.f32.mrf.mxu0
        %v1622 = vpop.f32.mrf.mxu0
        %v1623 = vadd.f32 %v1462, %v1622
        %v1624 = vpop.f32.mrf.mxu0
        %1625 = vmatprep.mubr.bf16.mxu0 %v614
        %1626 = vmatmul.mubr.bf16.gmra.mxu0 %v596
        %v1627 = vpop.f32.mrf.mxu0
        %v1628 = vadd.f32 %v1467, %v1627
        %v1629 = vpop.f32.mrf.mxu0
        %v1630 = vpop.f32.mrf.mxu0
        %v1631 = vadd.f32 %v1470, %v1630
        %v1632 = vpop.f32.mrf.mxu0
        %1633 = vmatprep.mubr.bf16.mxu0 %v615
        %1634 = vmatmul.mubr.bf16.gmra.mxu0 %v597
        %v1635 = vpop.f32.mrf.mxu0
        %v1636 = vadd.f32 %v1475, %v1635
        %v1637 = vpop.f32.mrf.mxu0
        %v1638 = vpop.f32.mrf.mxu0
        %v1639 = vadd.f32 %v1478, %v1638
        %v1640 = vpop.f32.mrf.mxu0
        %1641 = vmatprep.mubr.bf16.mxu0 %v616
        %1642 = vmatmul.mubr.bf16.gmra.mxu0 %v598
        %v1643 = vpop.f32.mrf.mxu0
        %v1644 = vadd.f32 %v1483, %v1643
        %v1645 = vpop.f32.mrf.mxu0
        %v1646 = vpop.f32.mrf.mxu0
        %v1647 = vadd.f32 %v1486, %v1646
        %v1648 = vpop.f32.mrf.mxu0
        %1649 = vmatprep.mubr.bf16.mxu0 %v617
        %1650 = vmatmul.mubr.bf16.gmra.mxu0 %v599
        %v1651 = vpop.f32.mrf.mxu0
        %v1652 = vadd.f32 %v1491, %v1651
        %v1653 = vpop.f32.mrf.mxu0
        %v1654 = vpop.f32.mrf.mxu0
        %v1655 = vadd.f32 %v1494, %v1654
        %v1656 = vpop.f32.mrf.mxu0
        %1657 = vmatprep.mubr.bf16.mxu0 %v618
        %1658 = vmatmul.mubr.bf16.gmra.mxu0 %v600
        %v1659 = vpop.f32.mrf.mxu0
        %v1660 = vadd.f32 %v1499, %v1659
        %v1661 = vpop.f32.mrf.mxu0
        %v1662 = vpop.f32.mrf.mxu0
        %v1663 = vadd.f32 %v1502, %v1662
        %v1664 = vpop.f32.mrf.mxu0
        %1665 = vmatprep.mubr.bf16.mxu0 %v619
        %1666 = vmatmul.mubr.bf16.gmra.mxu0 %v601
        %v1667 = vpop.f32.mrf.mxu0
        %v1668 = vadd.f32 %v1507, %v1667
        %v1669 = vpop.f32.mrf.mxu0
        %v1670 = vpop.f32.mrf.mxu0
        %v1671 = vadd.f32 %v1510, %v1670
        %v1672 = vpop.f32.mrf.mxu0
        %1673 = vmatprep.mubr.bf16.mxu0 %v620
        %1674 = vmatmul.mubr.bf16.gmra.mxu0 %v602
        %v1675 = vpop.f32.mrf.mxu0
        %v1676 = vadd.f32 %v1515, %v1675
        %v1677 = vpop.f32.mrf.mxu0
        %v1678 = vpop.f32.mrf.mxu0
        %v1679 = vadd.f32 %v1518, %v1678
        %v1680 = vpop.f32.mrf.mxu0
        %1681 = vdwg.mxu0
        %1682 = vmatprep.subr.bf16.mxu0 0
        %1683 = vmatpush1.bf16.msra.mxu0 %v1110
        %1684 = vmatprep.subr.bf16.mxu0 0
        %1685 = vmatpush1.bf16.msra.mxu0 %v1109
        %1686 = vmatprep.subr.bf16.mxu0 0
        %1687 = vmatpush1.bf16.msra.mxu0 %v1108
        %1688 = vmatprep.subr.bf16.mxu0 0
        %1689 = vmatpush1.bf16.msra.mxu0 %v1107
        %1690 = vmatprep.subr.bf16.mxu0 0
        %1691 = vmatpush1.bf16.msra.mxu0 %v1106
        %1692 = vmatprep.subr.bf16.mxu0 0
        %1693 = vmatpush1.bf16.msra.mxu0 %v1105
        %1694 = vmatprep.subr.bf16.mxu0 0
        %1695 = vmatpush1.bf16.msra.mxu0 %v1104
        %1696 = vmatprep.subr.bf16.mxu0 0
        %1697 = vmatpush1.bf16.msra.mxu0 %v1103
        %1698 = vmatprep.subr.bf16.mxu0 0
        %1699 = vmatpush2.bf16.msra.mxu0 %v1118
        %1700 = vmatprep.subr.bf16.mxu0 0
        %1701 = vmatpush2.bf16.msra.mxu0 %v1117
        %1702 = vmatprep.subr.bf16.mxu0 0
        %1703 = vmatpush2.bf16.msra.mxu0 %v1116
        %1704 = vmatprep.subr.bf16.mxu0 0
        %1705 = vmatpush2.bf16.msra.mxu0 %v1115
        %1706 = vmatprep.subr.bf16.mxu0 0
        %1707 = vmatpush2.bf16.msra.mxu0 %v1114
        %1708 = vmatprep.subr.bf16.mxu0 0
        %1709 = vmatpush2.bf16.msra.mxu0 %v1113
        %1710 = vmatprep.subr.bf16.mxu0 0
        %1711 = vmatpush2.bf16.msra.mxu0 %v1112
        %1712 = vmatprep.subr.bf16.mxu0 0
        %1713 = vmatpush2.bf16.msra.mxu0 %v1111
        %1714 = vmatprep.mubr.bf16.mxu0 %v588
        %1715 = vmatmul.mubr.bf16.gmra.mxu0 %v570
        %v1716 = vpop.f32.mrf.mxu0
        %v1717 = vadd.f32 %v1556, %v1716
        %v1718 = vpop.f32.mrf.mxu0
        %v1719 = vpop.f32.mrf.mxu0
        %v1720 = vadd.f32 %v1559, %v1719
        %v1721 = vpop.f32.mrf.mxu0
        %1722 = vmatprep.mubr.bf16.mxu0 %v589
        %1723 = vmatmul.mubr.bf16.gmra.mxu0 %v571
        %v1724 = vpop.f32.mrf.mxu0
        %v1725 = vadd.f32 %v1564, %v1724
        %v1726 = vpop.f32.mrf.mxu0
        %v1727 = vpop.f32.mrf.mxu0
        %v1728 = vadd.f32 %v1567, %v1727
        %v1729 = vpop.f32.mrf.mxu0
        %1730 = vmatprep.mubr.bf16.mxu0 %v590
        %1731 = vmatmul.mubr.bf16.gmra.mxu0 %v572
        %v1732 = vpop.f32.mrf.mxu0
        %v1733 = vadd.f32 %v1572, %v1732
        %v1734 = vpop.f32.mrf.mxu0
        %v1735 = vpop.f32.mrf.mxu0
        %v1736 = vadd.f32 %v1575, %v1735
        %v1737 = vpop.f32.mrf.mxu0
        %1738 = vmatprep.mubr.bf16.mxu0 %v591
        %1739 = vmatmul.mubr.bf16.gmra.mxu0 %v573
        %v1740 = vpop.f32.mrf.mxu0
        %v1741 = vadd.f32 %v1580, %v1740
        %v1742 = vpop.f32.mrf.mxu0
        %v1743 = vpop.f32.mrf.mxu0
        %v1744 = vadd.f32 %v1583, %v1743
        %v1745 = vpop.f32.mrf.mxu0
        %1746 = vmatprep.mubr.bf16.mxu0 %v592
        %1747 = vmatmul.mubr.bf16.gmra.mxu0 %v574
        %v1748 = vpop.f32.mrf.mxu0
        %v1749 = vadd.f32 %v1588, %v1748
        %v1750 = vpop.f32.mrf.mxu0
        %v1751 = vpop.f32.mrf.mxu0
        %v1752 = vadd.f32 %v1591, %v1751
        %v1753 = vpop.f32.mrf.mxu0
        %1754 = vmatprep.mubr.bf16.mxu0 %v593
        %1755 = vmatmul.mubr.bf16.gmra.mxu0 %v575
        %v1756 = vpop.f32.mrf.mxu0
        %v1757 = vadd.f32 %v1596, %v1756
        %v1758 = vpop.f32.mrf.mxu0
        %v1759 = vpop.f32.mrf.mxu0
        %v1760 = vadd.f32 %v1599, %v1759
        %v1761 = vpop.f32.mrf.mxu0
        %1762 = vmatprep.mubr.bf16.mxu0 %v594
        %1763 = vmatmul.mubr.bf16.gmra.mxu0 %v576
        %v1764 = vpop.f32.mrf.mxu0
        %v1765 = vadd.f32 %v1604, %v1764
        %v1766 = vpop.f32.mrf.mxu0
        %v1767 = vpop.f32.mrf.mxu0
        %v1768 = vadd.f32 %v1607, %v1767
        %v1769 = vpop.f32.mrf.mxu0
        %1770 = vmatprep.mubr.bf16.mxu0 %v595
        %1771 = vmatmul.mubr.bf16.gmra.mxu0 %v577
        %v1772 = vpop.f32.mrf.mxu0
        %v1773 = vadd.f32 %v1612, %v1772
        %v1774 = vpop.f32.mrf.mxu0
        %v1775 = vpop.f32.mrf.mxu0
        %v1776 = vadd.f32 %v1615, %v1775
        %v1777 = vpop.f32.mrf.mxu0
        %1778 = vmatprep.mubr.bf16.mxu0 %v596
        %1779 = vmatmul.mubr.bf16.gmra.mxu0 %v578
        %v1780 = vpop.f32.mrf.mxu0
        %v1781 = vadd.f32 %v1620, %v1780
        %v1782 = vpop.f32.mrf.mxu0
        %v1783 = vpop.f32.mrf.mxu0
        %v1784 = vadd.f32 %v1623, %v1783
        %v1785 = vpop.f32.mrf.mxu0
        %1786 = vmatprep.mubr.bf16.mxu0 %v597
        %1787 = vmatmul.mubr.bf16.gmra.mxu0 %v579
        %v1788 = vpop.f32.mrf.mxu0
        %v1789 = vadd.f32 %v1628, %v1788
        %v1790 = vpop.f32.mrf.mxu0
        %v1791 = vpop.f32.mrf.mxu0
        %v1792 = vadd.f32 %v1631, %v1791
        %v1793 = vpop.f32.mrf.mxu0
        %1794 = vmatprep.mubr.bf16.mxu0 %v598
        %1795 = vmatmul.mubr.bf16.gmra.mxu0 %v580
        %v1796 = vpop.f32.mrf.mxu0
        %v1797 = vadd.f32 %v1636, %v1796
        %v1798 = vpop.f32.mrf.mxu0
        %v1799 = vpop.f32.mrf.mxu0
        %v1800 = vadd.f32 %v1639, %v1799
        %v1801 = vpop.f32.mrf.mxu0
        %1802 = vmatprep.mubr.bf16.mxu0 %v599
        %1803 = vmatmul.mubr.bf16.gmra.mxu0 %v581
        %v1804 = vpop.f32.mrf.mxu0
        %v1805 = vadd.f32 %v1644, %v1804
        %v1806 = vpop.f32.mrf.mxu0
        %v1807 = vpop.f32.mrf.mxu0
        %v1808 = vadd.f32 %v1647, %v1807
        %v1809 = vpop.f32.mrf.mxu0
        %1810 = vmatprep.mubr.bf16.mxu0 %v600
        %1811 = vmatmul.mubr.bf16.gmra.mxu0 %v582
        %v1812 = vpop.f32.mrf.mxu0
        %v1813 = vadd.f32 %v1652, %v1812
        %v1814 = vpop.f32.mrf.mxu0
        %v1815 = vpop.f32.mrf.mxu0
        %v1816 = vadd.f32 %v1655, %v1815
        %v1817 = vpop.f32.mrf.mxu0
        %1818 = vmatprep.mubr.bf16.mxu0 %v601
        %1819 = vmatmul.mubr.bf16.gmra.mxu0 %v583
        %v1820 = vpop.f32.mrf.mxu0
        %v1821 = vadd.f32 %v1660, %v1820
        %v1822 = vpop.f32.mrf.mxu0
        %v1823 = vpop.f32.mrf.mxu0
        %v1824 = vadd.f32 %v1663, %v1823
        %v1825 = vpop.f32.mrf.mxu0
        %1826 = vmatprep.mubr.bf16.mxu0 %v602
        %1827 = vmatmul.mubr.bf16.gmra.mxu0 %v584
        %v1828 = vpop.f32.mrf.mxu0
        %v1829 = vadd.f32 %v1668, %v1828
        %v1830 = vpop.f32.mrf.mxu0
        %v1831 = vpop.f32.mrf.mxu0
        %v1832 = vadd.f32 %v1671, %v1831
        %v1833 = vpop.f32.mrf.mxu0
        %1834 = vmatprep.mubr.bf16.mxu0 %v603
        %1835 = vmatmul.mubr.bf16.gmra.mxu0 %v585
        %v1836 = vpop.f32.mrf.mxu0
        %v1837 = vadd.f32 %v1676, %v1836
        %v1838 = vpop.f32.mrf.mxu0
        %v1839 = vpop.f32.mrf.mxu0
        %v1840 = vadd.f32 %v1679, %v1839
        %v1841 = vpop.f32.mrf.mxu0
        %1842 = vdwg.mxu0
        %1843 = vmatprep.subr.bf16.mxu0 0
        %1844 = vmatpush1.bf16.msra.mxu0 %v1126
        %1845 = vmatprep.subr.bf16.mxu0 0
        %1846 = vmatpush1.bf16.msra.mxu0 %v1125
        %1847 = vmatprep.subr.bf16.mxu0 0
        %1848 = vmatpush1.bf16.msra.mxu0 %v1124
        %1849 = vmatprep.subr.bf16.mxu0 0
        %1850 = vmatpush1.bf16.msra.mxu0 %v1123
        %1851 = vmatprep.subr.bf16.mxu0 0
        %1852 = vmatpush1.bf16.msra.mxu0 %v1122
        %1853 = vmatprep.subr.bf16.mxu0 0
        %1854 = vmatpush1.bf16.msra.mxu0 %v1121
        %1855 = vmatprep.subr.bf16.mxu0 0
        %1856 = vmatpush1.bf16.msra.mxu0 %v1120
        %1857 = vmatprep.subr.bf16.mxu0 0
        %1858 = vmatpush1.bf16.msra.mxu0 %v1119
        %1859 = vmatprep.subr.bf16.mxu0 0
        %1860 = vmatpush2.bf16.msra.mxu0 0
        %1861 = vmatprep.subr.bf16.mxu0 0
        %1862 = vmatpush2.bf16.msra.mxu0 0
        %1863 = vmatprep.subr.bf16.mxu0 0
        %1864 = vmatpush2.bf16.msra.mxu0 0
        %1865 = vmatprep.subr.bf16.mxu0 0
        %1866 = vmatpush2.bf16.msra.mxu0 0
        %1867 = vmatprep.subr.bf16.mxu0 0
        %1868 = vmatpush2.bf16.msra.mxu0 0
        %1869 = vmatprep.subr.bf16.mxu0 0
        %1870 = vmatpush2.bf16.msra.mxu0 0
        %1871 = vmatprep.subr.bf16.mxu0 0
        %1872 = vmatpush2.bf16.msra.mxu0 0
        %1873 = vmatprep.subr.bf16.mxu0 0
        %1874 = vmatpush2.bf16.msra.mxu0 0
        %1875 = vmatprep.mubr.bf16.mxu0 0
        %1876 = vmatmul.mubr.bf16.gmra.mxu0 %v606
        %v1877 = vpop.f32.mrf.mxu0
        %v1878 = vadd.f32 %v1717, %v1877
        %v1879 = vpop.f32.mrf.mxu0
        %v1880 = vpop.f32.mrf.mxu0
        %v1881 = vadd.f32 %v1720, %v1880
        %v1882 = vpop.f32.mrf.mxu0
        %1883 = vmatprep.mubr.bf16.mxu0 0
        %1884 = vmatmul.mubr.bf16.gmra.mxu0 %v607
        %v1885 = vpop.f32.mrf.mxu0
        %v1886 = vadd.f32 %v1725, %v1885
        %v1887 = vpop.f32.mrf.mxu0
        %v1888 = vpop.f32.mrf.mxu0
        %v1889 = vadd.f32 %v1728, %v1888
        %v1890 = vpop.f32.mrf.mxu0
        %1891 = vmatprep.mubr.bf16.mxu0 0
        %1892 = vmatmul.mubr.bf16.gmra.mxu0 %v608
        %v1893 = vpop.f32.mrf.mxu0
        %v1894 = vadd.f32 %v1733, %v1893
        %v1895 = vpop.f32.mrf.mxu0
        %v1896 = vpop.f32.mrf.mxu0
        %v1897 = vadd.f32 %v1736, %v1896
        %v1898 = vpop.f32.mrf.mxu0
        %1899 = vmatprep.mubr.bf16.mxu0 0
        %1900 = vmatmul.mubr.bf16.gmra.mxu0 %v609
        %v1901 = vpop.f32.mrf.mxu0
        %v1902 = vadd.f32 %v1741, %v1901
        %v1903 = vpop.f32.mrf.mxu0
        %v1904 = vpop.f32.mrf.mxu0
        %v1905 = vadd.f32 %v1744, %v1904
        %v1906 = vpop.f32.mrf.mxu0
        %1907 = vmatprep.mubr.bf16.mxu0 0
        %1908 = vmatmul.mubr.bf16.gmra.mxu0 %v610
        %v1909 = vpop.f32.mrf.mxu0
        %v1910 = vadd.f32 %v1749, %v1909
        %v1911 = vpop.f32.mrf.mxu0
        %v1912 = vpop.f32.mrf.mxu0
        %v1913 = vadd.f32 %v1752, %v1912
        %v1914 = vpop.f32.mrf.mxu0
        %1915 = vmatprep.mubr.bf16.mxu0 0
        %1916 = vmatmul.mubr.bf16.gmra.mxu0 %v611
        %v1917 = vpop.f32.mrf.mxu0
        %v1918 = vadd.f32 %v1757, %v1917
        %v1919 = vpop.f32.mrf.mxu0
        %v1920 = vpop.f32.mrf.mxu0
        %v1921 = vadd.f32 %v1760, %v1920
        %v1922 = vpop.f32.mrf.mxu0
        %1923 = vmatprep.mubr.bf16.mxu0 0
        %1924 = vmatmul.mubr.bf16.gmra.mxu0 %v612
        %v1925 = vpop.f32.mrf.mxu0
        %v1926 = vadd.f32 %v1765, %v1925
        %v1927 = vpop.f32.mrf.mxu0
        %v1928 = vpop.f32.mrf.mxu0
        %v1929 = vadd.f32 %v1768, %v1928
        %v1930 = vpop.f32.mrf.mxu0
        %1931 = vmatprep.mubr.bf16.mxu0 0
        %1932 = vmatmul.mubr.bf16.gmra.mxu0 %v613
        %v1933 = vpop.f32.mrf.mxu0
        %v1934 = vadd.f32 %v1773, %v1933
        %v1935 = vpop.f32.mrf.mxu0
        %v1936 = vpop.f32.mrf.mxu0
        %v1937 = vadd.f32 %v1776, %v1936
        %v1938 = vpop.f32.mrf.mxu0
        %1939 = vmatprep.mubr.bf16.mxu0 0
        %1940 = vmatmul.mubr.bf16.gmra.mxu0 %v614
        %v1941 = vpop.f32.mrf.mxu0
        %v1942 = vadd.f32 %v1781, %v1941
        %v1943 = vpop.f32.mrf.mxu0
        %v1944 = vpop.f32.mrf.mxu0
        %v1945 = vadd.f32 %v1784, %v1944
        %v1946 = vpop.f32.mrf.mxu0
        %1947 = vmatprep.mubr.bf16.mxu0 0
        %1948 = vmatmul.mubr.bf16.gmra.mxu0 %v615
        %v1949 = vpop.f32.mrf.mxu0
        %v1950 = vadd.f32 %v1789, %v1949
        %v1951 = vpop.f32.mrf.mxu0
        %v1952 = vpop.f32.mrf.mxu0
        %v1953 = vadd.f32 %v1792, %v1952
        %v1954 = vpop.f32.mrf.mxu0
        %1955 = vmatprep.mubr.bf16.mxu0 0
        %1956 = vmatmul.mubr.bf16.gmra.mxu0 %v616
        %v1957 = vpop.f32.mrf.mxu0
        %v1958 = vadd.f32 %v1797, %v1957
        %v1959 = vpop.f32.mrf.mxu0
        %v1960 = vpop.f32.mrf.mxu0
        %v1961 = vadd.f32 %v1800, %v1960
        %v1962 = vpop.f32.mrf.mxu0
        %1963 = vmatprep.mubr.bf16.mxu0 0
        %1964 = vmatmul.mubr.bf16.gmra.mxu0 %v617
        %v1965 = vpop.f32.mrf.mxu0
        %v1966 = vadd.f32 %v1805, %v1965
        %v1967 = vpop.f32.mrf.mxu0
        %v1968 = vpop.f32.mrf.mxu0
        %v1969 = vadd.f32 %v1808, %v1968
        %v1970 = vpop.f32.mrf.mxu0
        %1971 = vmatprep.mubr.bf16.mxu0 0
        %1972 = vmatmul.mubr.bf16.gmra.mxu0 %v618
        %v1973 = vpop.f32.mrf.mxu0
        %v1974 = vadd.f32 %v1813, %v1973
        %v1975 = vpop.f32.mrf.mxu0
        %v1976 = vpop.f32.mrf.mxu0
        %v1977 = vadd.f32 %v1816, %v1976
        %v1978 = vpop.f32.mrf.mxu0
        %1979 = vmatprep.mubr.bf16.mxu0 0
        %1980 = vmatmul.mubr.bf16.gmra.mxu0 %v619
        %v1981 = vpop.f32.mrf.mxu0
        %v1982 = vadd.f32 %v1821, %v1981
        %v1983 = vpop.f32.mrf.mxu0
        %v1984 = vpop.f32.mrf.mxu0
        %v1985 = vadd.f32 %v1824, %v1984
        %v1986 = vpop.f32.mrf.mxu0
        %1987 = vmatprep.mubr.bf16.mxu0 0
        %1988 = vmatmul.mubr.bf16.gmra.mxu0 %v620
        %v1989 = vpop.f32.mrf.mxu0
        %v1990 = vadd.f32 %v1829, %v1989
        %v1991 = vpop.f32.mrf.mxu0
        %v1992 = vpop.f32.mrf.mxu0
        %v1993 = vadd.f32 %v1832, %v1992
        %v1994 = vpop.f32.mrf.mxu0
        %1995 = vmatprep.mubr.bf16.mxu0 0
        %1996 = vmatmul.mubr.bf16.gmra.mxu0 %v621
        %v1997 = vpop.f32.mrf.mxu0
        %v1998 = vadd.f32 %v1837, %v1997
        %v1999 = vpop.f32.mrf.mxu0
        %v2000 = vpop.f32.mrf.mxu0
        %v2001 = vadd.f32 %v1840, %v2000
        %v2002 = vpop.f32.mrf.mxu0
        %2003 = vdwg.mxu0
        %v2004 = vadd.f32 %v1878, %v242
        %v2005 = vadd.f32 %v1881, %v243
        %v2006 = vadd.f32 %v1886, %v244
        %v2007 = vadd.f32 %v1889, %v245
        %v2008 = vadd.f32 %v1894, %v246
        %v2009 = vadd.f32 %v1897, %v247
        %v2010 = vadd.f32 %v1902, %v248
        %v2011 = vadd.f32 %v1905, %v249
        %v2012 = vadd.f32 %v1910, %v250
        %v2013 = vadd.f32 %v1913, %v251
        %v2014 = vadd.f32 %v1918, %v252
        %v2015 = vadd.f32 %v1921, %v253
        %v2016 = vadd.f32 %v1926, %v254
        %v2017 = vadd.f32 %v1929, %v255
        %v2018 = vadd.f32 %v1934, %v256
        %v2019 = vadd.f32 %v1937, %v257
        %v2020 = vadd.f32 %v1942, %v258
        %v2021 = vadd.f32 %v1945, %v259
        %v2022 = vadd.f32 %v1950, %v260
        %v2023 = vadd.f32 %v1953, %v261
        %v2024 = vadd.f32 %v1958, %v262
        %v2025 = vadd.f32 %v1961, %v263
        %v2026 = vadd.f32 %v1966, %v264
        %v2027 = vadd.f32 %v1969, %v265
        %v2028 = vadd.f32 %v1974, %v266
        %v2029 = vadd.f32 %v1977, %v267
        %v2030 = vadd.f32 %v1982, %v268
        %v2031 = vadd.f32 %v1985, %v269
        %v2032 = vadd.f32 %v1990, %v270
        %v2033 = vadd.f32 %v1993, %v271
        %v2034 = vadd.f32 %v1998, %v272
        %v2035 = vadd.f32 %v2001, %v273
        %v2037 = vlaneseq
        %v2038 = vshrl.u32 %v2037, 7
        %v2039 = vsub.s32 0, %v2038
        %v2040 = vrot.slane %v766, %v2039
        %v2042 = vadd.f32 %v2004, %v2040
        %v2043 = vadd.f32 %v2005, %v2040
        %v2044 = vadd.f32 %v2006, %v2040
        %v2045 = vadd.f32 %v2007, %v2040
        %v2046 = vadd.f32 %v2008, %v2040
        %v2047 = vadd.f32 %v2009, %v2040
        %v2048 = vadd.f32 %v2010, %v2040
        %v2049 = vadd.f32 %v2011, %v2040
        %v2050 = vadd.f32 %v2012, %v2040
        %v2051 = vadd.f32 %v2013, %v2040
        %v2052 = vadd.f32 %v2014, %v2040
        %v2053 = vadd.f32 %v2015, %v2040
        %v2054 = vadd.f32 %v2016, %v2040
        %v2055 = vadd.f32 %v2017, %v2040
        %v2056 = vadd.f32 %v2018, %v2040
        %v2057 = vadd.f32 %v2019, %v2040
        %v2058 = vadd.f32 %v2020, %v2040
        %v2059 = vadd.f32 %v2021, %v2040
        %v2060 = vadd.f32 %v2022, %v2040
        %v2061 = vadd.f32 %v2023, %v2040
        %v2062 = vadd.f32 %v2024, %v2040
        %v2063 = vadd.f32 %v2025, %v2040
        %v2064 = vadd.f32 %v2026, %v2040
        %v2065 = vadd.f32 %v2027, %v2040
        %v2066 = vadd.f32 %v2028, %v2040
        %v2067 = vadd.f32 %v2029, %v2040
        %v2068 = vadd.f32 %v2030, %v2040
        %v2069 = vadd.f32 %v2031, %v2040
        %v2070 = vadd.f32 %v2032, %v2040
        %v2071 = vadd.f32 %v2033, %v2040
        %v2072 = vadd.f32 %v2034, %v2040
        %v2073 = vadd.f32 %v2035, %v2040
        %2074 = vst [vmem:[%s226] sm:$0xff] %v2042
        %2075 = vst [vmem:[%s226 + $0x8] sm:$0xff] %v2043
        %2076 = vst [vmem:[%s226 + $0x10] sm:$0xff] %v2044
        %2077 = vst [vmem:[%s226 + $0x18] sm:$0xff] %v2045
        %2078 = vst [vmem:[%s226 + $0x20] sm:$0xff] %v2046
        %2079 = vst [vmem:[%s226 + $0x28] sm:$0xff] %v2047
        %2080 = vst [vmem:[%s226 + $0x30] sm:$0xff] %v2048
        %2081 = vst [vmem:[%s226 + $0x38] sm:$0xff] %v2049
        %2082 = vst [vmem:[%s226 + $0x40] sm:$0xff] %v2050
        %2083 = vst [vmem:[%s226 + $0x48] sm:$0xff] %v2051
        %2084 = vst [vmem:[%s226 + $0x50] sm:$0xff] %v2052
        %2085 = vst [vmem:[%s226 + $0x58] sm:$0xff] %v2053
        %2086 = vst [vmem:[%s226 + $0x60] sm:$0xff] %v2054
        %2087 = vst [vmem:[%s226 + $0x68] sm:$0xff] %v2055
        %2088 = vst [vmem:[%s226 + $0x70] sm:$0xff] %v2056
        %2089 = vst [vmem:[%s226 + $0x78] sm:$0xff] %v2057
        %2090 = vst [vmem:[%s226 + $0x80] sm:$0xff] %v2058
        %2091 = vst [vmem:[%s226 + $0x88] sm:$0xff] %v2059
        %2092 = vst [vmem:[%s226 + $0x90] sm:$0xff] %v2060
        %2093 = vst [vmem:[%s226 + $0x98] sm:$0xff] %v2061
        %2094 = vst [vmem:[%s226 + $0xa0] sm:$0xff] %v2062
        %2095 = vst [vmem:[%s226 + $0xa8] sm:$0xff] %v2063
        %2096 = vst [vmem:[%s226 + $0xb0] sm:$0xff] %v2064
        %2097 = vst [vmem:[%s226 + $0xb8] sm:$0xff] %v2065
        %2098 = vst [vmem:[%s226 + $0xc0] sm:$0xff] %v2066
        %2099 = vst [vmem:[%s226 + $0xc8] sm:$0xff] %v2067
        %2100 = vst [vmem:[%s226 + $0xd0] sm:$0xff] %v2068
        %2101 = vst [vmem:[%s226 + $0xd8] sm:$0xff] %v2069
        %2102 = vst [vmem:[%s226 + $0xe0] sm:$0xff] %v2070
        %2103 = vst [vmem:[%s226 + $0xe8] sm:$0xff] %v2071
        %2104 = vst [vmem:[%s226 + $0xf0] sm:$0xff] %v2072
        %2105 = vst [vmem:[%s226 + $0xf8] sm:$0xff] %v2073
        %s2106 = sand.u32 %s120, 1
        %s2107 = scalar_lea.sflag [#allocation4], %s2106
        %s2108 = sand.u32 %s120, 1
        %s2109 = smul.addr %s2108, 256
        %s2110 = scalar_lea.vmem [#allocation7], %s2109
        // Predicated region
        $region41: #{tpu_custom_call.1} parent=31 // pred_check
          %p2111 = pneg %p130
        $region42: #{tpu_custom_call.1} parent=31 // pred_check_branch
          %2113 = sbr.rel (%p2111) target = $region44
        $region43: #{tpu_custom_call.1} parent=31 // pred_region
          %s2114 = smul.u32 16, %s27
          %s2116 = ssub.s32 4096, 4096
          %2117 = vsyncadd %s2107, %s2116
          %s2118 = smul.addr %s2114, 2
          %s2119 = sadd.s32 %s28, %s2118
          %s2120 = smul.addr %s26, 32
          %s2121 = sadd.s32 %s2119, %s2120
          %s2122 = smul.addr %s2121, 128
          %s2123 = scalar_lea.hbm %s3, %s2122
          %s2124 = sshll.u32 %s2110, 4
          %s2125 = int_to_ptr.vmem [resolvable:$true] %s2124
          %2130 = dma.vmem_to_hbm [thread:$0]  %s2125, 4096, %s2123, %s2107, 128, 128, 8
        $region44: #{tpu_custom_call.1} parent=31 // pred_fallthru
          _
      $region32: #{tpu_custom_call.1} parent=5 // pred_fallthru
        _
      %p2131 = scmp.le.s32.totalorder 2, %s16
      // Predicated region
      $region45: #{tpu_custom_call.1} parent=5 // pred_check
        %p2132 = pneg %p2131
      $region46: #{tpu_custom_call.1} parent=5 // pred_check_branch
        %2134 = sbr.rel (%p2132) target = $region48
      $region47: #{tpu_custom_call.1} parent=5 // pred_region
        %s2135 = ssub.s32 %s16, 2
        // Predicated region
        $region49: #{tpu_custom_call.1} parent=47 // pred_check
          %p2136 = pneg %p136
        $region50: #{tpu_custom_call.1} parent=47 // pred_check_branch
          %2138 = sbr.rel (%p2136) target = $region52
        $region51: #{tpu_custom_call.1} parent=47 // pred_region
          %s2139 = sand.u32 %s121, 1
          %s2140 = scalar_lea.sflag [#allocation4], %s2139
          %s2141 = sand.u32 %s121, 1
          %s2142 = smul.addr %s2141, 256
          %s2143 = scalar_lea.vmem [#allocation7], %s2142
          %2144 = dma.done %s2140, 4096
        $region52: #{tpu_custom_call.1} parent=47 // pred_fallthru
          _
      $region48: #{tpu_custom_call.1} parent=5 // pred_fallthru
        _
    $region6: #{tpu_custom_call.1} parent=1 // loop_footer
      %s20 = sadd.s32 1, %s16
    $region7: #{tpu_custom_call.1} parent=1 // loop_footer_branch
      %15 = sbr.rel target = $region3
    $region8: #{tpu_custom_call.1} parent=1 // loop_exit
      _
    %2145 = vsyncpa [#allocation3], 1
    %s2146 = scalar_lea.sflag [#allocation3], 1
    %2147 = vsyncpa %s2146, 1
    %2148 = vsyncpa [#allocation6], 1
    %2149 = vsyncpa [#allocation4], 1
    %s2150 = scalar_lea.sflag [#allocation4], 1
    %2151 = vsyncpa %s2150, 1

</llo_original>
